<compile_context>
chip_gen: v6e
topology: v6e:2x2x1
jax: 0.10.0
libtpu: 0.0.40
codegen_flags: <defaults>
</compile_context>

<pallas_src>
import jax
import jax.numpy as jnp
from jax import lax
from jax.experimental import pallas as pl
from jax.experimental.pallas import tpu as pltpu

LANE = 128
SUBLANE = 8


# ----------------------------------------------------------------------------
# Kernel: whole sequence, both LSTM layers pipelined, in one invocation.
# ----------------------------------------------------------------------------
def tennis_lstm_kernel(
    x_ref,      # (T*Bp, Dp)    f32  time-major rows (t*Bp + b), zero-padded
    wih1_ref,   # (Dp, 4*H1)    f32  i/f/o cols pre-scaled by 0.5
    whh1_ref,   # (H1, 4*H1)    bf16 pre-scaled
    b1_ref,     # (1, 4*H1)     f32  pre-scaled
    wih2_ref,   # (H1, 4*H2p)   bf16 gate-block packed + pre-scaled
    whh2_ref,   # (H2p, 4*H2p)  bf16 gate-block packed + pre-scaled
    b2_ref,     # (1, 4*H2p)    f32  gate-block packed + pre-scaled
    wd_ref,     # (H2p, DENSEp) f32
    bd_ref,     # (1, DENSEp)   f32
    wo_ref,     # (DENSEp, OUTp) f32
    bo_ref,     # (1, OUTp)     f32
    out_ref,    # (Bp, OUTp)    f32
    xproj_ref,  # VMEM scratch (T*Bp, 4*H1) f32 — hoisted layer-1 projection
):
    H1 = whh1_ref.shape[0]
    H2p = whh2_ref.shape[0]
    Bp = out_ref.shape[0]
    T = x_ref.shape[0] // Bp

    # ---- Hoisted layer-1 input projection: one big MXU matmul (off serial path) -
    xproj_ref[...] = (
        jnp.dot(x_ref[...], wih1_ref[...], preferred_element_type=jnp.float32)
        + b1_ref[...]
    )

    # ---- Per-lane constants for the sigmoid-via-tanh trick (hoisted, no per-step
    #      broadcast_in_dim inside the loop). --------------------------------------
    def make_gate_consts(hdim):
        col = lax.broadcasted_iota(jnp.int32, (Bp, 4 * hdim), 1)
        is_g = jnp.logical_and(col >= 2 * hdim, col < 3 * hdim)
        a = jnp.where(is_g, 1.0, 0.5).astype(jnp.float32)
        b = jnp.where(is_g, 0.0, 0.5).astype(jnp.float32)
        return a, b

    ga1, gb1 = make_gate_consts(H1)
    ga2, gb2 = make_gate_consts(H2p)
    bias2 = jnp.broadcast_to(b2_ref[...], (Bp, 4 * H2p))

    def lstm_step(g_pre, c, hdim, ga, gb):
        # g_pre has i/f/o pre-activations already halved -> one tanh + one FMA.
        act = jnp.tanh(g_pre) * ga + gb
        i = act[:, 0 * hdim:1 * hdim]
        f = act[:, 1 * hdim:2 * hdim]
        g = act[:, 2 * hdim:3 * hdim]
        o = act[:, 3 * hdim:4 * hdim]
        c_new = f * c + i * g
        h_new = o * jnp.tanh(c_new)
        return h_new, c_new

    def layer2_gates(h1_prev, h2):
        # bf16 weights / bf16-cast activations, f32 accumulation.
        return (
            jnp.dot(h1_prev.astype(jnp.bfloat16), wih2_ref[...],
                    preferred_element_type=jnp.float32)
            + jnp.dot(h2.astype(jnp.bfloat16), whh2_ref[...],
                      preferred_element_type=jnp.float32)
            + bias2
        )

    zeros1 = jnp.zeros((Bp, H1), jnp.float32)
    zeros2 = jnp.zeros((Bp, H2p), jnp.float32)

    # ---- Prologue: layer-1 step 0 (h1_init = 0 => no recurrent term) ------------
    h1, c1 = lstm_step(xproj_ref[pl.ds(0, Bp), :], zeros1, H1, ga1, gb1)
    h2, c2 = zeros2, zeros2

    # ---- Fused pipelined recurrence: layer-2 step t-1 || layer-1 step t ---------
    # TODO(synk): Whh could be kept resident in the MXU via pltpu.matmul_push_rhs /
    # matmul_acc_lhs to avoid the per-step RHS push; left as jnp.dot for robustness.
    def body(t, carry):
        h1, c1, h2, c2 = carry
        # Layer-2 step t-1 (consumes h1_{t-1} from the carry; independent of below).
        h2n, c2n = lstm_step(layer2_gates(h1, h2), c2, H2p, ga2, gb2)
        # Layer-1 step t (only h @ Whh1 + gates remain on the serial path).
        off = pl.multiple_of(t * Bp, Bp)
        g1 = xproj_ref[pl.ds(off, Bp), :] + jnp.dot(
            h1.astype(jnp.bfloat16), whh1_ref[...],
            preferred_element_type=jnp.float32)
        h1n, c1n = lstm_step(g1, c1, H1, ga1, gb1)
        return (h1n, c1n, h2n, c2n)

    h1, c1, h2, c2 = lax.fori_loop(1, T, body, (h1, c1, h2, c2), unroll=True)

    # ---- Epilogue: final layer-2 step (t = T-1) ----------------------------------
    h2_last, _ = lstm_step(layer2_gates(h1, h2), c2, H2p, ga2, gb2)

    # ---- Head on last timestep (dropout = identity in eval mode) -----------------
    d = jnp.maximum(
        jnp.dot(h2_last, wd_ref[...], preferred_element_type=jnp.float32)
        + bd_ref[...],
        0.0,
    )
    out_ref[...] = (
        jnp.dot(d, wo_ref[...], preferred_element_type=jnp.float32) + bo_ref[...]
    )


# ----------------------------------------------------------------------------
# Host-side packing / padding + pallas_call wrapper
# ----------------------------------------------------------------------------
def _pad_to(n, m):
    return ((n + m - 1) // m) * m


def _pack_params(params, input_size):
    (wih1, whh1, b1, wih2, whh2, b2, wd, bd, wo, bo) = params
    H1 = whh1.shape[0]
    H2 = whh2.shape[0]
    DENSE = wd.shape[1]
    OUT = wo.shape[1]

    Dp = _pad_to(input_size, LANE)
    H2p = LANE                       # pad H2=64 up to one full lane block
    DENSEp = _pad_to(DENSE, LANE)
    OUTp = _pad_to(OUT, LANE)

    def scale_ifo(w, h):
        # Halve the i, f, o gate column blocks (sigmoid(x) = 0.5*(tanh(x/2)+1)).
        w = w.at[:, 0 * h:2 * h].multiply(0.5)
        w = w.at[:, 3 * h:4 * h].multiply(0.5)
        return w

    # Layer 1 (H1=128 -> gate blocks already 128-lane aligned).
    wih1_p = jnp.zeros((Dp, 4 * H1), jnp.float32).at[:input_size].set(wih1)
    wih1_p = scale_ifo(wih1_p, H1)
    whh1_p = scale_ifo(whh1.astype(jnp.float32), H1).astype(jnp.bfloat16)
    b1_p = scale_ifo(b1.astype(jnp.float32), H1)

    # Layer 2: repack each gate into its own full 128-lane block, then scale.
    def pack_gates(w, rows_p):
        rows = w.shape[0]
        out = jnp.zeros((rows_p, 4 * H2p), jnp.float32)
        for k in range(4):
            out = out.at[:rows, k * H2p:k * H2p + H2].set(
                w[:, k * H2:(k + 1) * H2])
        return out

    wih2_p = scale_ifo(pack_gates(wih2, H1), H2p).astype(jnp.bfloat16)
    whh2_p = scale_ifo(pack_gates(whh2, H2p), H2p).astype(jnp.bfloat16)
    b2_p = scale_ifo(pack_gates(b2, 1), H2p)

    wd_p = jnp.zeros((H2p, DENSEp), jnp.float32).at[:H2, :DENSE].set(wd)
    bd_p = jnp.zeros((1, DENSEp), jnp.float32).at[:, :DENSE].set(bd)
    wo_p = jnp.zeros((DENSEp, OUTp), jnp.float32).at[:DENSE, :OUT].set(wo)
    bo_p = jnp.zeros((1, OUTp), jnp.float32).at[:, :OUT].set(bo)

    packed = (wih1_p, whh1_p, b1_p, wih2_p, whh2_p, b2_p, wd_p, bd_p, wo_p, bo_p)
    return packed, (Dp, H2p, DENSEp, OUTp)


def tennis_lstm_forward(x, params):
    """x: (B, T, D) float32. Returns (B, 5, 2)."""
    B, T, D = x.shape
    packed, (Dp, H2p, DENSEp, OUTp) = _pack_params(params, D)
    (wih1_p, whh1_p, b1_p, wih2_p, whh2_p, b2_p,
     wd_p, bd_p, wo_p, bo_p) = packed
    H1 = whh1_p.shape[0]

    Bp = _pad_to(max(B, SUBLANE), SUBLANE)

    # Time-major, batch padded to full sublane group, features padded to lanes.
    x_tm = jnp.zeros((T, Bp, Dp), jnp.float32)
    x_tm = x_tm.at[:, :B, :D].set(
        jnp.transpose(x, (1, 0, 2)).astype(jnp.float32))
    x_flat = x_tm.reshape(T * Bp, Dp)

    full2 = lambda i: (0, 0)
    inputs = (x_flat, wih1_p, whh1_p, b1_p, wih2_p, whh2_p, b2_p,
              wd_p, bd_p, wo_p, bo_p)

    out = pl.pallas_call(
        tennis_lstm_kernel,
        out_shape=jax.ShapeDtypeStruct((Bp, OUTp), jnp.float32),
        grid_spec=pltpu.PrefetchScalarGridSpec(
            num_scalar_prefetch=0,
            grid=(1,),                       # single invocation; loop is in-kernel
            in_specs=[pl.BlockSpec(a.shape, full2) for a in inputs],
            out_specs=pl.BlockSpec((Bp, OUTp), full2),
            scratch_shapes=[
                pltpu.VMEM((T * Bp, 4 * H1), jnp.float32),  # layer-1 proj slab
            ],
        ),
        compiler_params=pltpu.CompilerParams(
            dimension_semantics=("arbitrary",),
        ),
    )(*inputs)

    n_out = params[-1].shape[1]  # 10
    return out[:B, :n_out].reshape(-1, 5, 2)


# ----------------------------------------------------------------------------
# Pure-JAX reference (mirrors PyTorch nn.LSTM / nn.Linear semantics)
# ----------------------------------------------------------------------------
def _lstm_layer_ref(x, wih, whh, b):
    B, T, D = x.shape
    H = whh.shape[0]
    hp = jax.lax.Precision.HIGHEST

    def step(carry, xt):
        h, c = carry
        g = (jnp.dot(xt, wih, precision=hp)
             + jnp.dot(h, whh, precision=hp) + b)
        i = jax.nn.sigmoid(g[:, 0 * H:1 * H])
        f = jax.nn.sigmoid(g[:, 1 * H:2 * H])
        gg = jnp.tanh(g[:, 2 * H:3 * H])
        o = jax.nn.sigmoid(g[:, 3 * H:4 * H])
        c = f * c + i * gg
        h = o * jnp.tanh(c)
        return (h, c), h

    init = (jnp.zeros((B, H), jnp.float32), jnp.zeros((B, H), jnp.float32))
    _, hs = jax.lax.scan(step, init, jnp.transpose(x, (1, 0, 2)))
    return jnp.transpose(hs, (1, 0, 2))


def tennis_lstm_ref(x, params):
    (wih1, whh1, b1, wih2, whh2, b2, wd, bd, wo, bo) = params
    hp = jax.lax.Precision.HIGHEST
    h1 = _lstm_layer_ref(x, wih1, whh1, b1)
    h2 = _lstm_layer_ref(h1, wih2, whh2, b2)
    h2_last = h2[:, -1, :]
    d = jnp.maximum(jnp.dot(h2_last, wd, precision=hp) + bd, 0.0)
    out = jnp.dot(d, wo, precision=hp) + bo
    return out.reshape(-1, 5, 2)


# ----------------------------------------------------------------------------
# Deterministic parameter init (shapes match the nn.Module; synthetic values)
# ----------------------------------------------------------------------------
def init_params(key, input_size=69, h1=128, h2=64):
    ks = jax.random.split(key, 10)
    sc = 0.1
    # Stored transposed so kernels do row-vector @ matrix (PyTorch gate order i,f,g,o).
    wih1 = sc * jax.random.normal(ks[0], (input_size, 4 * h1), jnp.float32)
    whh1 = sc * jax.random.normal(ks[1], (h1, 4 * h1), jnp.float32)
    b1 = sc * jax.random.normal(ks[2], (1, 4 * h1), jnp.float32)      # b_ih + b_hh
    wih2 = sc * jax.random.normal(ks[3], (h1, 4 * h2), jnp.float32)
    whh2 = sc * jax.random.normal(ks[4], (h2, 4 * h2), jnp.float32)
    b2 = sc * jax.random.normal(ks[5], (1, 4 * h2), jnp.float32)
    wd = sc * jax.random.normal(ks[6], (h2, 64), jnp.float32)
    bd = sc * jax.random.normal(ks[7], (1, 64), jnp.float32)
    wo = sc * jax.random.normal(ks[8], (64, 10), jnp.float32)
    bo = sc * jax.random.normal(ks[9], (1, 10), jnp.float32)
    return (wih1, whh1, b1, wih2, whh2, b2, wd, bd, wo, bo)


if __name__ == "__main__":
    key = jax.random.PRNGKey(0)
    k_x, k_p = jax.random.split(key)

    B, T, D = 2, 8, 69          # batch=2, seq=8, input_size=69 (module default)
    x = jax.random.normal(k_x, (B, T, D), jnp.float32)
    params = init_params(k_p, input_size=D)

    out = jax.block_until_ready(tennis_lstm_forward(x, params))
    ref = jax.block_until_ready(tennis_lstm_ref(x, params))

    assert out.shape == (B, 5, 2), out.shape
    assert jnp.allclose(out, ref, rtol=1e-2, atol=1e-2), (
        f"max abs err {jnp.max(jnp.abs(out - ref))}")

    print("KERNEL_OK")
</pallas_src>

<mosaic_0001>
module attributes {stable_mosaic.version = 11 : i64} {
  func.func @tennis_lstm_kernel(%arg0: i32, %arg1: memref<64x128xf32, #tpu.memory_space<vmem>>, %arg2: memref<128x512xf32, #tpu.memory_space<vmem>>, %arg3: memref<128x512xbf16, #tpu.memory_space<vmem>>, %arg4: memref<1x512xf32, #tpu.memory_space<vmem>>, %arg5: memref<128x512xbf16, #tpu.memory_space<vmem>>, %arg6: memref<128x512xbf16, #tpu.memory_space<vmem>>, %arg7: memref<1x512xf32, #tpu.memory_space<vmem>>, %arg8: memref<128x128xf32, #tpu.memory_space<vmem>>, %arg9: memref<1x128xf32, #tpu.memory_space<vmem>>, %arg10: memref<128x128xf32, #tpu.memory_space<vmem>>, %arg11: memref<1x128xf32, #tpu.memory_space<vmem>>, %arg12: memref<8x128xf32, #tpu.memory_space<vmem>>, %arg13: memref<64x512xf32, #tpu.memory_space<vmem>>) attributes {dimension_semantics = [#tpu.dimension_semantics<arbitrary>], iteration_bounds = array<i64: 1>, scalar_prefetch = 0 : i64, scratch_operands = 1 : i64, tpu.core_type = #tpu.core_type<tc>, window_params = [{pipeline_mode = #tpu.pipeline_mode<synchronous>, transform_indices = @transform_0, window_bounds = array<i64: 64, 128>}, {pipeline_mode = #tpu.pipeline_mode<synchronous>, transform_indices = @transform_1, window_bounds = array<i64: 128, 512>}, {pipeline_mode = #tpu.pipeline_mode<synchronous>, transform_indices = @transform_2, window_bounds = array<i64: 128, 512>}, {pipeline_mode = #tpu.pipeline_mode<synchronous>, transform_indices = @transform_3, window_bounds = array<i64: 1, 512>}, {pipeline_mode = #tpu.pipeline_mode<synchronous>, transform_indices = @transform_4, window_bounds = array<i64: 128, 512>}, {pipeline_mode = #tpu.pipeline_mode<synchronous>, transform_indices = @transform_5, window_bounds = array<i64: 128, 512>}, {pipeline_mode = #tpu.pipeline_mode<synchronous>, transform_indices = @transform_6, window_bounds = array<i64: 1, 512>}, {pipeline_mode = #tpu.pipeline_mode<synchronous>, transform_indices = @transform_7, window_bounds = array<i64: 128, 128>}, {pipeline_mode = #tpu.pipeline_mode<synchronous>, transform_indices = @transform_8, window_bounds = array<i64: 1, 128>}, {pipeline_mode = #tpu.pipeline_mode<synchronous>, transform_indices = @transform_9, window_bounds = array<i64: 128, 128>}, {pipeline_mode = #tpu.pipeline_mode<synchronous>, transform_indices = @transform_10, window_bounds = array<i64: 1, 128>}, {pipeline_mode = #tpu.pipeline_mode<synchronous>, transform_indices = @transform_11, window_bounds = array<i64: 8, 128>}]} {
    %c0 = arith.constant 0 : index
    %c0_0 = arith.constant 0 : index
    %0 = vector.load %arg1[%c0, %c0_0] : memref<64x128xf32, #tpu.memory_space<vmem>>, vector<64x128xf32>
    %c0_1 = arith.constant 0 : index
    %c0_2 = arith.constant 0 : index
    %1 = vector.load %arg2[%c0_1, %c0_2] : memref<128x512xf32, #tpu.memory_space<vmem>>, vector<128x512xf32>
    %cst = arith.constant dense<0.000000e+00> : vector<64x512xf32>
    %2 = tpu.matmul %0, %1, %cst {dimension_numbers = #tpu.dot_dimension_numbers<[1], [0], [0], [1], [0, 0, 1, 1], [], []>} : vector<64x128xf32>, vector<128x512xf32>, vector<64x512xf32> -> vector<64x512xf32>
    %c0_3 = arith.constant 0 : index
    %c0_4 = arith.constant 0 : index
    %3 = vector.load %arg4[%c0_3, %c0_4] : memref<1x512xf32, #tpu.memory_space<vmem>>, vector<1x512xf32>
    %4 = vector.broadcast %3 : vector<1x512xf32> to vector<64x512xf32>
    %5 = arith.addf %2, %4 : vector<64x512xf32>
    %c0_5 = arith.constant 0 : index
    %c0_6 = arith.constant 0 : index
    %6 = vector.load %arg13[%c0_5, %c0_6] : memref<64x512xf32, #tpu.memory_space<vmem>>, vector<64x512xf32>
    tpu.vector_store %arg13[%c0_5, %c0_6], %5 {strides = array<i32>} : memref<64x512xf32, #tpu.memory_space<vmem>>, vector<64x512xf32>,
    %7 = tpu.iota {dimensions = array<i32: 1>} : vector<8x512xi32>
    %c256_i32 = arith.constant 256 : i32
    %8 = vector.broadcast %c256_i32 : i32 to vector<8x512xi32>
    %9 = arith.cmpi sge, %7, %8 : vector<8x512xi32>
    %c384_i32 = arith.constant 384 : i32
    %10 = vector.broadcast %c384_i32 : i32 to vector<8x512xi32>
    %11 = arith.cmpi slt, %7, %10 : vector<8x512xi32>
    %12 = arith.andi %9, %11 : vector<8x512xi1>
    %cst_7 = arith.constant 1.000000e+00 : f32
    %cst_8 = arith.constant 5.000000e-01 : f32
    %13 = vector.broadcast %cst_7 : f32 to vector<8x512xf32>
    %14 = vector.broadcast %cst_8 : f32 to vector<8x512xf32>
    %15 = arith.select %12, %13, %14 : vector<8x512xi1>, vector<8x512xf32>
    %cst_9 = arith.constant 0.000000e+00 : f32
    %cst_10 = arith.constant 5.000000e-01 : f32
    %16 = vector.broadcast %cst_9 : f32 to vector<8x512xf32>
    %17 = vector.broadcast %cst_10 : f32 to vector<8x512xf32>
    %18 = arith.select %12, %16, %17 : vector<8x512xi1>, vector<8x512xf32>
    %19 = tpu.iota {dimensions = array<i32: 1>} : vector<8x512xi32>
    %c256_i32_11 = arith.constant 256 : i32
    %20 = vector.broadcast %c256_i32_11 : i32 to vector<8x512xi32>
    %21 = arith.cmpi sge, %19, %20 : vector<8x512xi32>
    %c384_i32_12 = arith.constant 384 : i32
    %22 = vector.broadcast %c384_i32_12 : i32 to vector<8x512xi32>
    %23 = arith.cmpi slt, %19, %22 : vector<8x512xi32>
    %24 = arith.andi %21, %23 : vector<8x512xi1>
    %cst_13 = arith.constant 1.000000e+00 : f32
    %cst_14 = arith.constant 5.000000e-01 : f32
    %25 = vector.broadcast %cst_13 : f32 to vector<8x512xf32>
    %26 = vector.broadcast %cst_14 : f32 to vector<8x512xf32>
    %27 = arith.select %24, %25, %26 : vector<8x512xi1>, vector<8x512xf32>
    %cst_15 = arith.constant 0.000000e+00 : f32
    %cst_16 = arith.constant 5.000000e-01 : f32
    %28 = vector.broadcast %cst_15 : f32 to vector<8x512xf32>
    %29 = vector.broadcast %cst_16 : f32 to vector<8x512xf32>
    %30 = arith.select %24, %28, %29 : vector<8x512xi1>, vector<8x512xf32>
    %c0_17 = arith.constant 0 : index
    %c0_18 = arith.constant 0 : index
    %31 = vector.load %arg7[%c0_17, %c0_18] : memref<1x512xf32, #tpu.memory_space<vmem>>, vector<1x512xf32>
    %32 = vector.shape_cast %31 : vector<1x512xf32> to vector<1x512xf32>
    %33 = vector.broadcast %32 : vector<1x512xf32> to vector<8x512xf32>
    %cst_19 = arith.constant 0.000000e+00 : f32
    %34 = vector.broadcast %cst_19 : f32 to vector<8x128xf32>
    %cst_20 = arith.constant 0.000000e+00 : f32
    %35 = vector.broadcast %cst_20 : f32 to vector<8x128xf32>
    %c0_21 = arith.constant 0 : index
    %c0_22 = arith.constant 0 : index
    %36 = vector.load %arg13[%c0_21, %c0_22] : memref<64x512xf32, #tpu.memory_space<vmem>>, vector<8x512xf32>
    %37 = math.tanh %36 : vector<8x512xf32>
    %38 = arith.mulf %37, %15 : vector<8x512xf32>
    %39 = arith.addf %38, %18 : vector<8x512xf32>
    %40 = vector.extract_strided_slice %39 {offsets = [0, 0], sizes = [8, 128], strides = [1, 1]} : vector<8x512xf32> to vector<8x128xf32>
    %41 = vector.extract_strided_slice %39 {offsets = [0, 128], sizes = [8, 128], strides = [1, 1]} : vector<8x512xf32> to vector<8x128xf32>
    %42 = vector.extract_strided_slice %39 {offsets = [0, 256], sizes = [8, 128], strides = [1, 1]} : vector<8x512xf32> to vector<8x128xf32>
    %43 = vector.extract_strided_slice %39 {offsets = [0, 384], sizes = [8, 128], strides = [1, 1]} : vector<8x512xf32> to vector<8x128xf32>
    %44 = arith.mulf %41, %34 : vector<8x128xf32>
    %45 = arith.mulf %40, %42 : vector<8x128xf32>
    %46 = arith.addf %44, %45 : vector<8x128xf32>
    %47 = math.tanh %46 : vector<8x128xf32>
    %48 = arith.mulf %43, %47 : vector<8x128xf32>
    %c1_i32 = arith.constant 1 : i32
    %49 = arith.truncf %48 : vector<8x128xf32> to vector<8x128xbf16>
    %c0_23 = arith.constant 0 : index
    %c0_24 = arith.constant 0 : index
    %50 = vector.load %arg5[%c0_23, %c0_24] : memref<128x512xbf16, #tpu.memory_space<vmem>>, vector<128x512xbf16>
    %cst_25 = arith.constant dense<0.000000e+00> : vector<8x512xf32>
    %51 = tpu.matmul %49, %50, %cst_25 {dimension_numbers = #tpu.dot_dimension_numbers<[1], [0], [0], [1], [0, 0, 1, 1], [], []>} : vector<8x128xbf16>, vector<128x512xbf16>, vector<8x512xf32> -> vector<8x512xf32>
    %52 = arith.truncf %35 : vector<8x128xf32> to vector<8x128xbf16>
    %c0_26 = arith.constant 0 : index
    %c0_27 = arith.constant 0 : index
    %53 = vector.load %arg6[%c0_26, %c0_27] : memref<128x512xbf16, #tpu.memory_space<vmem>>, vector<128x512xbf16>
    %cst_28 = arith.constant dense<0.000000e+00> : vector<8x512xf32>
    %54 = tpu.matmul %52, %53, %cst_28 {dimension_numbers = #tpu.dot_dimension_numbers<[1], [0], [0], [1], [0, 0, 1, 1], [], []>} : vector<8x128xbf16>, vector<128x512xbf16>, vector<8x512xf32> -> vector<8x512xf32>
    %55 = arith.addf %51, %54 : vector<8x512xf32>
    %56 = arith.addf %55, %33 : vector<8x512xf32>
    %57 = math.tanh %56 : vector<8x512xf32>
    %58 = arith.mulf %57, %27 : vector<8x512xf32>
    %59 = arith.addf %58, %30 : vector<8x512xf32>
    %60 = vector.extract_strided_slice %59 {offsets = [0, 0], sizes = [8, 128], strides = [1, 1]} : vector<8x512xf32> to vector<8x128xf32>
    %61 = vector.extract_strided_slice %59 {offsets = [0, 128], sizes = [8, 128], strides = [1, 1]} : vector<8x512xf32> to vector<8x128xf32>
    %62 = vector.extract_strided_slice %59 {offsets = [0, 256], sizes = [8, 128], strides = [1, 1]} : vector<8x512xf32> to vector<8x128xf32>
    %63 = vector.extract_strided_slice %59 {offsets = [0, 384], sizes = [8, 128], strides = [1, 1]} : vector<8x512xf32> to vector<8x128xf32>
    %64 = arith.mulf %61, %35 : vector<8x128xf32>
    %65 = arith.mulf %60, %62 : vector<8x128xf32>
    %66 = arith.addf %64, %65 : vector<8x128xf32>
    %67 = math.tanh %66 : vector<8x128xf32>
    %68 = arith.mulf %63, %67 : vector<8x128xf32>
    %c8_i32 = arith.constant 8 : i32
    %69 = arith.muli %c1_i32, %c8_i32 : i32
    %70 = tpu.assume_multiple %69, 8 : i32
    %71 = arith.index_cast %70 : i32 to index
    %c0_29 = arith.constant 0 : index
    %72 = vector.load %arg13[%71, %c0_29] : memref<64x512xf32, #tpu.memory_space<vmem>>, vector<8x512xf32>
    %73 = arith.truncf %48 : vector<8x128xf32> to vector<8x128xbf16>
    %c0_30 = arith.constant 0 : index
    %c0_31 = arith.constant 0 : index
    %74 = vector.load %arg3[%c0_30, %c0_31] : memref<128x512xbf16, #tpu.memory_space<vmem>>, vector<128x512xbf16>
    %cst_32 = arith.constant dense<0.000000e+00> : vector<8x512xf32>
    %75 = tpu.matmul %73, %74, %cst_32 {dimension_numbers = #tpu.dot_dimension_numbers<[1], [0], [0], [1], [0, 0, 1, 1], [], []>} : vector<8x128xbf16>, vector<128x512xbf16>, vector<8x512xf32> -> vector<8x512xf32>
    %76 = arith.addf %72, %75 : vector<8x512xf32>
    %77 = math.tanh %76 : vector<8x512xf32>
    %78 = arith.mulf %77, %15 : vector<8x512xf32>
    %79 = arith.addf %78, %18 : vector<8x512xf32>
    %80 = vector.extract_strided_slice %79 {offsets = [0, 0], sizes = [8, 128], strides = [1, 1]} : vector<8x512xf32> to vector<8x128xf32>
    %81 = vector.extract_strided_slice %79 {offsets = [0, 128], sizes = [8, 128], strides = [1, 1]} : vector<8x512xf32> to vector<8x128xf32>
    %82 = vector.extract_strided_slice %79 {offsets = [0, 256], sizes = [8, 128], strides = [1, 1]} : vector<8x512xf32> to vector<8x128xf32>
    %83 = vector.extract_strided_slice %79 {offsets = [0, 384], sizes = [8, 128], strides = [1, 1]} : vector<8x512xf32> to vector<8x128xf32>
    %84 = arith.mulf %81, %46 : vector<8x128xf32>
    %85 = arith.mulf %80, %82 : vector<8x128xf32>
    %86 = arith.addf %84, %85 : vector<8x128xf32>
    %87 = math.tanh %86 : vector<8x128xf32>
    %88 = arith.mulf %83, %87 : vector<8x128xf32>
    %c2_i32 = arith.constant 2 : i32
    %89 = arith.truncf %88 : vector<8x128xf32> to vector<8x128xbf16>
    %c0_33 = arith.constant 0 : index
    %c0_34 = arith.constant 0 : index
    %90 = vector.load %arg5[%c0_33, %c0_34] : memref<128x512xbf16, #tpu.memory_space<vmem>>, vector<128x512xbf16>
    %cst_35 = arith.constant dense<0.000000e+00> : vector<8x512xf32>
    %91 = tpu.matmul %89, %90, %cst_35 {dimension_numbers = #tpu.dot_dimension_numbers<[1], [0], [0], [1], [0, 0, 1, 1], [], []>} : vector<8x128xbf16>, vector<128x512xbf16>, vector<8x512xf32> -> vector<8x512xf32>
    %92 = arith.truncf %68 : vector<8x128xf32> to vector<8x128xbf16>
    %c0_36 = arith.constant 0 : index
    %c0_37 = arith.constant 0 : index
    %93 = vector.load %arg6[%c0_36, %c0_37] : memref<128x512xbf16, #tpu.memory_space<vmem>>, vector<128x512xbf16>
    %cst_38 = arith.constant dense<0.000000e+00> : vector<8x512xf32>
    %94 = tpu.matmul %92, %93, %cst_38 {dimension_numbers = #tpu.dot_dimension_numbers<[1], [0], [0], [1], [0, 0, 1, 1], [], []>} : vector<8x128xbf16>, vector<128x512xbf16>, vector<8x512xf32> -> vector<8x512xf32>
    %95 = arith.addf %91, %94 : vector<8x512xf32>
    %96 = arith.addf %95, %33 : vector<8x512xf32>
    %97 = math.tanh %96 : vector<8x512xf32>
    %98 = arith.mulf %97, %27 : vector<8x512xf32>
    %99 = arith.addf %98, %30 : vector<8x512xf32>
    %100 = vector.extract_strided_slice %99 {offsets = [0, 0], sizes = [8, 128], strides = [1, 1]} : vector<8x512xf32> to vector<8x128xf32>
    %101 = vector.extract_strided_slice %99 {offsets = [0, 128], sizes = [8, 128], strides = [1, 1]} : vector<8x512xf32> to vector<8x128xf32>
    %102 = vector.extract_strided_slice %99 {offsets = [0, 256], sizes = [8, 128], strides = [1, 1]} : vector<8x512xf32> to vector<8x128xf32>
    %103 = vector.extract_strided_slice %99 {offsets = [0, 384], sizes = [8, 128], strides = [1, 1]} : vector<8x512xf32> to vector<8x128xf32>
    %104 = arith.mulf %101, %66 : vector<8x128xf32>
    %105 = arith.mulf %100, %102 : vector<8x128xf32>
    %106 = arith.addf %104, %105 : vector<8x128xf32>
    %107 = math.tanh %106 : vector<8x128xf32>
    %108 = arith.mulf %103, %107 : vector<8x128xf32>
    %c8_i32_39 = arith.constant 8 : i32
    %109 = arith.muli %c2_i32, %c8_i32_39 : i32
    %110 = tpu.assume_multiple %109, 8 : i32
    %111 = arith.index_cast %110 : i32 to index
    %c0_40 = arith.constant 0 : index
    %112 = vector.load %arg13[%111, %c0_40] : memref<64x512xf32, #tpu.memory_space<vmem>>, vector<8x512xf32>
    %113 = arith.truncf %88 : vector<8x128xf32> to vector<8x128xbf16>
    %c0_41 = arith.constant 0 : index
    %c0_42 = arith.constant 0 : index
    %114 = vector.load %arg3[%c0_41, %c0_42] : memref<128x512xbf16, #tpu.memory_space<vmem>>, vector<128x512xbf16>
    %cst_43 = arith.constant dense<0.000000e+00> : vector<8x512xf32>
    %115 = tpu.matmul %113, %114, %cst_43 {dimension_numbers = #tpu.dot_dimension_numbers<[1], [0], [0], [1], [0, 0, 1, 1], [], []>} : vector<8x128xbf16>, vector<128x512xbf16>, vector<8x512xf32> -> vector<8x512xf32>
    %116 = arith.addf %112, %115 : vector<8x512xf32>
    %117 = math.tanh %116 : vector<8x512xf32>
    %118 = arith.mulf %117, %15 : vector<8x512xf32>
    %119 = arith.addf %118, %18 : vector<8x512xf32>
    %120 = vector.extract_strided_slice %119 {offsets = [0, 0], sizes = [8, 128], strides = [1, 1]} : vector<8x512xf32> to vector<8x128xf32>
    %121 = vector.extract_strided_slice %119 {offsets = [0, 128], sizes = [8, 128], strides = [1, 1]} : vector<8x512xf32> to vector<8x128xf32>
    %122 = vector.extract_strided_slice %119 {offsets = [0, 256], sizes = [8, 128], strides = [1, 1]} : vector<8x512xf32> to vector<8x128xf32>
    %123 = vector.extract_strided_slice %119 {offsets = [0, 384], sizes = [8, 128], strides = [1, 1]} : vector<8x512xf32> to vector<8x128xf32>
    %124 = arith.mulf %121, %86 : vector<8x128xf32>
    %125 = arith.mulf %120, %122 : vector<8x128xf32>
    %126 = arith.addf %124, %125 : vector<8x128xf32>
    %127 = math.tanh %126 : vector<8x128xf32>
    %128 = arith.mulf %123, %127 : vector<8x128xf32>
    %c3_i32 = arith.constant 3 : i32
    %129 = arith.truncf %128 : vector<8x128xf32> to vector<8x128xbf16>
    %c0_44 = arith.constant 0 : index
    %c0_45 = arith.constant 0 : index
    %130 = vector.load %arg5[%c0_44, %c0_45] : memref<128x512xbf16, #tpu.memory_space<vmem>>, vector<128x512xbf16>
    %cst_46 = arith.constant dense<0.000000e+00> : vector<8x512xf32>
    %131 = tpu.matmul %129, %130, %cst_46 {dimension_numbers = #tpu.dot_dimension_numbers<[1], [0], [0], [1], [0, 0, 1, 1], [], []>} : vector<8x128xbf16>, vector<128x512xbf16>, vector<8x512xf32> -> vector<8x512xf32>
    %132 = arith.truncf %108 : vector<8x128xf32> to vector<8x128xbf16>
    %c0_47 = arith.constant 0 : index
    %c0_48 = arith.constant 0 : index
    %133 = vector.load %arg6[%c0_47, %c0_48] : memref<128x512xbf16, #tpu.memory_space<vmem>>, vector<128x512xbf16>
    %cst_49 = arith.constant dense<0.000000e+00> : vector<8x512xf32>
    %134 = tpu.matmul %132, %133, %cst_49 {dimension_numbers = #tpu.dot_dimension_numbers<[1], [0], [0], [1], [0, 0, 1, 1], [], []>} : vector<8x128xbf16>, vector<128x512xbf16>, vector<8x512xf32> -> vector<8x512xf32>
    %135 = arith.addf %131, %134 : vector<8x512xf32>
    %136 = arith.addf %135, %33 : vector<8x512xf32>
    %137 = math.tanh %136 : vector<8x512xf32>
    %138 = arith.mulf %137, %27 : vector<8x512xf32>
    %139 = arith.addf %138, %30 : vector<8x512xf32>
    %140 = vector.extract_strided_slice %139 {offsets = [0, 0], sizes = [8, 128], strides = [1, 1]} : vector<8x512xf32> to vector<8x128xf32>
    %141 = vector.extract_strided_slice %139 {offsets = [0, 128], sizes = [8, 128], strides = [1, 1]} : vector<8x512xf32> to vector<8x128xf32>
    %142 = vector.extract_strided_slice %139 {offsets = [0, 256], sizes = [8, 128], strides = [1, 1]} : vector<8x512xf32> to vector<8x128xf32>
    %143 = vector.extract_strided_slice %139 {offsets = [0, 384], sizes = [8, 128], strides = [1, 1]} : vector<8x512xf32> to vector<8x128xf32>
    %144 = arith.mulf %141, %106 : vector<8x128xf32>
    %145 = arith.mulf %140, %142 : vector<8x128xf32>
    %146 = arith.addf %144, %145 : vector<8x128xf32>
    %147 = math.tanh %146 : vector<8x128xf32>
    %148 = arith.mulf %143, %147 : vector<8x128xf32>
    %c8_i32_50 = arith.constant 8 : i32
    %149 = arith.muli %c3_i32, %c8_i32_50 : i32
    %150 = tpu.assume_multiple %149, 8 : i32
    %151 = arith.index_cast %150 : i32 to index
    %c0_51 = arith.constant 0 : index
    %152 = vector.load %arg13[%151, %c0_51] : memref<64x512xf32, #tpu.memory_space<vmem>>, vector<8x512xf32>
    %153 = arith.truncf %128 : vector<8x128xf32> to vector<8x128xbf16>
    %c0_52 = arith.constant 0 : index
    %c0_53 = arith.constant 0 : index
    %154 = vector.load %arg3[%c0_52, %c0_53] : memref<128x512xbf16, #tpu.memory_space<vmem>>, vector<128x512xbf16>
    %cst_54 = arith.constant dense<0.000000e+00> : vector<8x512xf32>
    %155 = tpu.matmul %153, %154, %cst_54 {dimension_numbers = #tpu.dot_dimension_numbers<[1], [0], [0], [1], [0, 0, 1, 1], [], []>} : vector<8x128xbf16>, vector<128x512xbf16>, vector<8x512xf32> -> vector<8x512xf32>
    %156 = arith.addf %152, %155 : vector<8x512xf32>
    %157 = math.tanh %156 : vector<8x512xf32>
    %158 = arith.mulf %157, %15 : vector<8x512xf32>
    %159 = arith.addf %158, %18 : vector<8x512xf32>
    %160 = vector.extract_strided_slice %159 {offsets = [0, 0], sizes = [8, 128], strides = [1, 1]} : vector<8x512xf32> to vector<8x128xf32>
    %161 = vector.extract_strided_slice %159 {offsets = [0, 128], sizes = [8, 128], strides = [1, 1]} : vector<8x512xf32> to vector<8x128xf32>
    %162 = vector.extract_strided_slice %159 {offsets = [0, 256], sizes = [8, 128], strides = [1, 1]} : vector<8x512xf32> to vector<8x128xf32>
    %163 = vector.extract_strided_slice %159 {offsets = [0, 384], sizes = [8, 128], strides = [1, 1]} : vector<8x512xf32> to vector<8x128xf32>
    %164 = arith.mulf %161, %126 : vector<8x128xf32>
    %165 = arith.mulf %160, %162 : vector<8x128xf32>
    %166 = arith.addf %164, %165 : vector<8x128xf32>
    %167 = math.tanh %166 : vector<8x128xf32>
    %168 = arith.mulf %163, %167 : vector<8x128xf32>
    %c4_i32 = arith.constant 4 : i32
    %169 = arith.truncf %168 : vector<8x128xf32> to vector<8x128xbf16>
    %c0_55 = arith.constant 0 : index
    %c0_56 = arith.constant 0 : index
    %170 = vector.load %arg5[%c0_55, %c0_56] : memref<128x512xbf16, #tpu.memory_space<vmem>>, vector<128x512xbf16>
    %cst_57 = arith.constant dense<0.000000e+00> : vector<8x512xf32>
    %171 = tpu.matmul %169, %170, %cst_57 {dimension_numbers = #tpu.dot_dimension_numbers<[1], [0], [0], [1], [0, 0, 1, 1], [], []>} : vector<8x128xbf16>, vector<128x512xbf16>, vector<8x512xf32> -> vector<8x512xf32>
    %172 = arith.truncf %148 : vector<8x128xf32> to vector<8x128xbf16>
    %c0_58 = arith.constant 0 : index
    %c0_59 = arith.constant 0 : index
    %173 = vector.load %arg6[%c0_58, %c0_59] : memref<128x512xbf16, #tpu.memory_space<vmem>>, vector<128x512xbf16>
    %cst_60 = arith.constant dense<0.000000e+00> : vector<8x512xf32>
    %174 = tpu.matmul %172, %173, %cst_60 {dimension_numbers = #tpu.dot_dimension_numbers<[1], [0], [0], [1], [0, 0, 1, 1], [], []>} : vector<8x128xbf16>, vector<128x512xbf16>, vector<8x512xf32> -> vector<8x512xf32>
    %175 = arith.addf %171, %174 : vector<8x512xf32>
    %176 = arith.addf %175, %33 : vector<8x512xf32>
    %177 = math.tanh %176 : vector<8x512xf32>
    %178 = arith.mulf %177, %27 : vector<8x512xf32>
    %179 = arith.addf %178, %30 : vector<8x512xf32>
    %180 = vector.extract_strided_slice %179 {offsets = [0, 0], sizes = [8, 128], strides = [1, 1]} : vector<8x512xf32> to vector<8x128xf32>
    %181 = vector.extract_strided_slice %179 {offsets = [0, 128], sizes = [8, 128], strides = [1, 1]} : vector<8x512xf32> to vector<8x128xf32>
    %182 = vector.extract_strided_slice %179 {offsets = [0, 256], sizes = [8, 128], strides = [1, 1]} : vector<8x512xf32> to vector<8x128xf32>
    %183 = vector.extract_strided_slice %179 {offsets = [0, 384], sizes = [8, 128], strides = [1, 1]} : vector<8x512xf32> to vector<8x128xf32>
    %184 = arith.mulf %181, %146 : vector<8x128xf32>
    %185 = arith.mulf %180, %182 : vector<8x128xf32>
    %186 = arith.addf %184, %185 : vector<8x128xf32>
    %187 = math.tanh %186 : vector<8x128xf32>
    %188 = arith.mulf %183, %187 : vector<8x128xf32>
    %c8_i32_61 = arith.constant 8 : i32
    %189 = arith.muli %c4_i32, %c8_i32_61 : i32
    %190 = tpu.assume_multiple %189, 8 : i32
    %191 = arith.index_cast %190 : i32 to index
    %c0_62 = arith.constant 0 : index
    %192 = vector.load %arg13[%191, %c0_62] : memref<64x512xf32, #tpu.memory_space<vmem>>, vector<8x512xf32>
    %193 = arith.truncf %168 : vector<8x128xf32> to vector<8x128xbf16>
    %c0_63 = arith.constant 0 : index
    %c0_64 = arith.constant 0 : index
    %194 = vector.load %arg3[%c0_63, %c0_64] : memref<128x512xbf16, #tpu.memory_space<vmem>>, vector<128x512xbf16>
    %cst_65 = arith.constant dense<0.000000e+00> : vector<8x512xf32>
    %195 = tpu.matmul %193, %194, %cst_65 {dimension_numbers = #tpu.dot_dimension_numbers<[1], [0], [0], [1], [0, 0, 1, 1], [], []>} : vector<8x128xbf16>, vector<128x512xbf16>, vector<8x512xf32> -> vector<8x512xf32>
    %196 = arith.addf %192, %195 : vector<8x512xf32>
    %197 = math.tanh %196 : vector<8x512xf32>
    %198 = arith.mulf %197, %15 : vector<8x512xf32>
    %199 = arith.addf %198, %18 : vector<8x512xf32>
    %200 = vector.extract_strided_slice %199 {offsets = [0, 0], sizes = [8, 128], strides = [1, 1]} : vector<8x512xf32> to vector<8x128xf32>
    %201 = vector.extract_strided_slice %199 {offsets = [0, 128], sizes = [8, 128], strides = [1, 1]} : vector<8x512xf32> to vector<8x128xf32>
    %202 = vector.extract_strided_slice %199 {offsets = [0, 256], sizes = [8, 128], strides = [1, 1]} : vector<8x512xf32> to vector<8x128xf32>
    %203 = vector.extract_strided_slice %199 {offsets = [0, 384], sizes = [8, 128], strides = [1, 1]} : vector<8x512xf32> to vector<8x128xf32>
    %204 = arith.mulf %201, %166 : vector<8x128xf32>
    %205 = arith.mulf %200, %202 : vector<8x128xf32>
    %206 = arith.addf %204, %205 : vector<8x128xf32>
    %207 = math.tanh %206 : vector<8x128xf32>
    %208 = arith.mulf %203, %207 : vector<8x128xf32>
    %c5_i32 = arith.constant 5 : i32
    %209 = arith.truncf %208 : vector<8x128xf32> to vector<8x128xbf16>
    %c0_66 = arith.constant 0 : index
    %c0_67 = arith.constant 0 : index
    %210 = vector.load %arg5[%c0_66, %c0_67] : memref<128x512xbf16, #tpu.memory_space<vmem>>, vector<128x512xbf16>
    %cst_68 = arith.constant dense<0.000000e+00> : vector<8x512xf32>
    %211 = tpu.matmul %209, %210, %cst_68 {dimension_numbers = #tpu.dot_dimension_numbers<[1], [0], [0], [1], [0, 0, 1, 1], [], []>} : vector<8x128xbf16>, vector<128x512xbf16>, vector<8x512xf32> -> vector<8x512xf32>
    %212 = arith.truncf %188 : vector<8x128xf32> to vector<8x128xbf16>
    %c0_69 = arith.constant 0 : index
    %c0_70 = arith.constant 0 : index
    %213 = vector.load %arg6[%c0_69, %c0_70] : memref<128x512xbf16, #tpu.memory_space<vmem>>, vector<128x512xbf16>
    %cst_71 = arith.constant dense<0.000000e+00> : vector<8x512xf32>
    %214 = tpu.matmul %212, %213, %cst_71 {dimension_numbers = #tpu.dot_dimension_numbers<[1], [0], [0], [1], [0, 0, 1, 1], [], []>} : vector<8x128xbf16>, vector<128x512xbf16>, vector<8x512xf32> -> vector<8x512xf32>
    %215 = arith.addf %211, %214 : vector<8x512xf32>
    %216 = arith.addf %215, %33 : vector<8x512xf32>
    %217 = math.tanh %216 : vector<8x512xf32>
    %218 = arith.mulf %217, %27 : vector<8x512xf32>
    %219 = arith.addf %218, %30 : vector<8x512xf32>
    %220 = vector.extract_strided_slice %219 {offsets = [0, 0], sizes = [8, 128], strides = [1, 1]} : vector<8x512xf32> to vector<8x128xf32>
    %221 = vector.extract_strided_slice %219 {offsets = [0, 128], sizes = [8, 128], strides = [1, 1]} : vector<8x512xf32> to vector<8x128xf32>
    %222 = vector.extract_strided_slice %219 {offsets = [0, 256], sizes = [8, 128], strides = [1, 1]} : vector<8x512xf32> to vector<8x128xf32>
    %223 = vector.extract_strided_slice %219 {offsets = [0, 384], sizes = [8, 128], strides = [1, 1]} : vector<8x512xf32> to vector<8x128xf32>
    %224 = arith.mulf %221, %186 : vector<8x128xf32>
    %225 = arith.mulf %220, %222 : vector<8x128xf32>
    %226 = arith.addf %224, %225 : vector<8x128xf32>
    %227 = math.tanh %226 : vector<8x128xf32>
    %228 = arith.mulf %223, %227 : vector<8x128xf32>
    %c8_i32_72 = arith.constant 8 : i32
    %229 = arith.muli %c5_i32, %c8_i32_72 : i32
    %230 = tpu.assume_multiple %229, 8 : i32
    %231 = arith.index_cast %230 : i32 to index
    %c0_73 = arith.constant 0 : index
    %232 = vector.load %arg13[%231, %c0_73] : memref<64x512xf32, #tpu.memory_space<vmem>>, vector<8x512xf32>
    %233 = arith.truncf %208 : vector<8x128xf32> to vector<8x128xbf16>
    %c0_74 = arith.constant 0 : index
    %c0_75 = arith.constant 0 : index
    %234 = vector.load %arg3[%c0_74, %c0_75] : memref<128x512xbf16, #tpu.memory_space<vmem>>, vector<128x512xbf16>
    %cst_76 = arith.constant dense<0.000000e+00> : vector<8x512xf32>
    %235 = tpu.matmul %233, %234, %cst_76 {dimension_numbers = #tpu.dot_dimension_numbers<[1], [0], [0], [1], [0, 0, 1, 1], [], []>} : vector<8x128xbf16>, vector<128x512xbf16>, vector<8x512xf32> -> vector<8x512xf32>
    %236 = arith.addf %232, %235 : vector<8x512xf32>
    %237 = math.tanh %236 : vector<8x512xf32>
    %238 = arith.mulf %237, %15 : vector<8x512xf32>
    %239 = arith.addf %238, %18 : vector<8x512xf32>
    %240 = vector.extract_strided_slice %239 {offsets = [0, 0], sizes = [8, 128], strides = [1, 1]} : vector<8x512xf32> to vector<8x128xf32>
    %241 = vector.extract_strided_slice %239 {offsets = [0, 128], sizes = [8, 128], strides = [1, 1]} : vector<8x512xf32> to vector<8x128xf32>
    %242 = vector.extract_strided_slice %239 {offsets = [0, 256], sizes = [8, 128], strides = [1, 1]} : vector<8x512xf32> to vector<8x128xf32>
    %243 = vector.extract_strided_slice %239 {offsets = [0, 384], sizes = [8, 128], strides = [1, 1]} : vector<8x512xf32> to vector<8x128xf32>
    %244 = arith.mulf %241, %206 : vector<8x128xf32>
    %245 = arith.mulf %240, %242 : vector<8x128xf32>
    %246 = arith.addf %244, %245 : vector<8x128xf32>
    %247 = math.tanh %246 : vector<8x128xf32>
    %248 = arith.mulf %243, %247 : vector<8x128xf32>
    %c6_i32 = arith.constant 6 : i32
    %249 = arith.truncf %248 : vector<8x128xf32> to vector<8x128xbf16>
    %c0_77 = arith.constant 0 : index
    %c0_78 = arith.constant 0 : index
    %250 = vector.load %arg5[%c0_77, %c0_78] : memref<128x512xbf16, #tpu.memory_space<vmem>>, vector<128x512xbf16>
    %cst_79 = arith.constant dense<0.000000e+00> : vector<8x512xf32>
    %251 = tpu.matmul %249, %250, %cst_79 {dimension_numbers = #tpu.dot_dimension_numbers<[1], [0], [0], [1], [0, 0, 1, 1], [], []>} : vector<8x128xbf16>, vector<128x512xbf16>, vector<8x512xf32> -> vector<8x512xf32>
    %252 = arith.truncf %228 : vector<8x128xf32> to vector<8x128xbf16>
    %c0_80 = arith.constant 0 : index
    %c0_81 = arith.constant 0 : index
    %253 = vector.load %arg6[%c0_80, %c0_81] : memref<128x512xbf16, #tpu.memory_space<vmem>>, vector<128x512xbf16>
    %cst_82 = arith.constant dense<0.000000e+00> : vector<8x512xf32>
    %254 = tpu.matmul %252, %253, %cst_82 {dimension_numbers = #tpu.dot_dimension_numbers<[1], [0], [0], [1], [0, 0, 1, 1], [], []>} : vector<8x128xbf16>, vector<128x512xbf16>, vector<8x512xf32> -> vector<8x512xf32>
    %255 = arith.addf %251, %254 : vector<8x512xf32>
    %256 = arith.addf %255, %33 : vector<8x512xf32>
    %257 = math.tanh %256 : vector<8x512xf32>
    %258 = arith.mulf %257, %27 : vector<8x512xf32>
    %259 = arith.addf %258, %30 : vector<8x512xf32>
    %260 = vector.extract_strided_slice %259 {offsets = [0, 0], sizes = [8, 128], strides = [1, 1]} : vector<8x512xf32> to vector<8x128xf32>
    %261 = vector.extract_strided_slice %259 {offsets = [0, 128], sizes = [8, 128], strides = [1, 1]} : vector<8x512xf32> to vector<8x128xf32>
    %262 = vector.extract_strided_slice %259 {offsets = [0, 256], sizes = [8, 128], strides = [1, 1]} : vector<8x512xf32> to vector<8x128xf32>
    %263 = vector.extract_strided_slice %259 {offsets = [0, 384], sizes = [8, 128], strides = [1, 1]} : vector<8x512xf32> to vector<8x128xf32>
    %264 = arith.mulf %261, %226 : vector<8x128xf32>
    %265 = arith.mulf %260, %262 : vector<8x128xf32>
    %266 = arith.addf %264, %265 : vector<8x128xf32>
    %267 = math.tanh %266 : vector<8x128xf32>
    %268 = arith.mulf %263, %267 : vector<8x128xf32>
    %c8_i32_83 = arith.constant 8 : i32
    %269 = arith.muli %c6_i32, %c8_i32_83 : i32
    %270 = tpu.assume_multiple %269, 8 : i32
    %271 = arith.index_cast %270 : i32 to index
    %c0_84 = arith.constant 0 : index
    %272 = vector.load %arg13[%271, %c0_84] : memref<64x512xf32, #tpu.memory_space<vmem>>, vector<8x512xf32>
    %273 = arith.truncf %248 : vector<8x128xf32> to vector<8x128xbf16>
    %c0_85 = arith.constant 0 : index
    %c0_86 = arith.constant 0 : index
    %274 = vector.load %arg3[%c0_85, %c0_86] : memref<128x512xbf16, #tpu.memory_space<vmem>>, vector<128x512xbf16>
    %cst_87 = arith.constant dense<0.000000e+00> : vector<8x512xf32>
    %275 = tpu.matmul %273, %274, %cst_87 {dimension_numbers = #tpu.dot_dimension_numbers<[1], [0], [0], [1], [0, 0, 1, 1], [], []>} : vector<8x128xbf16>, vector<128x512xbf16>, vector<8x512xf32> -> vector<8x512xf32>
    %276 = arith.addf %272, %275 : vector<8x512xf32>
    %277 = math.tanh %276 : vector<8x512xf32>
    %278 = arith.mulf %277, %15 : vector<8x512xf32>
    %279 = arith.addf %278, %18 : vector<8x512xf32>
    %280 = vector.extract_strided_slice %279 {offsets = [0, 0], sizes = [8, 128], strides = [1, 1]} : vector<8x512xf32> to vector<8x128xf32>
    %281 = vector.extract_strided_slice %279 {offsets = [0, 128], sizes = [8, 128], strides = [1, 1]} : vector<8x512xf32> to vector<8x128xf32>
    %282 = vector.extract_strided_slice %279 {offsets = [0, 256], sizes = [8, 128], strides = [1, 1]} : vector<8x512xf32> to vector<8x128xf32>
    %283 = vector.extract_strided_slice %279 {offsets = [0, 384], sizes = [8, 128], strides = [1, 1]} : vector<8x512xf32> to vector<8x128xf32>
    %284 = arith.mulf %281, %246 : vector<8x128xf32>
    %285 = arith.mulf %280, %282 : vector<8x128xf32>
    %286 = arith.addf %284, %285 : vector<8x128xf32>
    %287 = math.tanh %286 : vector<8x128xf32>
    %288 = arith.mulf %283, %287 : vector<8x128xf32>
    %c7_i32 = arith.constant 7 : i32
    %289 = arith.truncf %288 : vector<8x128xf32> to vector<8x128xbf16>
    %c0_88 = arith.constant 0 : index
    %c0_89 = arith.constant 0 : index
    %290 = vector.load %arg5[%c0_88, %c0_89] : memref<128x512xbf16, #tpu.memory_space<vmem>>, vector<128x512xbf16>
    %cst_90 = arith.constant dense<0.000000e+00> : vector<8x512xf32>
    %291 = tpu.matmul %289, %290, %cst_90 {dimension_numbers = #tpu.dot_dimension_numbers<[1], [0], [0], [1], [0, 0, 1, 1], [], []>} : vector<8x128xbf16>, vector<128x512xbf16>, vector<8x512xf32> -> vector<8x512xf32>
    %292 = arith.truncf %268 : vector<8x128xf32> to vector<8x128xbf16>
    %c0_91 = arith.constant 0 : index
    %c0_92 = arith.constant 0 : index
    %293 = vector.load %arg6[%c0_91, %c0_92] : memref<128x512xbf16, #tpu.memory_space<vmem>>, vector<128x512xbf16>
    %cst_93 = arith.constant dense<0.000000e+00> : vector<8x512xf32>
    %294 = tpu.matmul %292, %293, %cst_93 {dimension_numbers = #tpu.dot_dimension_numbers<[1], [0], [0], [1], [0, 0, 1, 1], [], []>} : vector<8x128xbf16>, vector<128x512xbf16>, vector<8x512xf32> -> vector<8x512xf32>
    %295 = arith.addf %291, %294 : vector<8x512xf32>
    %296 = arith.addf %295, %33 : vector<8x512xf32>
    %297 = math.tanh %296 : vector<8x512xf32>
    %298 = arith.mulf %297, %27 : vector<8x512xf32>
    %299 = arith.addf %298, %30 : vector<8x512xf32>
    %300 = vector.extract_strided_slice %299 {offsets = [0, 0], sizes = [8, 128], strides = [1, 1]} : vector<8x512xf32> to vector<8x128xf32>
    %301 = vector.extract_strided_slice %299 {offsets = [0, 128], sizes = [8, 128], strides = [1, 1]} : vector<8x512xf32> to vector<8x128xf32>
    %302 = vector.extract_strided_slice %299 {offsets = [0, 256], sizes = [8, 128], strides = [1, 1]} : vector<8x512xf32> to vector<8x128xf32>
    %303 = vector.extract_strided_slice %299 {offsets = [0, 384], sizes = [8, 128], strides = [1, 1]} : vector<8x512xf32> to vector<8x128xf32>
    %304 = arith.mulf %301, %266 : vector<8x128xf32>
    %305 = arith.mulf %300, %302 : vector<8x128xf32>
    %306 = arith.addf %304, %305 : vector<8x128xf32>
    %307 = math.tanh %306 : vector<8x128xf32>
    %308 = arith.mulf %303, %307 : vector<8x128xf32>
    %c8_i32_94 = arith.constant 8 : i32
    %309 = arith.muli %c7_i32, %c8_i32_94 : i32
    %310 = tpu.assume_multiple %309, 8 : i32
    %311 = arith.index_cast %310 : i32 to index
    %c0_95 = arith.constant 0 : index
    %312 = vector.load %arg13[%311, %c0_95] : memref<64x512xf32, #tpu.memory_space<vmem>>, vector<8x512xf32>
    %313 = arith.truncf %288 : vector<8x128xf32> to vector<8x128xbf16>
    %c0_96 = arith.constant 0 : index
    %c0_97 = arith.constant 0 : index
    %314 = vector.load %arg3[%c0_96, %c0_97] : memref<128x512xbf16, #tpu.memory_space<vmem>>, vector<128x512xbf16>
    %cst_98 = arith.constant dense<0.000000e+00> : vector<8x512xf32>
    %315 = tpu.matmul %313, %314, %cst_98 {dimension_numbers = #tpu.dot_dimension_numbers<[1], [0], [0], [1], [0, 0, 1, 1], [], []>} : vector<8x128xbf16>, vector<128x512xbf16>, vector<8x512xf32> -> vector<8x512xf32>
    %316 = arith.addf %312, %315 : vector<8x512xf32>
    %317 = math.tanh %316 : vector<8x512xf32>
    %318 = arith.mulf %317, %15 : vector<8x512xf32>
    %319 = arith.addf %318, %18 : vector<8x512xf32>
    %320 = vector.extract_strided_slice %319 {offsets = [0, 0], sizes = [8, 128], strides = [1, 1]} : vector<8x512xf32> to vector<8x128xf32>
    %321 = vector.extract_strided_slice %319 {offsets = [0, 128], sizes = [8, 128], strides = [1, 1]} : vector<8x512xf32> to vector<8x128xf32>
    %322 = vector.extract_strided_slice %319 {offsets = [0, 256], sizes = [8, 128], strides = [1, 1]} : vector<8x512xf32> to vector<8x128xf32>
    %323 = vector.extract_strided_slice %319 {offsets = [0, 384], sizes = [8, 128], strides = [1, 1]} : vector<8x512xf32> to vector<8x128xf32>
    %324 = arith.mulf %321, %286 : vector<8x128xf32>
    %325 = arith.mulf %320, %322 : vector<8x128xf32>
    %326 = arith.addf %324, %325 : vector<8x128xf32>
    %327 = math.tanh %326 : vector<8x128xf32>
    %328 = arith.mulf %323, %327 : vector<8x128xf32>
    %c7_i32_99 = arith.constant 7 : i32
    %329 = arith.truncf %328 : vector<8x128xf32> to vector<8x128xbf16>
    %c0_100 = arith.constant 0 : index
    %c0_101 = arith.constant 0 : index
    %330 = vector.load %arg5[%c0_100, %c0_101] : memref<128x512xbf16, #tpu.memory_space<vmem>>, vector<128x512xbf16>
    %cst_102 = arith.constant dense<0.000000e+00> : vector<8x512xf32>
    %331 = tpu.matmul %329, %330, %cst_102 {dimension_numbers = #tpu.dot_dimension_numbers<[1], [0], [0], [1], [0, 0, 1, 1], [], []>} : vector<8x128xbf16>, vector<128x512xbf16>, vector<8x512xf32> -> vector<8x512xf32>
    %332 = arith.truncf %308 : vector<8x128xf32> to vector<8x128xbf16>
    %c0_103 = arith.constant 0 : index
    %c0_104 = arith.constant 0 : index
    %333 = vector.load %arg6[%c0_103, %c0_104] : memref<128x512xbf16, #tpu.memory_space<vmem>>, vector<128x512xbf16>
    %cst_105 = arith.constant dense<0.000000e+00> : vector<8x512xf32>
    %334 = tpu.matmul %332, %333, %cst_105 {dimension_numbers = #tpu.dot_dimension_numbers<[1], [0], [0], [1], [0, 0, 1, 1], [], []>} : vector<8x128xbf16>, vector<128x512xbf16>, vector<8x512xf32> -> vector<8x512xf32>
    %335 = arith.addf %331, %334 : vector<8x512xf32>
    %336 = arith.addf %335, %33 : vector<8x512xf32>
    %337 = math.tanh %336 : vector<8x512xf32>
    %338 = arith.mulf %337, %27 : vector<8x512xf32>
    %339 = arith.addf %338, %30 : vector<8x512xf32>
    %340 = vector.extract_strided_slice %339 {offsets = [0, 0], sizes = [8, 128], strides = [1, 1]} : vector<8x512xf32> to vector<8x128xf32>
    %341 = vector.extract_strided_slice %339 {offsets = [0, 128], sizes = [8, 128], strides = [1, 1]} : vector<8x512xf32> to vector<8x128xf32>
    %342 = vector.extract_strided_slice %339 {offsets = [0, 256], sizes = [8, 128], strides = [1, 1]} : vector<8x512xf32> to vector<8x128xf32>
    %343 = vector.extract_strided_slice %339 {offsets = [0, 384], sizes = [8, 128], strides = [1, 1]} : vector<8x512xf32> to vector<8x128xf32>
    %344 = arith.mulf %341, %306 : vector<8x128xf32>
    %345 = arith.mulf %340, %342 : vector<8x128xf32>
    %346 = arith.addf %344, %345 : vector<8x128xf32>
    %347 = math.tanh %346 : vector<8x128xf32>
    %348 = arith.mulf %343, %347 : vector<8x128xf32>
    %c0_106 = arith.constant 0 : index
    %c0_107 = arith.constant 0 : index
    %349 = vector.load %arg8[%c0_106, %c0_107] : memref<128x128xf32, #tpu.memory_space<vmem>>, vector<128x128xf32>
    %cst_108 = arith.constant dense<0.000000e+00> : vector<8x128xf32>
    %350 = tpu.matmul %348, %349, %cst_108 {dimension_numbers = #tpu.dot_dimension_numbers<[1], [0], [0], [1], [0, 0, 1, 1], [], []>} : vector<8x128xf32>, vector<128x128xf32>, vector<8x128xf32> -> vector<8x128xf32>
    %c0_109 = arith.constant 0 : index
    %c0_110 = arith.constant 0 : index
    %351 = vector.load %arg9[%c0_109, %c0_110] : memref<1x128xf32, #tpu.memory_space<vmem>>, vector<1x128xf32>
    %352 = vector.broadcast %351 : vector<1x128xf32> to vector<8x128xf32>
    %353 = arith.addf %350, %352 : vector<8x128xf32>
    %cst_111 = arith.constant 0.000000e+00 : f32
    %354 = vector.broadcast %cst_111 : f32 to vector<8x128xf32>
    %355 = arith.maximumf %353, %354 : vector<8x128xf32>
    %c0_112 = arith.constant 0 : index
    %c0_113 = arith.constant 0 : index
    %356 = vector.load %arg10[%c0_112, %c0_113] : memref<128x128xf32, #tpu.memory_space<vmem>>, vector<128x128xf32>
    %cst_114 = arith.constant dense<0.000000e+00> : vector<8x128xf32>
    %357 = tpu.matmul %355, %356, %cst_114 {dimension_numbers = #tpu.dot_dimension_numbers<[1], [0], [0], [1], [0, 0, 1, 1], [], []>} : vector<8x128xf32>, vector<128x128xf32>, vector<8x128xf32> -> vector<8x128xf32>
    %c0_115 = arith.constant 0 : index
    %c0_116 = arith.constant 0 : index
    %358 = vector.load %arg11[%c0_115, %c0_116] : memref<1x128xf32, #tpu.memory_space<vmem>>, vector<1x128xf32>
    %359 = vector.broadcast %358 : vector<1x128xf32> to vector<8x128xf32>
    %360 = arith.addf %357, %359 : vector<8x128xf32>
    %c0_117 = arith.constant 0 : index
    %c0_118 = arith.constant 0 : index
    %361 = vector.load %arg12[%c0_117, %c0_118] : memref<8x128xf32, #tpu.memory_space<vmem>>, vector<8x128xf32>
    tpu.vector_store %arg12[%c0_117, %c0_118], %360 {strides = array<i32>} : memref<8x128xf32, #tpu.memory_space<vmem>>, vector<8x128xf32>,
    return
  }
  func.func @transform_0(%arg0: i32) -> (i32, i32) {
    %c0_i32 = arith.constant 0 : i32
    %c0_i32_0 = arith.constant 0 : i32
    %c0_i32_1 = arith.constant 0 : i32
    return %c0_i32, %c0_i32_0 : i32, i32
  }
  func.func @transform_1(%arg0: i32) -> (i32, i32) {
    %c0_i32 = arith.constant 0 : i32
    %c0_i32_0 = arith.constant 0 : i32
    %c0_i32_1 = arith.constant 0 : i32
    return %c0_i32, %c0_i32_0 : i32, i32
  }
  func.func @transform_2(%arg0: i32) -> (i32, i32) {
    %c0_i32 = arith.constant 0 : i32
    %c0_i32_0 = arith.constant 0 : i32
    %c0_i32_1 = arith.constant 0 : i32
    return %c0_i32, %c0_i32_0 : i32, i32
  }
  func.func @transform_3(%arg0: i32) -> (i32, i32) {
    %c0_i32 = arith.constant 0 : i32
    %c0_i32_0 = arith.constant 0 : i32
    %c0_i32_1 = arith.constant 0 : i32
    return %c0_i32, %c0_i32_0 : i32, i32
  }
  func.func @transform_4(%arg0: i32) -> (i32, i32) {
    %c0_i32 = arith.constant 0 : i32
    %c0_i32_0 = arith.constant 0 : i32
    %c0_i32_1 = arith.constant 0 : i32
    return %c0_i32, %c0_i32_0 : i32, i32
  }
  func.func @transform_5(%arg0: i32) -> (i32, i32) {
    %c0_i32 = arith.constant 0 : i32
    %c0_i32_0 = arith.constant 0 : i32
    %c0_i32_1 = arith.constant 0 : i32
    return %c0_i32, %c0_i32_0 : i32, i32
  }
  func.func @transform_6(%arg0: i32) -> (i32, i32) {
    %c0_i32 = arith.constant 0 : i32
    %c0_i32_0 = arith.constant 0 : i32
    %c0_i32_1 = arith.constant 0 : i32
    return %c0_i32, %c0_i32_0 : i32, i32
  }
  func.func @transform_7(%arg0: i32) -> (i32, i32) {
    %c0_i32 = arith.constant 0 : i32
    %c0_i32_0 = arith.constant 0 : i32
    %c0_i32_1 = arith.constant 0 : i32
    return %c0_i32, %c0_i32_0 : i32, i32
  }
  func.func @transform_8(%arg0: i32) -> (i32, i32) {
    %c0_i32 = arith.constant 0 : i32
    %c0_i32_0 = arith.constant 0 : i32
    %c0_i32_1 = arith.constant 0 : i32
    return %c0_i32, %c0_i32_0 : i32, i32
  }
  func.func @transform_9(%arg0: i32) -> (i32, i32) {
    %c0_i32 = arith.constant 0 : i32
    %c0_i32_0 = arith.constant 0 : i32
    %c0_i32_1 = arith.constant 0 : i32
    return %c0_i32, %c0_i32_0 : i32, i32
  }
  func.func @transform_10(%arg0: i32) -> (i32, i32) {
    %c0_i32 = arith.constant 0 : i32
    %c0_i32_0 = arith.constant 0 : i32
    %c0_i32_1 = arith.constant 0 : i32
    return %c0_i32, %c0_i32_0 : i32, i32
  }
  func.func @transform_11(%arg0: i32) -> (i32, i32) {
    %c0_i32 = arith.constant 0 : i32
    %c0_i32_0 = arith.constant 0 : i32
    %c0_i32_1 = arith.constant 0 : i32
    return %c0_i32, %c0_i32_0 : i32, i32
  }
}

</mosaic_0001>

<llo_original>
// kernel: tpu_custom_call.1
$region0: #{tpu_custom_call.1}
  #allocation0 [shape = 'u32[]', space=smem, size = 0x4, offset = 0x4, fixed_abs, tag = 'smem constant byte address 0x4 - core index']
  #allocation1 [shape = 'u32[144,128]{1,0:T(1,128)}', space=vmem, size = 0x12000, scoped, tag = 'internal scratch']
  #allocation2 [shape = 'f32[64,512]{1,0:T(8,128)}', space=vmem, size = 0x20000, scoped, tag = 'scratch operand']
  %s0 = inlined_call_operand.hbm [shape: f32[64,128], index: 0, kind: input, shape index: {}]
  %s1 = inlined_call_operand.hbm [shape: f32[128,512], index: 1, kind: input, shape index: {}]
  %s2 = inlined_call_operand.hbm [shape: bf16[128,512], index: 2, kind: input, shape index: {}]
  %s3 = inlined_call_operand.vmem [shape: f32[1,512], index: 3, kind: input, shape index: {}]
  %s4 = inlined_call_operand.hbm [shape: bf16[128,512], index: 4, kind: input, shape index: {}]
  %s5 = inlined_call_operand.hbm [shape: bf16[128,512], index: 5, kind: input, shape index: {}]
  %s6 = inlined_call_operand.vmem [shape: f32[1,512], index: 6, kind: input, shape index: {}]
  %s7 = inlined_call_operand.hbm [shape: f32[128,128], index: 7, kind: input, shape index: {}]
  %s8 = inlined_call_operand.vmem [shape: f32[1,128], index: 8, kind: input, shape index: {}]
  %s9 = inlined_call_operand.hbm [shape: f32[128,128], index: 9, kind: input, shape index: {}]
  %s10 = inlined_call_operand.vmem [shape: f32[1,128], index: 10, kind: input, shape index: {}]
  %s11 = inlined_call_operand.hbm [shape: f32[8,128], index: 11, kind: output, shape index: {}]
  %s12 = sld [smem:[#allocation0]]
  $region82: #{tpu_custom_call.1} parent=0
    _
  %s14 = ssub.s32 1, %s12
  %s15 = scalar_select 0, %s14, %s12
  $region1: #{tpu_custom_call.1} parent=0
    #allocation3 [shape = 'u8[32768]{0}', space=vmem, size = 0x8000, scoped, tag = 'input window, operand 0, single buffered']
    #allocation4 [shape = 's32[1]{0}', space=sflag, size = 0x4, scoped, tag = 'scoped memory for tpu_custom_call.1']
    #allocation5 [shape = 's32[1]{0}', space=sflag, size = 0x4, scoped, tag = 'scoped memory for tpu_custom_call.1']
    #allocation6 [shape = 'u8[262144]{0}', space=vmem, size = 0x40000, scoped, tag = 'input window, operand 1, single buffered']
    #allocation7 [shape = 's32[1]{0}', space=sflag, size = 0x4, scoped, tag = 'scoped memory for tpu_custom_call.1']
    #allocation8 [shape = 'u8[131072]{0}', space=vmem, size = 0x20000, scoped, tag = 'input window, operand 2, single buffered']
    #allocation9 [shape = 'u8[131072]{0}', space=vmem, size = 0x20000, scoped, tag = 'input window, operand 4, single buffered']
    #allocation10 [shape = 's32[1]{0}', space=sflag, size = 0x4, scoped, tag = 'scoped memory for tpu_custom_call.1']
    #allocation11 [shape = 'u8[131072]{0}', space=vmem, size = 0x20000, scoped, tag = 'input window, operand 5, single buffered']
    #allocation12 [shape = 'u8[65536]{0}', space=vmem, size = 0x10000, scoped, tag = 'input window, operand 7, single buffered']
    #allocation13 [shape = 's32[1]{0}', space=sflag, size = 0x4, scoped, tag = 'scoped memory for tpu_custom_call.1']
    #allocation14 [shape = 'u8[65536]{0}', space=vmem, size = 0x10000, scoped, tag = 'input window, operand 9, single buffered']
    #allocation15 [shape = 'u8[4096]{0}', space=vmem, size = 0x1000, scoped, tag = 'output window, operand 0, single buffered']
    %16 = vsyncpa [#allocation4], 0
    %17 = vsyncpa [#allocation7], 0
    %18 = vsyncpa [#allocation10], 0
    %19 = vsyncpa [#allocation13], 0
    %20 = vsyncpa [#allocation5], 0
    // Predicated region
    $region2: #{tpu_custom_call.1} parent=1 // pred_check
      _
    $region3: #{tpu_custom_call.1} parent=1 // pred_check_branch
      %22 = sbr.rel (0) target = $region5
    $region4: #{tpu_custom_call.1} parent=1 // pred_region
      %s24 = ssub.s32 1024, 1024
      %25 = vsyncadd [#allocation4], %s24
      %s26 = sshll.u32 [#allocation3], 4
      %s27 = int_to_ptr.vmem [resolvable:$true] %s26
      %32 = dma.hbm_to_vmem [thread:$0]  %s0, 1024, %s27, [#allocation4], 128, 128, 8
    $region5: #{tpu_custom_call.1} parent=1 // pred_fallthru
      _
    // Predicated region
    $region6: #{tpu_custom_call.1} parent=1 // pred_check
      _
    $region7: #{tpu_custom_call.1} parent=1 // pred_check_branch
      %34 = sbr.rel (0) target = $region9
    $region8: #{tpu_custom_call.1} parent=1 // pred_region
      %s36 = ssub.s32 8192, 8192
      %37 = vsyncadd [#allocation7], %s36
      %s38 = sshll.u32 [#allocation6], 4
      %s39 = int_to_ptr.vmem [resolvable:$true] %s38
      %44 = dma.hbm_to_vmem [thread:$0]  %s1, 8192, %s39, [#allocation7], 512, 512, 32
    $region9: #{tpu_custom_call.1} parent=1 // pred_fallthru
      _
    // Predicated region
    $region10: #{tpu_custom_call.1} parent=1 // pred_check
      _
    $region11: #{tpu_custom_call.1} parent=1 // pred_check_branch
      %46 = sbr.rel (0) target = $region13
    $region12: #{tpu_custom_call.1} parent=1 // pred_region
      %s48 = ssub.s32 4096, 4096
      %49 = vsyncadd [#allocation7], %s48
      %s50 = sshll.u32 [#allocation8], 4
      %s51 = int_to_ptr.vmem [resolvable:$true] %s50
      %56 = dma.hbm_to_vmem [thread:$0]  %s2, 4096, %s51, [#allocation7], 256, 256, 16
    $region13: #{tpu_custom_call.1} parent=1 // pred_fallthru
      _
    // Predicated region
    $region14: #{tpu_custom_call.1} parent=1 // pred_check
      _
    $region15: #{tpu_custom_call.1} parent=1 // pred_check_branch
      %58 = sbr.rel (0) target = $region17
    $region16: #{tpu_custom_call.1} parent=1 // pred_region
      _
    $region17: #{tpu_custom_call.1} parent=1 // pred_fallthru
      _
    // Predicated region
    $region18: #{tpu_custom_call.1} parent=1 // pred_check
      _
    $region19: #{tpu_custom_call.1} parent=1 // pred_check_branch
      %60 = sbr.rel (0) target = $region21
    $region20: #{tpu_custom_call.1} parent=1 // pred_region
      %s62 = ssub.s32 4096, 4096
      %63 = vsyncadd [#allocation10], %s62
      %s64 = sshll.u32 [#allocation9], 4
      %s65 = int_to_ptr.vmem [resolvable:$true] %s64
      %70 = dma.hbm_to_vmem [thread:$0]  %s4, 4096, %s65, [#allocation10], 256, 256, 16
    $region21: #{tpu_custom_call.1} parent=1 // pred_fallthru
      _
    // Predicated region
    $region22: #{tpu_custom_call.1} parent=1 // pred_check
      _
    $region23: #{tpu_custom_call.1} parent=1 // pred_check_branch
      %72 = sbr.rel (0) target = $region25
    $region24: #{tpu_custom_call.1} parent=1 // pred_region
      %s74 = ssub.s32 4096, 4096
      %75 = vsyncadd [#allocation10], %s74
      %s76 = sshll.u32 [#allocation11], 4
      %s77 = int_to_ptr.vmem [resolvable:$true] %s76
      %82 = dma.hbm_to_vmem [thread:$0]  %s5, 4096, %s77, [#allocation10], 256, 256, 16
    $region25: #{tpu_custom_call.1} parent=1 // pred_fallthru
      _
    // Predicated region
    $region26: #{tpu_custom_call.1} parent=1 // pred_check
      _
    $region27: #{tpu_custom_call.1} parent=1 // pred_check_branch
      %84 = sbr.rel (0) target = $region29
    $region28: #{tpu_custom_call.1} parent=1 // pred_region
      _
    $region29: #{tpu_custom_call.1} parent=1 // pred_fallthru
      _
    // Predicated region
    $region30: #{tpu_custom_call.1} parent=1 // pred_check
      _
    $region31: #{tpu_custom_call.1} parent=1 // pred_check_branch
      %86 = sbr.rel (0) target = $region33
    $region32: #{tpu_custom_call.1} parent=1 // pred_region
      %s88 = ssub.s32 2048, 2048
      %89 = vsyncadd [#allocation13], %s88
      %s90 = sshll.u32 [#allocation12], 4
      %s91 = int_to_ptr.vmem [resolvable:$true] %s90
      %96 = dma.hbm_to_vmem [thread:$0]  %s7, 2048, %s91, [#allocation13], 128, 128, 8
    $region33: #{tpu_custom_call.1} parent=1 // pred_fallthru
      _
    // Predicated region
    $region34: #{tpu_custom_call.1} parent=1 // pred_check
      _
    $region35: #{tpu_custom_call.1} parent=1 // pred_check_branch
      %98 = sbr.rel (0) target = $region37
    $region36: #{tpu_custom_call.1} parent=1 // pred_region
      _
    $region37: #{tpu_custom_call.1} parent=1 // pred_fallthru
      _
    // Predicated region
    $region38: #{tpu_custom_call.1} parent=1 // pred_check
      _
    $region39: #{tpu_custom_call.1} parent=1 // pred_check_branch
      %100 = sbr.rel (0) target = $region41
    $region40: #{tpu_custom_call.1} parent=1 // pred_region
      %s102 = ssub.s32 2048, 2048
      %103 = vsyncadd [#allocation13], %s102
      %s104 = sshll.u32 [#allocation14], 4
      %s105 = int_to_ptr.vmem [resolvable:$true] %s104
      %110 = dma.hbm_to_vmem [thread:$0]  %s9, 2048, %s105, [#allocation13], 128, 128, 8
    $region41: #{tpu_custom_call.1} parent=1 // pred_fallthru
      _
    // Predicated region
    $region42: #{tpu_custom_call.1} parent=1 // pred_check
      _
    $region43: #{tpu_custom_call.1} parent=1 // pred_check_branch
      %112 = sbr.rel (0) target = $region45
    $region44: #{tpu_custom_call.1} parent=1 // pred_region
      _
    $region45: #{tpu_custom_call.1} parent=1 // pred_fallthru
      _
    // Predicated region
    $region46: #{tpu_custom_call.1} parent=1 // pred_check
      _
    $region47: #{tpu_custom_call.1} parent=1 // pred_check_branch
      %114 = sbr.rel (0) target = $region49
    $region48: #{tpu_custom_call.1} parent=1 // pred_region
      %115 = dma.done [#allocation4], 1024
    $region49: #{tpu_custom_call.1} parent=1 // pred_fallthru
      _
    // Predicated region
    $region50: #{tpu_custom_call.1} parent=1 // pred_check
      _
    $region51: #{tpu_custom_call.1} parent=1 // pred_check_branch
      %117 = sbr.rel (0) target = $region53
    $region52: #{tpu_custom_call.1} parent=1 // pred_region
      %118 = dma.done [#allocation7], 8192
    $region53: #{tpu_custom_call.1} parent=1 // pred_fallthru
      _
    // Predicated region
    $region54: #{tpu_custom_call.1} parent=1 // pred_check
      _
    $region55: #{tpu_custom_call.1} parent=1 // pred_check_branch
      %120 = sbr.rel (0) target = $region57
    $region56: #{tpu_custom_call.1} parent=1 // pred_region
      %121 = dma.done [#allocation7], 4096
    $region57: #{tpu_custom_call.1} parent=1 // pred_fallthru
      _
    // Predicated region
    $region58: #{tpu_custom_call.1} parent=1 // pred_check
      _
    $region59: #{tpu_custom_call.1} parent=1 // pred_check_branch
      %123 = sbr.rel (0) target = $region61
    $region60: #{tpu_custom_call.1} parent=1 // pred_region
      %124 = dma.done [#allocation10], 4096
    $region61: #{tpu_custom_call.1} parent=1 // pred_fallthru
      _
    // Predicated region
    $region62: #{tpu_custom_call.1} parent=1 // pred_check
      _
    $region63: #{tpu_custom_call.1} parent=1 // pred_check_branch
      %126 = sbr.rel (0) target = $region65
    $region64: #{tpu_custom_call.1} parent=1 // pred_region
      %127 = dma.done [#allocation10], 4096
    $region65: #{tpu_custom_call.1} parent=1 // pred_fallthru
      _
    // Predicated region
    $region66: #{tpu_custom_call.1} parent=1 // pred_check
      _
    $region67: #{tpu_custom_call.1} parent=1 // pred_check_branch
      %129 = sbr.rel (0) target = $region69
    $region68: #{tpu_custom_call.1} parent=1 // pred_region
      %130 = dma.done [#allocation13], 2048
    $region69: #{tpu_custom_call.1} parent=1 // pred_fallthru
      _
    // Predicated region
    $region70: #{tpu_custom_call.1} parent=1 // pred_check
      _
    $region71: #{tpu_custom_call.1} parent=1 // pred_check_branch
      %132 = sbr.rel (0) target = $region73
    $region72: #{tpu_custom_call.1} parent=1 // pred_region
      %133 = dma.done [#allocation13], 2048
    $region73: #{tpu_custom_call.1} parent=1 // pred_fallthru
      _
    %v135 = vld [vmem:[#allocation3] sm:$0xff]
    %v136 = vld [vmem:[#allocation3 + $0x8] sm:$0xff]
    %v137 = vld [vmem:[#allocation3 + $0x10] sm:$0xff]
    %v138 = vld [vmem:[#allocation3 + $0x18] sm:$0xff]
    %v139 = vld [vmem:[#allocation3 + $0x20] sm:$0xff]
    %v140 = vld [vmem:[#allocation3 + $0x28] sm:$0xff]
    %v141 = vld [vmem:[#allocation3 + $0x30] sm:$0xff]
    %v142 = vld [vmem:[#allocation3 + $0x38] sm:$0xff]
    %v143 = vld [vmem:[#allocation6] sm:$0xff]
    %v144 = vld [vmem:[#allocation6 + $0x8] sm:$0xff]
    %v145 = vld [vmem:[#allocation6 + $0x10] sm:$0xff]
    %v146 = vld [vmem:[#allocation6 + $0x18] sm:$0xff]
    %v147 = vld [vmem:[#allocation6 + $0x20] sm:$0xff]
    %v148 = vld [vmem:[#allocation6 + $0x28] sm:$0xff]
    %v149 = vld [vmem:[#allocation6 + $0x30] sm:$0xff]
    %v150 = vld [vmem:[#allocation6 + $0x38] sm:$0xff]
    %v151 = vld [vmem:[#allocation6 + $0x40] sm:$0xff]
    %v152 = vld [vmem:[#allocation6 + $0x48] sm:$0xff]
    %v153 = vld [vmem:[#allocation6 + $0x50] sm:$0xff]
    %v154 = vld [vmem:[#allocation6 + $0x58] sm:$0xff]
    %v155 = vld [vmem:[#allocation6 + $0x60] sm:$0xff]
    %v156 = vld [vmem:[#allocation6 + $0x68] sm:$0xff]
    %v157 = vld [vmem:[#allocation6 + $0x70] sm:$0xff]
    %v158 = vld [vmem:[#allocation6 + $0x78] sm:$0xff]
    %v159 = vld [vmem:[#allocation6 + $0x80] sm:$0xff]
    %v160 = vld [vmem:[#allocation6 + $0x88] sm:$0xff]
    %v161 = vld [vmem:[#allocation6 + $0x90] sm:$0xff]
    %v162 = vld [vmem:[#allocation6 + $0x98] sm:$0xff]
    %v163 = vld [vmem:[#allocation6 + $0xa0] sm:$0xff]
    %v164 = vld [vmem:[#allocation6 + $0xa8] sm:$0xff]
    %v165 = vld [vmem:[#allocation6 + $0xb0] sm:$0xff]
    %v166 = vld [vmem:[#allocation6 + $0xb8] sm:$0xff]
    %v167 = vld [vmem:[#allocation6 + $0xc0] sm:$0xff]
    %v168 = vld [vmem:[#allocation6 + $0xc8] sm:$0xff]
    %v169 = vld [vmem:[#allocation6 + $0xd0] sm:$0xff]
    %v170 = vld [vmem:[#allocation6 + $0xd8] sm:$0xff]
    %v171 = vld [vmem:[#allocation6 + $0xe0] sm:$0xff]
    %v172 = vld [vmem:[#allocation6 + $0xe8] sm:$0xff]
    %v173 = vld [vmem:[#allocation6 + $0xf0] sm:$0xff]
    %v174 = vld [vmem:[#allocation6 + $0xf8] sm:$0xff]
    %v175 = vld [vmem:[#allocation6 + $0x100] sm:$0xff]
    %v176 = vld [vmem:[#allocation6 + $0x108] sm:$0xff]
    %v177 = vld [vmem:[#allocation6 + $0x110] sm:$0xff]
    %v178 = vld [vmem:[#allocation6 + $0x118] sm:$0xff]
    %v179 = vld [vmem:[#allocation6 + $0x120] sm:$0xff]
    %v180 = vld [vmem:[#allocation6 + $0x128] sm:$0xff]
    %v181 = vld [vmem:[#allocation6 + $0x130] sm:$0xff]
    %v182 = vld [vmem:[#allocation6 + $0x138] sm:$0xff]
    %v183 = vld [vmem:[#allocation6 + $0x140] sm:$0xff]
    %v184 = vld [vmem:[#allocation6 + $0x148] sm:$0xff]
    %v185 = vld [vmem:[#allocation6 + $0x150] sm:$0xff]
    %v186 = vld [vmem:[#allocation6 + $0x158] sm:$0xff]
    %v187 = vld [vmem:[#allocation6 + $0x160] sm:$0xff]
    %v188 = vld [vmem:[#allocation6 + $0x168] sm:$0xff]
    %v189 = vld [vmem:[#allocation6 + $0x170] sm:$0xff]
    %v190 = vld [vmem:[#allocation6 + $0x178] sm:$0xff]
    %v191 = vld [vmem:[#allocation6 + $0x180] sm:$0xff]
    %v192 = vld [vmem:[#allocation6 + $0x188] sm:$0xff]
    %v193 = vld [vmem:[#allocation6 + $0x190] sm:$0xff]
    %v194 = vld [vmem:[#allocation6 + $0x198] sm:$0xff]
    %v195 = vld [vmem:[#allocation6 + $0x1a0] sm:$0xff]
    %v196 = vld [vmem:[#allocation6 + $0x1a8] sm:$0xff]
    %v197 = vld [vmem:[#allocation6 + $0x1b0] sm:$0xff]
    %v198 = vld [vmem:[#allocation6 + $0x1b8] sm:$0xff]
    %v199 = vld [vmem:[#allocation6 + $0x1c0] sm:$0xff]
    %v200 = vld [vmem:[#allocation6 + $0x1c8] sm:$0xff]
    %v201 = vld [vmem:[#allocation6 + $0x1d0] sm:$0xff]
    %v202 = vld [vmem:[#allocation6 + $0x1d8] sm:$0xff]
    %v203 = vld [vmem:[#allocation6 + $0x1e0] sm:$0xff]
    %v204 = vld [vmem:[#allocation6 + $0x1e8] sm:$0xff]
    %v205 = vld [vmem:[#allocation6 + $0x1f0] sm:$0xff]
    %v206 = vld [vmem:[#allocation6 + $0x1f8] sm:$0xff]
    %v207 = vld [vmem:[%s3] sm:$0xf]
    %v209 = vlaneseq
    %v210 = vshrl.u32 %v209, 7
    %v211 = vsub.s32 0, %v210
    %v212 = vrot.slane %v207, %v211
    %v213 = vlaneseq
    %v214 = vshrl.u32 %v213, 7
    %v215 = vsub.s32 1, %v214
    %v216 = vrot.slane %v207, %v215
    %v217 = vlaneseq
    %v218 = vshrl.u32 %v217, 7
    %v219 = vsub.s32 2, %v218
    %v220 = vrot.slane %v207, %v219
    %v221 = vlaneseq
    %v222 = vshrl.u32 %v221, 7
    %v223 = vsub.s32 3, %v222
    %v224 = vrot.slane %v207, %v223
    %229 = vmatprep.subr.mxu0 %v204
    %230 = vmatpush1.msra.mxu0 %v203
    %231 = vmatprep.subr.mxu0 %v200
    %232 = vmatpush1.msra.mxu0 %v199
    %233 = vmatprep.subr.mxu0 %v196
    %234 = vmatpush1.msra.mxu0 %v195
    %235 = vmatprep.subr.mxu0 %v192
    %236 = vmatpush1.msra.mxu0 %v191
    %237 = vmatprep.subr.mxu0 %v188
    %238 = vmatpush1.msra.mxu0 %v187
    %239 = vmatprep.subr.mxu0 %v184
    %240 = vmatpush1.msra.mxu0 %v183
    %241 = vmatprep.subr.mxu0 %v180
    %242 = vmatpush1.msra.mxu0 %v179
    %243 = vmatprep.subr.mxu0 %v176
    %244 = vmatpush1.msra.mxu0 %v175
    %245 = vmatprep.subr.mxu0 %v172
    %246 = vmatpush1.msra.mxu0 %v171
    %247 = vmatprep.subr.mxu0 %v168
    %248 = vmatpush1.msra.mxu0 %v167
    %249 = vmatprep.subr.mxu0 %v164
    %250 = vmatpush1.msra.mxu0 %v163
    %251 = vmatprep.subr.mxu0 %v160
    %252 = vmatpush1.msra.mxu0 %v159
    %253 = vmatprep.subr.mxu0 %v156
    %254 = vmatpush1.msra.mxu0 %v155
    %255 = vmatprep.subr.mxu0 %v152
    %256 = vmatpush1.msra.mxu0 %v151
    %257 = vmatprep.subr.mxu0 %v148
    %258 = vmatpush1.msra.mxu0 %v147
    %259 = vmatprep.subr.mxu0 %v144
    %260 = vmatpush1.msra.mxu0 %v143
    %261 = vmatprep.subr.mxu0 0.0
    %262 = vmatpush2.msra.mxu0 0.0
    %263 = vmatprep.subr.mxu0 0.0
    %264 = vmatpush2.msra.mxu0 0.0
    %265 = vmatprep.subr.mxu0 0.0
    %266 = vmatpush2.msra.mxu0 0.0
    %267 = vmatprep.subr.mxu0 0.0
    %268 = vmatpush2.msra.mxu0 0.0
    %269 = vmatprep.subr.mxu0 0.0
    %270 = vmatpush2.msra.mxu0 0.0
    %271 = vmatprep.subr.mxu0 0.0
    %272 = vmatpush2.msra.mxu0 0.0
    %273 = vmatprep.subr.mxu0 0.0
    %274 = vmatpush2.msra.mxu0 0.0
    %275 = vmatprep.subr.mxu0 0.0
    %276 = vmatpush2.msra.mxu0 0.0
    %277 = vmatprep.subr.mxu0 0.0
    %278 = vmatpush2.msra.mxu0 0.0
    %279 = vmatprep.subr.mxu0 0.0
    %280 = vmatpush2.msra.mxu0 0.0
    %281 = vmatprep.subr.mxu0 0.0
    %282 = vmatpush2.msra.mxu0 0.0
    %283 = vmatprep.subr.mxu0 0.0
    %284 = vmatpush2.msra.mxu0 0.0
    %285 = vmatprep.subr.mxu0 0.0
    %286 = vmatpush2.msra.mxu0 0.0
    %287 = vmatprep.subr.mxu0 0.0
    %288 = vmatpush2.msra.mxu0 0.0
    %289 = vmatprep.subr.mxu0 0.0
    %290 = vmatpush2.msra.mxu0 0.0
    %291 = vmatprep.subr.mxu0 0.0
    %292 = vmatpush2.msra.mxu0 0.0
    %293 = vmatprep.mubr.f32.mxu0 0.0
    %294 = vmatmul.mubr.f32.gmra.mxu0 %v135
    %v295 = vpop.f32.mrf.mxu0
    %v296 = vadd.f32 %v212, %v295
    %v297 = vpop.f32.mrf.mxu0
    %v298 = vadd.f32 %v216, %v297
    %299 = vmatprep.mubr.f32.mxu0 0.0
    %300 = vmatmul.mubr.f32.gmra.mxu0 %v136
    %v301 = vpop.f32.mrf.mxu0
    %v302 = vadd.f32 %v212, %v301
    %v303 = vpop.f32.mrf.mxu0
    %v304 = vadd.f32 %v216, %v303
    %305 = vmatprep.mubr.f32.mxu0 0.0
    %306 = vmatmul.mubr.f32.gmra.mxu0 %v137
    %v307 = vpop.f32.mrf.mxu0
    %v308 = vadd.f32 %v212, %v307
    %v309 = vpop.f32.mrf.mxu0
    %v310 = vadd.f32 %v216, %v309
    %311 = vmatprep.mubr.f32.mxu0 0.0
    %312 = vmatmul.mubr.f32.gmra.mxu0 %v138
    %v313 = vpop.f32.mrf.mxu0
    %v314 = vadd.f32 %v212, %v313
    %v315 = vpop.f32.mrf.mxu0
    %v316 = vadd.f32 %v216, %v315
    %317 = vmatprep.mubr.f32.mxu0 0.0
    %318 = vmatmul.mubr.f32.gmra.mxu0 %v139
    %v319 = vpop.f32.mrf.mxu0
    %v320 = vadd.f32 %v212, %v319
    %v321 = vpop.f32.mrf.mxu0
    %v322 = vadd.f32 %v216, %v321
    %323 = vmatprep.mubr.f32.mxu0 0.0
    %324 = vmatmul.mubr.f32.gmra.mxu0 %v140
    %v325 = vpop.f32.mrf.mxu0
    %v326 = vadd.f32 %v212, %v325
    %v327 = vpop.f32.mrf.mxu0
    %v328 = vadd.f32 %v216, %v327
    %329 = vmatprep.mubr.f32.mxu0 0.0
    %330 = vmatmul.mubr.f32.gmra.mxu0 %v141
    %v331 = vpop.f32.mrf.mxu0
    %v332 = vadd.f32 %v212, %v331
    %v333 = vpop.f32.mrf.mxu0
    %v334 = vadd.f32 %v216, %v333
    %335 = vmatprep.mubr.f32.mxu0 0.0
    %336 = vmatmul.mubr.f32.gmra.mxu0 %v142
    %v337 = vpop.f32.mrf.mxu0
    %v338 = vadd.f32 %v212, %v337
    %v339 = vpop.f32.mrf.mxu0
    %v340 = vadd.f32 %v216, %v339
    %341 = vdwg.mxu0
    %342 = vmatprep.subr.mxu0 %v206
    %343 = vmatpush1.msra.mxu0 %v205
    %344 = vmatprep.subr.mxu0 %v202
    %345 = vmatpush1.msra.mxu0 %v201
    %346 = vmatprep.subr.mxu0 %v198
    %347 = vmatpush1.msra.mxu0 %v197
    %348 = vmatprep.subr.mxu0 %v194
    %349 = vmatpush1.msra.mxu0 %v193
    %350 = vmatprep.subr.mxu0 %v190
    %351 = vmatpush1.msra.mxu0 %v189
    %352 = vmatprep.subr.mxu0 %v186
    %353 = vmatpush1.msra.mxu0 %v185
    %354 = vmatprep.subr.mxu0 %v182
    %355 = vmatpush1.msra.mxu0 %v181
    %356 = vmatprep.subr.mxu0 %v178
    %357 = vmatpush1.msra.mxu0 %v177
    %358 = vmatprep.subr.mxu0 %v174
    %359 = vmatpush1.msra.mxu0 %v173
    %360 = vmatprep.subr.mxu0 %v170
    %361 = vmatpush1.msra.mxu0 %v169
    %362 = vmatprep.subr.mxu0 %v166
    %363 = vmatpush1.msra.mxu0 %v165
    %364 = vmatprep.subr.mxu0 %v162
    %365 = vmatpush1.msra.mxu0 %v161
    %366 = vmatprep.subr.mxu0 %v158
    %367 = vmatpush1.msra.mxu0 %v157
    %368 = vmatprep.subr.mxu0 %v154
    %369 = vmatpush1.msra.mxu0 %v153
    %370 = vmatprep.subr.mxu0 %v150
    %371 = vmatpush1.msra.mxu0 %v149
    %372 = vmatprep.subr.mxu0 %v146
    %373 = vmatpush1.msra.mxu0 %v145
    %374 = vmatprep.subr.mxu0 0.0
    %375 = vmatpush2.msra.mxu0 0.0
    %376 = vmatprep.subr.mxu0 0.0
    %377 = vmatpush2.msra.mxu0 0.0
    %378 = vmatprep.subr.mxu0 0.0
    %379 = vmatpush2.msra.mxu0 0.0
    %380 = vmatprep.subr.mxu0 0.0
    %381 = vmatpush2.msra.mxu0 0.0
    %382 = vmatprep.subr.mxu0 0.0
    %383 = vmatpush2.msra.mxu0 0.0
    %384 = vmatprep.subr.mxu0 0.0
    %385 = vmatpush2.msra.mxu0 0.0
    %386 = vmatprep.subr.mxu0 0.0
    %387 = vmatpush2.msra.mxu0 0.0
    %388 = vmatprep.subr.mxu0 0.0
    %389 = vmatpush2.msra.mxu0 0.0
    %390 = vmatprep.subr.mxu0 0.0
    %391 = vmatpush2.msra.mxu0 0.0
    %392 = vmatprep.subr.mxu0 0.0
    %393 = vmatpush2.msra.mxu0 0.0
    %394 = vmatprep.subr.mxu0 0.0
    %395 = vmatpush2.msra.mxu0 0.0
    %396 = vmatprep.subr.mxu0 0.0
    %397 = vmatpush2.msra.mxu0 0.0
    %398 = vmatprep.subr.mxu0 0.0
    %399 = vmatpush2.msra.mxu0 0.0
    %400 = vmatprep.subr.mxu0 0.0
    %401 = vmatpush2.msra.mxu0 0.0
    %402 = vmatprep.subr.mxu0 0.0
    %403 = vmatpush2.msra.mxu0 0.0
    %404 = vmatprep.subr.mxu0 0.0
    %405 = vmatpush2.msra.mxu0 0.0
    %406 = vmatprep.mubr.f32.mxu0 0.0
    %407 = vmatmul.mubr.f32.gmra.mxu0 %v135
    %v408 = vpop.f32.mrf.mxu0
    %v409 = vadd.f32 %v220, %v408
    %v410 = vpop.f32.mrf.mxu0
    %v411 = vadd.f32 %v224, %v410
    %412 = vmatprep.mubr.f32.mxu0 0.0
    %413 = vmatmul.mubr.f32.gmra.mxu0 %v136
    %v414 = vpop.f32.mrf.mxu0
    %v415 = vadd.f32 %v220, %v414
    %v416 = vpop.f32.mrf.mxu0
    %v417 = vadd.f32 %v224, %v416
    %418 = vmatprep.mubr.f32.mxu0 0.0
    %419 = vmatmul.mubr.f32.gmra.mxu0 %v137
    %v420 = vpop.f32.mrf.mxu0
    %v421 = vadd.f32 %v220, %v420
    %v422 = vpop.f32.mrf.mxu0
    %v423 = vadd.f32 %v224, %v422
    %424 = vmatprep.mubr.f32.mxu0 0.0
    %425 = vmatmul.mubr.f32.gmra.mxu0 %v138
    %v426 = vpop.f32.mrf.mxu0
    %v427 = vadd.f32 %v220, %v426
    %v428 = vpop.f32.mrf.mxu0
    %v429 = vadd.f32 %v224, %v428
    %430 = vmatprep.mubr.f32.mxu0 0.0
    %431 = vmatmul.mubr.f32.gmra.mxu0 %v139
    %v432 = vpop.f32.mrf.mxu0
    %v433 = vadd.f32 %v220, %v432
    %v434 = vpop.f32.mrf.mxu0
    %v435 = vadd.f32 %v224, %v434
    %436 = vmatprep.mubr.f32.mxu0 0.0
    %437 = vmatmul.mubr.f32.gmra.mxu0 %v140
    %v438 = vpop.f32.mrf.mxu0
    %v439 = vadd.f32 %v220, %v438
    %v440 = vpop.f32.mrf.mxu0
    %v441 = vadd.f32 %v224, %v440
    %442 = vmatprep.mubr.f32.mxu0 0.0
    %443 = vmatmul.mubr.f32.gmra.mxu0 %v141
    %v444 = vpop.f32.mrf.mxu0
    %v445 = vadd.f32 %v220, %v444
    %v446 = vpop.f32.mrf.mxu0
    %v447 = vadd.f32 %v224, %v446
    %448 = vmatprep.mubr.f32.mxu0 0.0
    %449 = vmatmul.mubr.f32.gmra.mxu0 %v142
    %v450 = vpop.f32.mrf.mxu0
    %v451 = vadd.f32 %v220, %v450
    %v452 = vpop.f32.mrf.mxu0
    %v453 = vadd.f32 %v224, %v452
    %454 = vdwg.mxu0
    %455 = vst [vmem:[#allocation2] sm:$0xff] %v296
    %456 = vst [vmem:[#allocation2 + $0x8] sm:$0xff] %v298
    %457 = vst [vmem:[#allocation2 + $0x10] sm:$0xff] %v409
    %458 = vst [vmem:[#allocation2 + $0x18] sm:$0xff] %v411
    %459 = vst [vmem:[#allocation2 + $0x20] sm:$0xff] %v302
    %460 = vst [vmem:[#allocation2 + $0x28] sm:$0xff] %v304
    %461 = vst [vmem:[#allocation2 + $0x30] sm:$0xff] %v415
    %462 = vst [vmem:[#allocation2 + $0x38] sm:$0xff] %v417
    %463 = vst [vmem:[#allocation2 + $0x40] sm:$0xff] %v308
    %464 = vst [vmem:[#allocation2 + $0x48] sm:$0xff] %v310
    %465 = vst [vmem:[#allocation2 + $0x50] sm:$0xff] %v421
    %466 = vst [vmem:[#allocation2 + $0x58] sm:$0xff] %v423
    %467 = vst [vmem:[#allocation2 + $0x60] sm:$0xff] %v314
    %468 = vst [vmem:[#allocation2 + $0x68] sm:$0xff] %v316
    %469 = vst [vmem:[#allocation2 + $0x70] sm:$0xff] %v427
    %470 = vst [vmem:[#allocation2 + $0x78] sm:$0xff] %v429
    %471 = vst [vmem:[#allocation2 + $0x80] sm:$0xff] %v320
    %472 = vst [vmem:[#allocation2 + $0x88] sm:$0xff] %v322
    %473 = vst [vmem:[#allocation2 + $0x90] sm:$0xff] %v433
    %474 = vst [vmem:[#allocation2 + $0x98] sm:$0xff] %v435
    %475 = vst [vmem:[#allocation2 + $0xa0] sm:$0xff] %v326
    %476 = vst [vmem:[#allocation2 + $0xa8] sm:$0xff] %v328
    %477 = vst [vmem:[#allocation2 + $0xb0] sm:$0xff] %v439
    %478 = vst [vmem:[#allocation2 + $0xb8] sm:$0xff] %v441
    %479 = vst [vmem:[#allocation2 + $0xc0] sm:$0xff] %v332
    %480 = vst [vmem:[#allocation2 + $0xc8] sm:$0xff] %v334
    %481 = vst [vmem:[#allocation2 + $0xd0] sm:$0xff] %v445
    %482 = vst [vmem:[#allocation2 + $0xd8] sm:$0xff] %v447
    %483 = vst [vmem:[#allocation2 + $0xe0] sm:$0xff] %v338
    %484 = vst [vmem:[#allocation2 + $0xe8] sm:$0xff] %v340
    %485 = vst [vmem:[#allocation2 + $0xf0] sm:$0xff] %v451
    %486 = vst [vmem:[#allocation2 + $0xf8] sm:$0xff] %v453
    %v487 = vlaneseq
    %v488 = vand.u32 %v487, 127
    %v489 = vadd.s32 %v488, 128
    %v490 = vadd.s32 %v488, 256
    %v491 = vadd.s32 %v488, 384
    %vm492 = vcmp.ge.s32.totalorder %v488, 256
    %vm493 = vcmp.ge.s32.totalorder %v489, 256
    %vm494 = vcmp.ge.s32.totalorder %v490, 256
    %vm495 = vcmp.ge.s32.totalorder %v491, 256
    %vm496 = vcmp.lt.s32.totalorder %v488, 384
    %vm497 = vcmp.lt.s32.totalorder %v489, 384
    %vm498 = vcmp.lt.s32.totalorder %v490, 384
    %vm499 = vcmp.lt.s32.totalorder %v491, 384
    %vm500 = vmand %vm492, %vm496
    %vm501 = vmand %vm493, %vm497
    %vm502 = vmand %vm494, %vm498
    %vm503 = vmand %vm495, %vm499
    %v504 = vsel %vm500, 1.0, 0.5
    %v505 = vsel %vm501, 1.0, 0.5
    %v506 = vsel %vm502, 1.0, 0.5
    %v507 = vsel %vm503, 1.0, 0.5
    %v508 = vsel %vm500, 0.0, 0.5
    %v509 = vsel %vm501, 0.0, 0.5
    %v510 = vsel %vm502, 0.0, 0.5
    %v511 = vsel %vm503, 0.0, 0.5
    %v512 = vld [vmem:[%s6] sm:$0xf]
    %v514 = vlaneseq
    %v515 = vshrl.u32 %v514, 7
    %v516 = vsub.s32 0, %v515
    %v517 = vrot.slane %v512, %v516
    %v518 = vlaneseq
    %v519 = vshrl.u32 %v518, 7
    %v520 = vsub.s32 1, %v519
    %v521 = vrot.slane %v512, %v520
    %v522 = vlaneseq
    %v523 = vshrl.u32 %v522, 7
    %v524 = vsub.s32 2, %v523
    %v525 = vrot.slane %v512, %v524
    %v526 = vlaneseq
    %v527 = vshrl.u32 %v526, 7
    %v528 = vsub.s32 3, %v527
    %v529 = vrot.slane %v512, %v528
    %v534 = vld [vmem:[#allocation2] sm:$0xff]
    %v535 = vld [vmem:[#allocation2 + $0x8] sm:$0xff]
    %v536 = vld [vmem:[#allocation2 + $0x10] sm:$0xff]
    %v537 = vld [vmem:[#allocation2 + $0x18] sm:$0xff]
    %v538 = vtanh.pop %v534
    %v539 = vtanh.pop %v535
    %v540 = vtanh.pop %v536
    %v541 = vtanh.pop %v537
    %v542 = vmul.f32 %v538, %v504
    %v543 = vmul.f32 %v539, %v505
    %v544 = vmul.f32 %v540, %v506
    %v545 = vmul.f32 %v541, %v507
    %v546 = vadd.f32 %v542, %v508
    %v547 = vadd.f32 %v543, %v509
    %v548 = vadd.f32 %v544, %v510
    %v549 = vadd.f32 %v545, %v511
    %v550 = vmul.f32 %v547, 0.0
    %v551 = vmul.f32 %v546, %v548
    %v552 = vadd.f32 %v550, %v551
    %v553 = vtanh.pop %v552
    %v554 = vmul.f32 %v549, %v553
    %v555 = vpack.c.bf16 %v554, %v554
    %v556 = vld [vmem:[#allocation9] sm:$0xff]
    %v557 = vld [vmem:[#allocation9 + $0x8] sm:$0xff]
    %v558 = vld [vmem:[#allocation9 + $0x10] sm:$0xff]
    %v559 = vld [vmem:[#allocation9 + $0x18] sm:$0xff]
    %v560 = vld [vmem:[#allocation9 + $0x20] sm:$0xff]
    %v561 = vld [vmem:[#allocation9 + $0x28] sm:$0xff]
    %v562 = vld [vmem:[#allocation9 + $0x30] sm:$0xff]
    %v563 = vld [vmem:[#allocation9 + $0x38] sm:$0xff]
    %v564 = vld [vmem:[#allocation9 + $0x40] sm:$0xff]
    %v565 = vld [vmem:[#allocation9 + $0x48] sm:$0xff]
    %v566 = vld [vmem:[#allocation9 + $0x50] sm:$0xff]
    %v567 = vld [vmem:[#allocation9 + $0x58] sm:$0xff]
    %v568 = vld [vmem:[#allocation9 + $0x60] sm:$0xff]
    %v569 = vld [vmem:[#allocation9 + $0x68] sm:$0xff]
    %v570 = vld [vmem:[#allocation9 + $0x70] sm:$0xff]
    %v571 = vld [vmem:[#allocation9 + $0x78] sm:$0xff]
    %v572 = vld [vmem:[#allocation9 + $0x80] sm:$0xff]
    %v573 = vld [vmem:[#allocation9 + $0x88] sm:$0xff]
    %v574 = vld [vmem:[#allocation9 + $0x90] sm:$0xff]
    %v575 = vld [vmem:[#allocation9 + $0x98] sm:$0xff]
    %v576 = vld [vmem:[#allocation9 + $0xa0] sm:$0xff]
    %v577 = vld [vmem:[#allocation9 + $0xa8] sm:$0xff]
    %v578 = vld [vmem:[#allocation9 + $0xb0] sm:$0xff]
    %v579 = vld [vmem:[#allocation9 + $0xb8] sm:$0xff]
    %v580 = vld [vmem:[#allocation9 + $0xc0] sm:$0xff]
    %v581 = vld [vmem:[#allocation9 + $0xc8] sm:$0xff]
    %v582 = vld [vmem:[#allocation9 + $0xd0] sm:$0xff]
    %v583 = vld [vmem:[#allocation9 + $0xd8] sm:$0xff]
    %v584 = vld [vmem:[#allocation9 + $0xe0] sm:$0xff]
    %v585 = vld [vmem:[#allocation9 + $0xe8] sm:$0xff]
    %v586 = vld [vmem:[#allocation9 + $0xf0] sm:$0xff]
    %v587 = vld [vmem:[#allocation9 + $0xf8] sm:$0xff]
    %v588 = vld [vmem:[#allocation11] sm:$0xff]
    %v589 = vld [vmem:[#allocation11 + $0x8] sm:$0xff]
    %v590 = vld [vmem:[#allocation11 + $0x10] sm:$0xff]
    %v591 = vld [vmem:[#allocation11 + $0x18] sm:$0xff]
    %v592 = vld [vmem:[#allocation11 + $0x20] sm:$0xff]
    %v593 = vld [vmem:[#allocation11 + $0x28] sm:$0xff]
    %v594 = vld [vmem:[#allocation11 + $0x30] sm:$0xff]
    %v595 = vld [vmem:[#allocation11 + $0x38] sm:$0xff]
    %v596 = vld [vmem:[#allocation11 + $0x40] sm:$0xff]
    %v597 = vld [vmem:[#allocation11 + $0x48] sm:$0xff]
    %v598 = vld [vmem:[#allocation11 + $0x50] sm:$0xff]
    %v599 = vld [vmem:[#allocation11 + $0x58] sm:$0xff]
    %v600 = vld [vmem:[#allocation11 + $0x60] sm:$0xff]
    %v601 = vld [vmem:[#allocation11 + $0x68] sm:$0xff]
    %v602 = vld [vmem:[#allocation11 + $0x70] sm:$0xff]
    %v603 = vld [vmem:[#allocation11 + $0x78] sm:$0xff]
    %v604 = vld [vmem:[#allocation11 + $0x80] sm:$0xff]
    %v605 = vld [vmem:[#allocation11 + $0x88] sm:$0xff]
    %v606 = vld [vmem:[#allocation11 + $0x90] sm:$0xff]
    %v607 = vld [vmem:[#allocation11 + $0x98] sm:$0xff]
    %v608 = vld [vmem:[#allocation11 + $0xa0] sm:$0xff]
    %v609 = vld [vmem:[#allocation11 + $0xa8] sm:$0xff]
    %v610 = vld [vmem:[#allocation11 + $0xb0] sm:$0xff]
    %v611 = vld [vmem:[#allocation11 + $0xb8] sm:$0xff]
    %v612 = vld [vmem:[#allocation11 + $0xc0] sm:$0xff]
    %v613 = vld [vmem:[#allocation11 + $0xc8] sm:$0xff]
    %v614 = vld [vmem:[#allocation11 + $0xd0] sm:$0xff]
    %v615 = vld [vmem:[#allocation11 + $0xd8] sm:$0xff]
    %v616 = vld [vmem:[#allocation11 + $0xe0] sm:$0xff]
    %v617 = vld [vmem:[#allocation11 + $0xe8] sm:$0xff]
    %v618 = vld [vmem:[#allocation11 + $0xf0] sm:$0xff]
    %v619 = vld [vmem:[#allocation11 + $0xf8] sm:$0xff]
    %v652 = vunpack.c.l.b16 %v588
    %v653 = vunpack.c.h.b16 %v588
    %v654 = vunpack.c.l.b16 %v589
    %v655 = vunpack.c.h.b16 %v589
    %v656 = vunpack.c.l.b16 %v590
    %v657 = vunpack.c.h.b16 %v590
    %v658 = vunpack.c.l.b16 %v591
    %v659 = vunpack.c.h.b16 %v591
    %v660 = vunpack.c.l.b16 %v592
    %v661 = vunpack.c.h.b16 %v592
    %v662 = vunpack.c.l.b16 %v593
    %v663 = vunpack.c.h.b16 %v593
    %v664 = vunpack.c.l.b16 %v594
    %v665 = vunpack.c.h.b16 %v594
    %v666 = vunpack.c.l.b16 %v595
    %v667 = vunpack.c.h.b16 %v595
    %v668 = vunpack.c.l.b16 %v596
    %v669 = vunpack.c.h.b16 %v596
    %v670 = vunpack.c.l.b16 %v597
    %v671 = vunpack.c.h.b16 %v597
    %v672 = vunpack.c.l.b16 %v598
    %v673 = vunpack.c.h.b16 %v598
    %v674 = vunpack.c.l.b16 %v599
    %v675 = vunpack.c.h.b16 %v599
    %v676 = vunpack.c.l.b16 %v600
    %v677 = vunpack.c.h.b16 %v600
    %v678 = vunpack.c.l.b16 %v601
    %v679 = vunpack.c.h.b16 %v601
    %v680 = vunpack.c.l.b16 %v602
    %v681 = vunpack.c.h.b16 %v602
    %v682 = vunpack.c.l.b16 %v603
    %v683 = vunpack.c.h.b16 %v603
    %v684 = vunpack.c.l.b16 %v604
    %v685 = vunpack.c.h.b16 %v604
    %v686 = vunpack.c.l.b16 %v605
    %v687 = vunpack.c.h.b16 %v605
    %v688 = vunpack.c.l.b16 %v606
    %v689 = vunpack.c.h.b16 %v606
    %v690 = vunpack.c.l.b16 %v607
    %v691 = vunpack.c.h.b16 %v607
    %v692 = vunpack.c.l.b16 %v608
    %v693 = vunpack.c.h.b16 %v608
    %v694 = vunpack.c.l.b16 %v609
    %v695 = vunpack.c.h.b16 %v609
    %v696 = vunpack.c.l.b16 %v610
    %v697 = vunpack.c.h.b16 %v610
    %v698 = vunpack.c.l.b16 %v611
    %v699 = vunpack.c.h.b16 %v611
    %v700 = vunpack.c.l.b16 %v612
    %v701 = vunpack.c.h.b16 %v612
    %v702 = vunpack.c.l.b16 %v613
    %v703 = vunpack.c.h.b16 %v613
    %v704 = vunpack.c.l.b16 %v614
    %v705 = vunpack.c.h.b16 %v614
    %v706 = vunpack.c.l.b16 %v615
    %v707 = vunpack.c.h.b16 %v615
    %v708 = vunpack.c.l.b16 %v616
    %v709 = vunpack.c.h.b16 %v616
    %v710 = vunpack.c.l.b16 %v617
    %v711 = vunpack.c.h.b16 %v617
    %v712 = vunpack.c.l.b16 %v618
    %v713 = vunpack.c.h.b16 %v618
    %v714 = vunpack.c.l.b16 %v619
    %v715 = vunpack.c.h.b16 %v619
    %v716 = vpack.c.b16 %v656, %v652
    %v717 = vpack.c.b16 %v657, %v653
    %v718 = vpack.c.b16 %v658, %v654
    %v719 = vpack.c.b16 %v659, %v655
    %v720 = vpack.c.b16 %v664, %v660
    %v721 = vpack.c.b16 %v665, %v661
    %v722 = vpack.c.b16 %v666, %v662
    %v723 = vpack.c.b16 %v667, %v663
    %v724 = vpack.c.b16 %v672, %v668
    %v725 = vpack.c.b16 %v673, %v669
    %v726 = vpack.c.b16 %v674, %v670
    %v727 = vpack.c.b16 %v675, %v671
    %v728 = vpack.c.b16 %v680, %v676
    %v729 = vpack.c.b16 %v681, %v677
    %v730 = vpack.c.b16 %v682, %v678
    %v731 = vpack.c.b16 %v683, %v679
    %v732 = vpack.c.b16 %v688, %v684
    %v733 = vpack.c.b16 %v689, %v685
    %v734 = vpack.c.b16 %v690, %v686
    %v735 = vpack.c.b16 %v691, %v687
    %v736 = vpack.c.b16 %v696, %v692
    %v737 = vpack.c.b16 %v697, %v693
    %v738 = vpack.c.b16 %v698, %v694
    %v739 = vpack.c.b16 %v699, %v695
    %v740 = vpack.c.b16 %v704, %v700
    %v741 = vpack.c.b16 %v705, %v701
    %v742 = vpack.c.b16 %v706, %v702
    %v743 = vpack.c.b16 %v707, %v703
    %v744 = vpack.c.b16 %v712, %v708
    %v745 = vpack.c.b16 %v713, %v709
    %v746 = vpack.c.b16 %v714, %v710
    %v747 = vpack.c.b16 %v715, %v711
    %780 = vmatprep.subr.bf16.mxu0 %v745
    %781 = vmatpush1.bf16.msra.mxu0 %v744
    %782 = vmatprep.subr.bf16.mxu0 %v741
    %783 = vmatpush1.bf16.msra.mxu0 %v740
    %784 = vmatprep.subr.bf16.mxu0 %v737
    %785 = vmatpush1.bf16.msra.mxu0 %v736
    %786 = vmatprep.subr.bf16.mxu0 %v733
    %787 = vmatpush1.bf16.msra.mxu0 %v732
    %788 = vmatprep.subr.bf16.mxu0 %v729
    %789 = vmatpush1.bf16.msra.mxu0 %v728
    %790 = vmatprep.subr.bf16.mxu0 %v725
    %791 = vmatpush1.bf16.msra.mxu0 %v724
    %792 = vmatprep.subr.bf16.mxu0 %v721
    %793 = vmatpush1.bf16.msra.mxu0 %v720
    %794 = vmatprep.subr.bf16.mxu0 %v717
    %795 = vmatpush1.bf16.msra.mxu0 %v716
    %796 = vmatprep.subr.bf16.mxu0 0
    %797 = vmatpush2.bf16.msra.mxu0 0
    %798 = vmatprep.subr.bf16.mxu0 0
    %799 = vmatpush2.bf16.msra.mxu0 0
    %800 = vmatprep.subr.bf16.mxu0 0
    %801 = vmatpush2.bf16.msra.mxu0 0
    %802 = vmatprep.subr.bf16.mxu0 0
    %803 = vmatpush2.bf16.msra.mxu0 0
    %804 = vmatprep.subr.bf16.mxu0 0
    %805 = vmatpush2.bf16.msra.mxu0 0
    %806 = vmatprep.subr.bf16.mxu0 0
    %807 = vmatpush2.bf16.msra.mxu0 0
    %808 = vmatprep.subr.bf16.mxu0 0
    %809 = vmatpush2.bf16.msra.mxu0 0
    %810 = vmatprep.subr.bf16.mxu0 0
    %811 = vmatpush2.bf16.msra.mxu0 0
    %812 = vmatprep.mubr.bf16.mxu0 0
    %813 = vmatmul.mubr.bf16.gmra.mxu0 0
    %v814 = vpop.f32.mrf.mxu0
    %v815 = vadd.f32 0.0, %v814
    %v816 = vpop.f32.mrf.mxu0
    %v817 = vadd.f32 0.0, %v816
    %v818 = vpop.f32.mrf.mxu0
    %v819 = vpop.f32.mrf.mxu0
    %820 = vdwg.mxu0
    %821 = vmatprep.subr.bf16.mxu0 %v747
    %822 = vmatpush1.bf16.msra.mxu0 %v746
    %823 = vmatprep.subr.bf16.mxu0 %v743
    %824 = vmatpush1.bf16.msra.mxu0 %v742
    %825 = vmatprep.subr.bf16.mxu0 %v739
    %826 = vmatpush1.bf16.msra.mxu0 %v738
    %827 = vmatprep.subr.bf16.mxu0 %v735
    %828 = vmatpush1.bf16.msra.mxu0 %v734
    %829 = vmatprep.subr.bf16.mxu0 %v731
    %830 = vmatpush1.bf16.msra.mxu0 %v730
    %831 = vmatprep.subr.bf16.mxu0 %v727
    %832 = vmatpush1.bf16.msra.mxu0 %v726
    %833 = vmatprep.subr.bf16.mxu0 %v723
    %834 = vmatpush1.bf16.msra.mxu0 %v722
    %835 = vmatprep.subr.bf16.mxu0 %v719
    %836 = vmatpush1.bf16.msra.mxu0 %v718
    %837 = vmatprep.subr.bf16.mxu0 0
    %838 = vmatpush2.bf16.msra.mxu0 0
    %839 = vmatprep.subr.bf16.mxu0 0
    %840 = vmatpush2.bf16.msra.mxu0 0
    %841 = vmatprep.subr.bf16.mxu0 0
    %842 = vmatpush2.bf16.msra.mxu0 0
    %843 = vmatprep.subr.bf16.mxu0 0
    %844 = vmatpush2.bf16.msra.mxu0 0
    %845 = vmatprep.subr.bf16.mxu0 0
    %846 = vmatpush2.bf16.msra.mxu0 0
    %847 = vmatprep.subr.bf16.mxu0 0
    %848 = vmatpush2.bf16.msra.mxu0 0
    %849 = vmatprep.subr.bf16.mxu0 0
    %850 = vmatpush2.bf16.msra.mxu0 0
    %851 = vmatprep.subr.bf16.mxu0 0
    %852 = vmatpush2.bf16.msra.mxu0 0
    %853 = vmatprep.mubr.bf16.mxu0 0
    %854 = vmatmul.mubr.bf16.gmra.mxu0 0
    %v855 = vpop.f32.mrf.mxu0
    %v856 = vadd.f32 0.0, %v855
    %v857 = vpop.f32.mrf.mxu0
    %v858 = vadd.f32 0.0, %v857
    %v859 = vpop.f32.mrf.mxu0
    %v860 = vpop.f32.mrf.mxu0
    %861 = vdwg.mxu0
    %v894 = vunpack.c.l.b16 %v556
    %v895 = vunpack.c.h.b16 %v556
    %v896 = vunpack.c.l.b16 %v557
    %v897 = vunpack.c.h.b16 %v557
    %v898 = vunpack.c.l.b16 %v558
    %v899 = vunpack.c.h.b16 %v558
    %v900 = vunpack.c.l.b16 %v559
    %v901 = vunpack.c.h.b16 %v559
    %v902 = vunpack.c.l.b16 %v560
    %v903 = vunpack.c.h.b16 %v560
    %v904 = vunpack.c.l.b16 %v561
    %v905 = vunpack.c.h.b16 %v561
    %v906 = vunpack.c.l.b16 %v562
    %v907 = vunpack.c.h.b16 %v562
    %v908 = vunpack.c.l.b16 %v563
    %v909 = vunpack.c.h.b16 %v563
    %v910 = vunpack.c.l.b16 %v564
    %v911 = vunpack.c.h.b16 %v564
    %v912 = vunpack.c.l.b16 %v565
    %v913 = vunpack.c.h.b16 %v565
    %v914 = vunpack.c.l.b16 %v566
    %v915 = vunpack.c.h.b16 %v566
    %v916 = vunpack.c.l.b16 %v567
    %v917 = vunpack.c.h.b16 %v567
    %v918 = vunpack.c.l.b16 %v568
    %v919 = vunpack.c.h.b16 %v568
    %v920 = vunpack.c.l.b16 %v569
    %v921 = vunpack.c.h.b16 %v569
    %v922 = vunpack.c.l.b16 %v570
    %v923 = vunpack.c.h.b16 %v570
    %v924 = vunpack.c.l.b16 %v571
    %v925 = vunpack.c.h.b16 %v571
    %v926 = vunpack.c.l.b16 %v572
    %v927 = vunpack.c.h.b16 %v572
    %v928 = vunpack.c.l.b16 %v573
    %v929 = vunpack.c.h.b16 %v573
    %v930 = vunpack.c.l.b16 %v574
    %v931 = vunpack.c.h.b16 %v574
    %v932 = vunpack.c.l.b16 %v575
    %v933 = vunpack.c.h.b16 %v575
    %v934 = vunpack.c.l.b16 %v576
    %v935 = vunpack.c.h.b16 %v576
    %v936 = vunpack.c.l.b16 %v577
    %v937 = vunpack.c.h.b16 %v577
    %v938 = vunpack.c.l.b16 %v578
    %v939 = vunpack.c.h.b16 %v578
    %v940 = vunpack.c.l.b16 %v579
    %v941 = vunpack.c.h.b16 %v579
    %v942 = vunpack.c.l.b16 %v580
    %v943 = vunpack.c.h.b16 %v580
    %v944 = vunpack.c.l.b16 %v581
    %v945 = vunpack.c.h.b16 %v581
    %v946 = vunpack.c.l.b16 %v582
    %v947 = vunpack.c.h.b16 %v582
    %v948 = vunpack.c.l.b16 %v583
    %v949 = vunpack.c.h.b16 %v583
    %v950 = vunpack.c.l.b16 %v584
    %v951 = vunpack.c.h.b16 %v584
    %v952 = vunpack.c.l.b16 %v585
    %v953 = vunpack.c.h.b16 %v585
    %v954 = vunpack.c.l.b16 %v586
    %v955 = vunpack.c.h.b16 %v586
    %v956 = vunpack.c.l.b16 %v587
    %v957 = vunpack.c.h.b16 %v587
    %v958 = vpack.c.b16 %v898, %v894
    %v959 = vpack.c.b16 %v899, %v895
    %v960 = vpack.c.b16 %v900, %v896
    %v961 = vpack.c.b16 %v901, %v897
    %v962 = vpack.c.b16 %v906, %v902
    %v963 = vpack.c.b16 %v907, %v903
    %v964 = vpack.c.b16 %v908, %v904
    %v965 = vpack.c.b16 %v909, %v905
    %v966 = vpack.c.b16 %v914, %v910
    %v967 = vpack.c.b16 %v915, %v911
    %v968 = vpack.c.b16 %v916, %v912
    %v969 = vpack.c.b16 %v917, %v913
    %v970 = vpack.c.b16 %v922, %v918
    %v971 = vpack.c.b16 %v923, %v919
    %v972 = vpack.c.b16 %v924, %v920
    %v973 = vpack.c.b16 %v925, %v921
    %v974 = vpack.c.b16 %v930, %v926
    %v975 = vpack.c.b16 %v931, %v927
    %v976 = vpack.c.b16 %v932, %v928
    %v977 = vpack.c.b16 %v933, %v929
    %v978 = vpack.c.b16 %v938, %v934
    %v979 = vpack.c.b16 %v939, %v935
    %v980 = vpack.c.b16 %v940, %v936
    %v981 = vpack.c.b16 %v941, %v937
    %v982 = vpack.c.b16 %v946, %v942
    %v983 = vpack.c.b16 %v947, %v943
    %v984 = vpack.c.b16 %v948, %v944
    %v985 = vpack.c.b16 %v949, %v945
    %v986 = vpack.c.b16 %v954, %v950
    %v987 = vpack.c.b16 %v955, %v951
    %v988 = vpack.c.b16 %v956, %v952
    %v989 = vpack.c.b16 %v957, %v953
    %1022 = vmatprep.subr.bf16.mxu0 %v987
    %1023 = vmatpush1.bf16.msra.mxu0 %v986
    %1024 = vmatprep.subr.bf16.mxu0 %v983
    %1025 = vmatpush1.bf16.msra.mxu0 %v982
    %1026 = vmatprep.subr.bf16.mxu0 %v979
    %1027 = vmatpush1.bf16.msra.mxu0 %v978
    %1028 = vmatprep.subr.bf16.mxu0 %v975
    %1029 = vmatpush1.bf16.msra.mxu0 %v974
    %1030 = vmatprep.subr.bf16.mxu0 %v971
    %1031 = vmatpush1.bf16.msra.mxu0 %v970
    %1032 = vmatprep.subr.bf16.mxu0 %v967
    %1033 = vmatpush1.bf16.msra.mxu0 %v966
    %1034 = vmatprep.subr.bf16.mxu0 %v963
    %1035 = vmatpush1.bf16.msra.mxu0 %v962
    %1036 = vmatprep.subr.bf16.mxu0 %v959
    %1037 = vmatpush1.bf16.msra.mxu0 %v958
    %1038 = vmatprep.subr.bf16.mxu0 0
    %1039 = vmatpush2.bf16.msra.mxu0 0
    %1040 = vmatprep.subr.bf16.mxu0 0
    %1041 = vmatpush2.bf16.msra.mxu0 0
    %1042 = vmatprep.subr.bf16.mxu0 0
    %1043 = vmatpush2.bf16.msra.mxu0 0
    %1044 = vmatprep.subr.bf16.mxu0 0
    %1045 = vmatpush2.bf16.msra.mxu0 0
    %1046 = vmatprep.subr.bf16.mxu0 0
    %1047 = vmatpush2.bf16.msra.mxu0 0
    %1048 = vmatprep.subr.bf16.mxu0 0
    %1049 = vmatpush2.bf16.msra.mxu0 0
    %1050 = vmatprep.subr.bf16.mxu0 0
    %1051 = vmatpush2.bf16.msra.mxu0 0
    %1052 = vmatprep.subr.bf16.mxu0 0
    %1053 = vmatpush2.bf16.msra.mxu0 0
    %1054 = vmatprep.mubr.bf16.mxu0 0
    %1055 = vmatmul.mubr.bf16.gmra.mxu0 %v555
    %v1056 = vpop.f32.mrf.mxu0
    %v1057 = vadd.f32 %v815, %v1056
    %v1058 = vpop.f32.mrf.mxu0
    %v1059 = vadd.f32 %v817, %v1058
    %v1060 = vpop.f32.mrf.mxu0
    %v1061 = vpop.f32.mrf.mxu0
    %1062 = vdwg.mxu0
    %1063 = vmatprep.subr.bf16.mxu0 %v989
    %1064 = vmatpush1.bf16.msra.mxu0 %v988
    %1065 = vmatprep.subr.bf16.mxu0 %v985
    %1066 = vmatpush1.bf16.msra.mxu0 %v984
    %1067 = vmatprep.subr.bf16.mxu0 %v981
    %1068 = vmatpush1.bf16.msra.mxu0 %v980
    %1069 = vmatprep.subr.bf16.mxu0 %v977
    %1070 = vmatpush1.bf16.msra.mxu0 %v976
    %1071 = vmatprep.subr.bf16.mxu0 %v973
    %1072 = vmatpush1.bf16.msra.mxu0 %v972
    %1073 = vmatprep.subr.bf16.mxu0 %v969
    %1074 = vmatpush1.bf16.msra.mxu0 %v968
    %1075 = vmatprep.subr.bf16.mxu0 %v965
    %1076 = vmatpush1.bf16.msra.mxu0 %v964
    %1077 = vmatprep.subr.bf16.mxu0 %v961
    %1078 = vmatpush1.bf16.msra.mxu0 %v960
    %1079 = vmatprep.subr.bf16.mxu0 0
    %1080 = vmatpush2.bf16.msra.mxu0 0
    %1081 = vmatprep.subr.bf16.mxu0 0
    %1082 = vmatpush2.bf16.msra.mxu0 0
    %1083 = vmatprep.subr.bf16.mxu0 0
    %1084 = vmatpush2.bf16.msra.mxu0 0
    %1085 = vmatprep.subr.bf16.mxu0 0
    %1086 = vmatpush2.bf16.msra.mxu0 0
    %1087 = vmatprep.subr.bf16.mxu0 0
    %1088 = vmatpush2.bf16.msra.mxu0 0
    %1089 = vmatprep.subr.bf16.mxu0 0
    %1090 = vmatpush2.bf16.msra.mxu0 0
    %1091 = vmatprep.subr.bf16.mxu0 0
    %1092 = vmatpush2.bf16.msra.mxu0 0
    %1093 = vmatprep.subr.bf16.mxu0 0
    %1094 = vmatpush2.bf16.msra.mxu0 0
    %1095 = vmatprep.mubr.bf16.mxu0 0
    %1096 = vmatmul.mubr.bf16.gmra.mxu0 %v555
    %v1097 = vpop.f32.mrf.mxu0
    %v1098 = vadd.f32 %v856, %v1097
    %v1099 = vpop.f32.mrf.mxu0
    %v1100 = vadd.f32 %v858, %v1099
    %v1101 = vpop.f32.mrf.mxu0
    %v1102 = vpop.f32.mrf.mxu0
    %1103 = vdwg.mxu0
    %v1104 = vadd.f32 %v1057, %v517
    %v1105 = vadd.f32 %v1059, %v521
    %v1106 = vadd.f32 %v1098, %v525
    %v1107 = vadd.f32 %v1100, %v529
    %v1108 = vtanh.pop %v1104
    %v1109 = vtanh.pop %v1105
    %v1110 = vtanh.pop %v1106
    %v1111 = vtanh.pop %v1107
    %v1112 = vmul.f32 %v1108, %v504
    %v1113 = vmul.f32 %v1109, %v505
    %v1114 = vmul.f32 %v1110, %v506
    %v1115 = vmul.f32 %v1111, %v507
    %v1116 = vadd.f32 %v1112, %v508
    %v1117 = vadd.f32 %v1113, %v509
    %v1118 = vadd.f32 %v1114, %v510
    %v1119 = vadd.f32 %v1115, %v511
    %v1120 = vmul.f32 %v1117, 0.0
    %v1121 = vmul.f32 %v1116, %v1118
    %v1122 = vadd.f32 %v1120, %v1121
    %v1123 = vtanh.pop %v1122
    %v1124 = vmul.f32 %v1119, %v1123
    %s1125 = smul.u32 1, 4
    %s1126 = smul.addr %s1125, 8
    %s1127 = scalar_lea.vmem [#allocation2], %s1126
    %v1128 = vld [vmem:[%s1127] sm:$0xff]
    %v1129 = vld [vmem:[%s1127 + $0x8] sm:$0xff]
    %v1130 = vld [vmem:[%s1127 + $0x10] sm:$0xff]
    %v1131 = vld [vmem:[%s1127 + $0x18] sm:$0xff]
    %v1132 = vld [vmem:[#allocation8] sm:$0xff]
    %v1133 = vld [vmem:[#allocation8 + $0x8] sm:$0xff]
    %v1134 = vld [vmem:[#allocation8 + $0x10] sm:$0xff]
    %v1135 = vld [vmem:[#allocation8 + $0x18] sm:$0xff]
    %v1136 = vld [vmem:[#allocation8 + $0x20] sm:$0xff]
    %v1137 = vld [vmem:[#allocation8 + $0x28] sm:$0xff]
    %v1138 = vld [vmem:[#allocation8 + $0x30] sm:$0xff]
    %v1139 = vld [vmem:[#allocation8 + $0x38] sm:$0xff]
    %v1140 = vld [vmem:[#allocation8 + $0x40] sm:$0xff]
    %v1141 = vld [vmem:[#allocation8 + $0x48] sm:$0xff]
    %v1142 = vld [vmem:[#allocation8 + $0x50] sm:$0xff]
    %v1143 = vld [vmem:[#allocation8 + $0x58] sm:$0xff]
    %v1144 = vld [vmem:[#allocation8 + $0x60] sm:$0xff]
    %v1145 = vld [vmem:[#allocation8 + $0x68] sm:$0xff]
    %v1146 = vld [vmem:[#allocation8 + $0x70] sm:$0xff]
    %v1147 = vld [vmem:[#allocation8 + $0x78] sm:$0xff]
    %v1148 = vld [vmem:[#allocation8 + $0x80] sm:$0xff]
    %v1149 = vld [vmem:[#allocation8 + $0x88] sm:$0xff]
    %v1150 = vld [vmem:[#allocation8 + $0x90] sm:$0xff]
    %v1151 = vld [vmem:[#allocation8 + $0x98] sm:$0xff]
    %v1152 = vld [vmem:[#allocation8 + $0xa0] sm:$0xff]
    %v1153 = vld [vmem:[#allocation8 + $0xa8] sm:$0xff]
    %v1154 = vld [vmem:[#allocation8 + $0xb0] sm:$0xff]
    %v1155 = vld [vmem:[#allocation8 + $0xb8] sm:$0xff]
    %v1156 = vld [vmem:[#allocation8 + $0xc0] sm:$0xff]
    %v1157 = vld [vmem:[#allocation8 + $0xc8] sm:$0xff]
    %v1158 = vld [vmem:[#allocation8 + $0xd0] sm:$0xff]
    %v1159 = vld [vmem:[#allocation8 + $0xd8] sm:$0xff]
    %v1160 = vld [vmem:[#allocation8 + $0xe0] sm:$0xff]
    %v1161 = vld [vmem:[#allocation8 + $0xe8] sm:$0xff]
    %v1162 = vld [vmem:[#allocation8 + $0xf0] sm:$0xff]
    %v1163 = vld [vmem:[#allocation8 + $0xf8] sm:$0xff]
    %v1196 = vunpack.c.l.b16 %v1132
    %v1197 = vunpack.c.h.b16 %v1132
    %v1198 = vunpack.c.l.b16 %v1133
    %v1199 = vunpack.c.h.b16 %v1133
    %v1200 = vunpack.c.l.b16 %v1134
    %v1201 = vunpack.c.h.b16 %v1134
    %v1202 = vunpack.c.l.b16 %v1135
    %v1203 = vunpack.c.h.b16 %v1135
    %v1204 = vunpack.c.l.b16 %v1136
    %v1205 = vunpack.c.h.b16 %v1136
    %v1206 = vunpack.c.l.b16 %v1137
    %v1207 = vunpack.c.h.b16 %v1137
    %v1208 = vunpack.c.l.b16 %v1138
    %v1209 = vunpack.c.h.b16 %v1138
    %v1210 = vunpack.c.l.b16 %v1139
    %v1211 = vunpack.c.h.b16 %v1139
    %v1212 = vunpack.c.l.b16 %v1140
    %v1213 = vunpack.c.h.b16 %v1140
    %v1214 = vunpack.c.l.b16 %v1141
    %v1215 = vunpack.c.h.b16 %v1141
    %v1216 = vunpack.c.l.b16 %v1142
    %v1217 = vunpack.c.h.b16 %v1142
    %v1218 = vunpack.c.l.b16 %v1143
    %v1219 = vunpack.c.h.b16 %v1143
    %v1220 = vunpack.c.l.b16 %v1144
    %v1221 = vunpack.c.h.b16 %v1144
    %v1222 = vunpack.c.l.b16 %v1145
    %v1223 = vunpack.c.h.b16 %v1145
    %v1224 = vunpack.c.l.b16 %v1146
    %v1225 = vunpack.c.h.b16 %v1146
    %v1226 = vunpack.c.l.b16 %v1147
    %v1227 = vunpack.c.h.b16 %v1147
    %v1228 = vunpack.c.l.b16 %v1148
    %v1229 = vunpack.c.h.b16 %v1148
    %v1230 = vunpack.c.l.b16 %v1149
    %v1231 = vunpack.c.h.b16 %v1149
    %v1232 = vunpack.c.l.b16 %v1150
    %v1233 = vunpack.c.h.b16 %v1150
    %v1234 = vunpack.c.l.b16 %v1151
    %v1235 = vunpack.c.h.b16 %v1151
    %v1236 = vunpack.c.l.b16 %v1152
    %v1237 = vunpack.c.h.b16 %v1152
    %v1238 = vunpack.c.l.b16 %v1153
    %v1239 = vunpack.c.h.b16 %v1153
    %v1240 = vunpack.c.l.b16 %v1154
    %v1241 = vunpack.c.h.b16 %v1154
    %v1242 = vunpack.c.l.b16 %v1155
    %v1243 = vunpack.c.h.b16 %v1155
    %v1244 = vunpack.c.l.b16 %v1156
    %v1245 = vunpack.c.h.b16 %v1156
    %v1246 = vunpack.c.l.b16 %v1157
    %v1247 = vunpack.c.h.b16 %v1157
    %v1248 = vunpack.c.l.b16 %v1158
    %v1249 = vunpack.c.h.b16 %v1158
    %v1250 = vunpack.c.l.b16 %v1159
    %v1251 = vunpack.c.h.b16 %v1159
    %v1252 = vunpack.c.l.b16 %v1160
    %v1253 = vunpack.c.h.b16 %v1160
    %v1254 = vunpack.c.l.b16 %v1161
    %v1255 = vunpack.c.h.b16 %v1161
    %v1256 = vunpack.c.l.b16 %v1162
    %v1257 = vunpack.c.h.b16 %v1162
    %v1258 = vunpack.c.l.b16 %v1163
    %v1259 = vunpack.c.h.b16 %v1163
    %v1260 = vpack.c.b16 %v1200, %v1196
    %v1261 = vpack.c.b16 %v1201, %v1197
    %v1262 = vpack.c.b16 %v1202, %v1198
    %v1263 = vpack.c.b16 %v1203, %v1199
    %v1264 = vpack.c.b16 %v1208, %v1204
    %v1265 = vpack.c.b16 %v1209, %v1205
    %v1266 = vpack.c.b16 %v1210, %v1206
    %v1267 = vpack.c.b16 %v1211, %v1207
    %v1268 = vpack.c.b16 %v1216, %v1212
    %v1269 = vpack.c.b16 %v1217, %v1213
    %v1270 = vpack.c.b16 %v1218, %v1214
    %v1271 = vpack.c.b16 %v1219, %v1215
    %v1272 = vpack.c.b16 %v1224, %v1220
    %v1273 = vpack.c.b16 %v1225, %v1221
    %v1274 = vpack.c.b16 %v1226, %v1222
    %v1275 = vpack.c.b16 %v1227, %v1223
    %v1276 = vpack.c.b16 %v1232, %v1228
    %v1277 = vpack.c.b16 %v1233, %v1229
    %v1278 = vpack.c.b16 %v1234, %v1230
    %v1279 = vpack.c.b16 %v1235, %v1231
    %v1280 = vpack.c.b16 %v1240, %v1236
    %v1281 = vpack.c.b16 %v1241, %v1237
    %v1282 = vpack.c.b16 %v1242, %v1238
    %v1283 = vpack.c.b16 %v1243, %v1239
    %v1284 = vpack.c.b16 %v1248, %v1244
    %v1285 = vpack.c.b16 %v1249, %v1245
    %v1286 = vpack.c.b16 %v1250, %v1246
    %v1287 = vpack.c.b16 %v1251, %v1247
    %v1288 = vpack.c.b16 %v1256, %v1252
    %v1289 = vpack.c.b16 %v1257, %v1253
    %v1290 = vpack.c.b16 %v1258, %v1254
    %v1291 = vpack.c.b16 %v1259, %v1255
    %1324 = vmatprep.subr.bf16.mxu0 %v1289
    %1325 = vmatpush1.bf16.msra.mxu0 %v1288
    %1326 = vmatprep.subr.bf16.mxu0 %v1285
    %1327 = vmatpush1.bf16.msra.mxu0 %v1284
    %1328 = vmatprep.subr.bf16.mxu0 %v1281
    %1329 = vmatpush1.bf16.msra.mxu0 %v1280
    %1330 = vmatprep.subr.bf16.mxu0 %v1277
    %1331 = vmatpush1.bf16.msra.mxu0 %v1276
    %1332 = vmatprep.subr.bf16.mxu0 %v1273
    %1333 = vmatpush1.bf16.msra.mxu0 %v1272
    %1334 = vmatprep.subr.bf16.mxu0 %v1269
    %1335 = vmatpush1.bf16.msra.mxu0 %v1268
    %1336 = vmatprep.subr.bf16.mxu0 %v1265
    %1337 = vmatpush1.bf16.msra.mxu0 %v1264
    %1338 = vmatprep.subr.bf16.mxu0 %v1261
    %1339 = vmatpush1.bf16.msra.mxu0 %v1260
    %1340 = vmatprep.subr.bf16.mxu0 0
    %1341 = vmatpush2.bf16.msra.mxu0 0
    %1342 = vmatprep.subr.bf16.mxu0 0
    %1343 = vmatpush2.bf16.msra.mxu0 0
    %1344 = vmatprep.subr.bf16.mxu0 0
    %1345 = vmatpush2.bf16.msra.mxu0 0
    %1346 = vmatprep.subr.bf16.mxu0 0
    %1347 = vmatpush2.bf16.msra.mxu0 0
    %1348 = vmatprep.subr.bf16.mxu0 0
    %1349 = vmatpush2.bf16.msra.mxu0 0
    %1350 = vmatprep.subr.bf16.mxu0 0
    %1351 = vmatpush2.bf16.msra.mxu0 0
    %1352 = vmatprep.subr.bf16.mxu0 0
    %1353 = vmatpush2.bf16.msra.mxu0 0
    %1354 = vmatprep.subr.bf16.mxu0 0
    %1355 = vmatpush2.bf16.msra.mxu0 0
    %1356 = vmatprep.mubr.bf16.mxu0 0
    %1357 = vmatmul.mubr.bf16.gmra.mxu0 %v555
    %v1358 = vpop.f32.mrf.mxu0
    %v1359 = vadd.f32 0.0, %v1358
    %v1360 = vpop.f32.mrf.mxu0
    %v1361 = vadd.f32 0.0, %v1360
    %v1362 = vpop.f32.mrf.mxu0
    %v1363 = vpop.f32.mrf.mxu0
    %1364 = vdwg.mxu0
    %1365 = vmatprep.subr.bf16.mxu0 %v1291
    %1366 = vmatpush1.bf16.msra.mxu0 %v1290
    %1367 = vmatprep.subr.bf16.mxu0 %v1287
    %1368 = vmatpush1.bf16.msra.mxu0 %v1286
    %1369 = vmatprep.subr.bf16.mxu0 %v1283
    %1370 = vmatpush1.bf16.msra.mxu0 %v1282
    %1371 = vmatprep.subr.bf16.mxu0 %v1279
    %1372 = vmatpush1.bf16.msra.mxu0 %v1278
    %1373 = vmatprep.subr.bf16.mxu0 %v1275
    %1374 = vmatpush1.bf16.msra.mxu0 %v1274
    %1375 = vmatprep.subr.bf16.mxu0 %v1271
    %1376 = vmatpush1.bf16.msra.mxu0 %v1270
    %1377 = vmatprep.subr.bf16.mxu0 %v1267
    %1378 = vmatpush1.bf16.msra.mxu0 %v1266
    %1379 = vmatprep.subr.bf16.mxu0 %v1263
    %1380 = vmatpush1.bf16.msra.mxu0 %v1262
    %1381 = vmatprep.subr.bf16.mxu0 0
    %1382 = vmatpush2.bf16.msra.mxu0 0
    %1383 = vmatprep.subr.bf16.mxu0 0
    %1384 = vmatpush2.bf16.msra.mxu0 0
    %1385 = vmatprep.subr.bf16.mxu0 0
    %1386 = vmatpush2.bf16.msra.mxu0 0
    %1387 = vmatprep.subr.bf16.mxu0 0
    %1388 = vmatpush2.bf16.msra.mxu0 0
    %1389 = vmatprep.subr.bf16.mxu0 0
    %1390 = vmatpush2.bf16.msra.mxu0 0
    %1391 = vmatprep.subr.bf16.mxu0 0
    %1392 = vmatpush2.bf16.msra.mxu0 0
    %1393 = vmatprep.subr.bf16.mxu0 0
    %1394 = vmatpush2.bf16.msra.mxu0 0
    %1395 = vmatprep.subr.bf16.mxu0 0
    %1396 = vmatpush2.bf16.msra.mxu0 0
    %1397 = vmatprep.mubr.bf16.mxu0 0
    %1398 = vmatmul.mubr.bf16.gmra.mxu0 %v555
    %v1399 = vpop.f32.mrf.mxu0
    %v1400 = vadd.f32 0.0, %v1399
    %v1401 = vpop.f32.mrf.mxu0
    %v1402 = vadd.f32 0.0, %v1401
    %v1403 = vpop.f32.mrf.mxu0
    %v1404 = vpop.f32.mrf.mxu0
    %1405 = vdwg.mxu0
    %v1406 = vadd.f32 %v1128, %v1359
    %v1407 = vadd.f32 %v1129, %v1361
    %v1408 = vadd.f32 %v1130, %v1400
    %v1409 = vadd.f32 %v1131, %v1402
    %v1410 = vtanh.pop %v1406
    %v1411 = vtanh.pop %v1407
    %v1412 = vtanh.pop %v1408
    %v1413 = vtanh.pop %v1409
    %v1414 = vmul.f32 %v1410, %v504
    %v1415 = vmul.f32 %v1411, %v505
    %v1416 = vmul.f32 %v1412, %v506
    %v1417 = vmul.f32 %v1413, %v507
    %v1418 = vadd.f32 %v1414, %v508
    %v1419 = vadd.f32 %v1415, %v509
    %v1420 = vadd.f32 %v1416, %v510
    %v1421 = vadd.f32 %v1417, %v511
    %v1422 = vmul.f32 %v1419, %v552
    %v1423 = vmul.f32 %v1418, %v1420
    %v1424 = vadd.f32 %v1422, %v1423
    %v1425 = vtanh.pop %v1424
    %v1426 = vmul.f32 %v1421, %v1425
    %v1427 = vpack.c.bf16 %v1426, %v1426
    %v1428 = vpack.c.bf16 %v1124, %v1124
    %1429 = vmatprep.subr.bf16.mxu0 %v745
    %1430 = vmatpush1.bf16.msra.mxu0 %v744
    %1431 = vmatprep.subr.bf16.mxu0 %v741
    %1432 = vmatpush1.bf16.msra.mxu0 %v740
    %1433 = vmatprep.subr.bf16.mxu0 %v737
    %1434 = vmatpush1.bf16.msra.mxu0 %v736
    %1435 = vmatprep.subr.bf16.mxu0 %v733
    %1436 = vmatpush1.bf16.msra.mxu0 %v732
    %1437 = vmatprep.subr.bf16.mxu0 %v729
    %1438 = vmatpush1.bf16.msra.mxu0 %v728
    %1439 = vmatprep.subr.bf16.mxu0 %v725
    %1440 = vmatpush1.bf16.msra.mxu0 %v724
    %1441 = vmatprep.subr.bf16.mxu0 %v721
    %1442 = vmatpush1.bf16.msra.mxu0 %v720
    %1443 = vmatprep.subr.bf16.mxu0 %v717
    %1444 = vmatpush1.bf16.msra.mxu0 %v716
    %1445 = vmatprep.subr.bf16.mxu0 0
    %1446 = vmatpush2.bf16.msra.mxu0 0
    %1447 = vmatprep.subr.bf16.mxu0 0
    %1448 = vmatpush2.bf16.msra.mxu0 0
    %1449 = vmatprep.subr.bf16.mxu0 0
    %1450 = vmatpush2.bf16.msra.mxu0 0
    %1451 = vmatprep.subr.bf16.mxu0 0
    %1452 = vmatpush2.bf16.msra.mxu0 0
    %1453 = vmatprep.subr.bf16.mxu0 0
    %1454 = vmatpush2.bf16.msra.mxu0 0
    %1455 = vmatprep.subr.bf16.mxu0 0
    %1456 = vmatpush2.bf16.msra.mxu0 0
    %1457 = vmatprep.subr.bf16.mxu0 0
    %1458 = vmatpush2.bf16.msra.mxu0 0
    %1459 = vmatprep.subr.bf16.mxu0 0
    %1460 = vmatpush2.bf16.msra.mxu0 0
    %1461 = vmatprep.mubr.bf16.mxu0 0
    %1462 = vmatmul.mubr.bf16.gmra.mxu0 %v1428
    %v1463 = vpop.f32.mrf.mxu0
    %v1464 = vadd.f32 0.0, %v1463
    %v1465 = vpop.f32.mrf.mxu0
    %v1466 = vadd.f32 0.0, %v1465
    %v1467 = vpop.f32.mrf.mxu0
    %v1468 = vpop.f32.mrf.mxu0
    %1469 = vdwg.mxu0
    %1470 = vmatprep.subr.bf16.mxu0 %v747
    %1471 = vmatpush1.bf16.msra.mxu0 %v746
    %1472 = vmatprep.subr.bf16.mxu0 %v743
    %1473 = vmatpush1.bf16.msra.mxu0 %v742
    %1474 = vmatprep.subr.bf16.mxu0 %v739
    %1475 = vmatpush1.bf16.msra.mxu0 %v738
    %1476 = vmatprep.subr.bf16.mxu0 %v735
    %1477 = vmatpush1.bf16.msra.mxu0 %v734
    %1478 = vmatprep.subr.bf16.mxu0 %v731
    %1479 = vmatpush1.bf16.msra.mxu0 %v730
    %1480 = vmatprep.subr.bf16.mxu0 %v727
    %1481 = vmatpush1.bf16.msra.mxu0 %v726
    %1482 = vmatprep.subr.bf16.mxu0 %v723
    %1483 = vmatpush1.bf16.msra.mxu0 %v722
    %1484 = vmatprep.subr.bf16.mxu0 %v719
    %1485 = vmatpush1.bf16.msra.mxu0 %v718
    %1486 = vmatprep.subr.bf16.mxu0 0
    %1487 = vmatpush2.bf16.msra.mxu0 0
    %1488 = vmatprep.subr.bf16.mxu0 0
    %1489 = vmatpush2.bf16.msra.mxu0 0
    %1490 = vmatprep.subr.bf16.mxu0 0
    %1491 = vmatpush2.bf16.msra.mxu0 0
    %1492 = vmatprep.subr.bf16.mxu0 0
    %1493 = vmatpush2.bf16.msra.mxu0 0
    %1494 = vmatprep.subr.bf16.mxu0 0
    %1495 = vmatpush2.bf16.msra.mxu0 0
    %1496 = vmatprep.subr.bf16.mxu0 0
    %1497 = vmatpush2.bf16.msra.mxu0 0
    %1498 = vmatprep.subr.bf16.mxu0 0
    %1499 = vmatpush2.bf16.msra.mxu0 0
    %1500 = vmatprep.subr.bf16.mxu0 0
    %1501 = vmatpush2.bf16.msra.mxu0 0
    %1502 = vmatprep.mubr.bf16.mxu0 0
    %1503 = vmatmul.mubr.bf16.gmra.mxu0 %v1428
    %v1504 = vpop.f32.mrf.mxu0
    %v1505 = vadd.f32 0.0, %v1504
    %v1506 = vpop.f32.mrf.mxu0
    %v1507 = vadd.f32 0.0, %v1506
    %v1508 = vpop.f32.mrf.mxu0
    %v1509 = vpop.f32.mrf.mxu0
    %1510 = vdwg.mxu0
    %1511 = vmatprep.subr.bf16.mxu0 %v987
    %1512 = vmatpush1.bf16.msra.mxu0 %v986
    %1513 = vmatprep.subr.bf16.mxu0 %v983
    %1514 = vmatpush1.bf16.msra.mxu0 %v982
    %1515 = vmatprep.subr.bf16.mxu0 %v979
    %1516 = vmatpush1.bf16.msra.mxu0 %v978
    %1517 = vmatprep.subr.bf16.mxu0 %v975
    %1518 = vmatpush1.bf16.msra.mxu0 %v974
    %1519 = vmatprep.subr.bf16.mxu0 %v971
    %1520 = vmatpush1.bf16.msra.mxu0 %v970
    %1521 = vmatprep.subr.bf16.mxu0 %v967
    %1522 = vmatpush1.bf16.msra.mxu0 %v966
    %1523 = vmatprep.subr.bf16.mxu0 %v963
    %1524 = vmatpush1.bf16.msra.mxu0 %v962
    %1525 = vmatprep.subr.bf16.mxu0 %v959
    %1526 = vmatpush1.bf16.msra.mxu0 %v958
    %1527 = vmatprep.subr.bf16.mxu0 0
    %1528 = vmatpush2.bf16.msra.mxu0 0
    %1529 = vmatprep.subr.bf16.mxu0 0
    %1530 = vmatpush2.bf16.msra.mxu0 0
    %1531 = vmatprep.subr.bf16.mxu0 0
    %1532 = vmatpush2.bf16.msra.mxu0 0
    %1533 = vmatprep.subr.bf16.mxu0 0
    %1534 = vmatpush2.bf16.msra.mxu0 0
    %1535 = vmatprep.subr.bf16.mxu0 0
    %1536 = vmatpush2.bf16.msra.mxu0 0
    %1537 = vmatprep.subr.bf16.mxu0 0
    %1538 = vmatpush2.bf16.msra.mxu0 0
    %1539 = vmatprep.subr.bf16.mxu0 0
    %1540 = vmatpush2.bf16.msra.mxu0 0
    %1541 = vmatprep.subr.bf16.mxu0 0
    %1542 = vmatpush2.bf16.msra.mxu0 0
    %1543 = vmatprep.mubr.bf16.mxu0 0
    %1544 = vmatmul.mubr.bf16.gmra.mxu0 %v1427
    %v1545 = vpop.f32.mrf.mxu0
    %v1546 = vadd.f32 %v1464, %v1545
    %v1547 = vpop.f32.mrf.mxu0
    %v1548 = vadd.f32 %v1466, %v1547
    %v1549 = vpop.f32.mrf.mxu0
    %v1550 = vpop.f32.mrf.mxu0
    %1551 = vdwg.mxu0
    %1552 = vmatprep.subr.bf16.mxu0 %v989
    %1553 = vmatpush1.bf16.msra.mxu0 %v988
    %1554 = vmatprep.subr.bf16.mxu0 %v985
    %1555 = vmatpush1.bf16.msra.mxu0 %v984
    %1556 = vmatprep.subr.bf16.mxu0 %v981
    %1557 = vmatpush1.bf16.msra.mxu0 %v980
    %1558 = vmatprep.subr.bf16.mxu0 %v977
    %1559 = vmatpush1.bf16.msra.mxu0 %v976
    %1560 = vmatprep.subr.bf16.mxu0 %v973
    %1561 = vmatpush1.bf16.msra.mxu0 %v972
    %1562 = vmatprep.subr.bf16.mxu0 %v969
    %1563 = vmatpush1.bf16.msra.mxu0 %v968
    %1564 = vmatprep.subr.bf16.mxu0 %v965
    %1565 = vmatpush1.bf16.msra.mxu0 %v964
    %1566 = vmatprep.subr.bf16.mxu0 %v961
    %1567 = vmatpush1.bf16.msra.mxu0 %v960
    %1568 = vmatprep.subr.bf16.mxu0 0
    %1569 = vmatpush2.bf16.msra.mxu0 0
    %1570 = vmatprep.subr.bf16.mxu0 0
    %1571 = vmatpush2.bf16.msra.mxu0 0
    %1572 = vmatprep.subr.bf16.mxu0 0
    %1573 = vmatpush2.bf16.msra.mxu0 0
    %1574 = vmatprep.subr.bf16.mxu0 0
    %1575 = vmatpush2.bf16.msra.mxu0 0
    %1576 = vmatprep.subr.bf16.mxu0 0
    %1577 = vmatpush2.bf16.msra.mxu0 0
    %1578 = vmatprep.subr.bf16.mxu0 0
    %1579 = vmatpush2.bf16.msra.mxu0 0
    %1580 = vmatprep.subr.bf16.mxu0 0
    %1581 = vmatpush2.bf16.msra.mxu0 0
    %1582 = vmatprep.subr.bf16.mxu0 0
    %1583 = vmatpush2.bf16.msra.mxu0 0
    %1584 = vmatprep.mubr.bf16.mxu0 0
    %1585 = vmatmul.mubr.bf16.gmra.mxu0 %v1427
    %v1586 = vpop.f32.mrf.mxu0
    %v1587 = vadd.f32 %v1505, %v1586
    %v1588 = vpop.f32.mrf.mxu0
    %v1589 = vadd.f32 %v1507, %v1588
    %v1590 = vpop.f32.mrf.mxu0
    %v1591 = vpop.f32.mrf.mxu0
    %1592 = vdwg.mxu0
    %v1593 = vadd.f32 %v1546, %v517
    %v1594 = vadd.f32 %v1548, %v521
    %v1595 = vadd.f32 %v1587, %v525
    %v1596 = vadd.f32 %v1589, %v529
    %v1597 = vtanh.pop %v1593
    %v1598 = vtanh.pop %v1594
    %v1599 = vtanh.pop %v1595
    %v1600 = vtanh.pop %v1596
    %v1601 = vmul.f32 %v1597, %v504
    %v1602 = vmul.f32 %v1598, %v505
    %v1603 = vmul.f32 %v1599, %v506
    %v1604 = vmul.f32 %v1600, %v507
    %v1605 = vadd.f32 %v1601, %v508
    %v1606 = vadd.f32 %v1602, %v509
    %v1607 = vadd.f32 %v1603, %v510
    %v1608 = vadd.f32 %v1604, %v511
    %v1609 = vmul.f32 %v1606, %v1122
    %v1610 = vmul.f32 %v1605, %v1607
    %v1611 = vadd.f32 %v1609, %v1610
    %v1612 = vtanh.pop %v1611
    %v1613 = vmul.f32 %v1608, %v1612
    %s1614 = smul.u32 2, 4
    %s1615 = smul.addr %s1614, 8
    %s1616 = scalar_lea.vmem [#allocation2], %s1615
    %v1617 = vld [vmem:[%s1616] sm:$0xff]
    %v1618 = vld [vmem:[%s1616 + $0x8] sm:$0xff]
    %v1619 = vld [vmem:[%s1616 + $0x10] sm:$0xff]
    %v1620 = vld [vmem:[%s1616 + $0x18] sm:$0xff]
    %1621 = vmatprep.subr.bf16.mxu0 %v1289
    %1622 = vmatpush1.bf16.msra.mxu0 %v1288
    %1623 = vmatprep.subr.bf16.mxu0 %v1285
    %1624 = vmatpush1.bf16.msra.mxu0 %v1284
    %1625 = vmatprep.subr.bf16.mxu0 %v1281
    %1626 = vmatpush1.bf16.msra.mxu0 %v1280
    %1627 = vmatprep.subr.bf16.mxu0 %v1277
    %1628 = vmatpush1.bf16.msra.mxu0 %v1276
    %1629 = vmatprep.subr.bf16.mxu0 %v1273
    %1630 = vmatpush1.bf16.msra.mxu0 %v1272
    %1631 = vmatprep.subr.bf16.mxu0 %v1269
    %1632 = vmatpush1.bf16.msra.mxu0 %v1268
    %1633 = vmatprep.subr.bf16.mxu0 %v1265
    %1634 = vmatpush1.bf16.msra.mxu0 %v1264
    %1635 = vmatprep.subr.bf16.mxu0 %v1261
    %1636 = vmatpush1.bf16.msra.mxu0 %v1260
    %1637 = vmatprep.subr.bf16.mxu0 0
    %1638 = vmatpush2.bf16.msra.mxu0 0
    %1639 = vmatprep.subr.bf16.mxu0 0
    %1640 = vmatpush2.bf16.msra.mxu0 0
    %1641 = vmatprep.subr.bf16.mxu0 0
    %1642 = vmatpush2.bf16.msra.mxu0 0
    %1643 = vmatprep.subr.bf16.mxu0 0
    %1644 = vmatpush2.bf16.msra.mxu0 0
    %1645 = vmatprep.subr.bf16.mxu0 0
    %1646 = vmatpush2.bf16.msra.mxu0 0
    %1647 = vmatprep.subr.bf16.mxu0 0
    %1648 = vmatpush2.bf16.msra.mxu0 0
    %1649 = vmatprep.subr.bf16.mxu0 0
    %1650 = vmatpush2.bf16.msra.mxu0 0
    %1651 = vmatprep.subr.bf16.mxu0 0
    %1652 = vmatpush2.bf16.msra.mxu0 0
    %1653 = vmatprep.mubr.bf16.mxu0 0
    %1654 = vmatmul.mubr.bf16.gmra.mxu0 %v1427
    %v1655 = vpop.f32.mrf.mxu0
    %v1656 = vadd.f32 0.0, %v1655
    %v1657 = vpop.f32.mrf.mxu0
    %v1658 = vadd.f32 0.0, %v1657
    %v1659 = vpop.f32.mrf.mxu0
    %v1660 = vpop.f32.mrf.mxu0
    %1661 = vdwg.mxu0
    %1662 = vmatprep.subr.bf16.mxu0 %v1291
    %1663 = vmatpush1.bf16.msra.mxu0 %v1290
    %1664 = vmatprep.subr.bf16.mxu0 %v1287
    %1665 = vmatpush1.bf16.msra.mxu0 %v1286
    %1666 = vmatprep.subr.bf16.mxu0 %v1283
    %1667 = vmatpush1.bf16.msra.mxu0 %v1282
    %1668 = vmatprep.subr.bf16.mxu0 %v1279
    %1669 = vmatpush1.bf16.msra.mxu0 %v1278
    %1670 = vmatprep.subr.bf16.mxu0 %v1275
    %1671 = vmatpush1.bf16.msra.mxu0 %v1274
    %1672 = vmatprep.subr.bf16.mxu0 %v1271
    %1673 = vmatpush1.bf16.msra.mxu0 %v1270
    %1674 = vmatprep.subr.bf16.mxu0 %v1267
    %1675 = vmatpush1.bf16.msra.mxu0 %v1266
    %1676 = vmatprep.subr.bf16.mxu0 %v1263
    %1677 = vmatpush1.bf16.msra.mxu0 %v1262
    %1678 = vmatprep.subr.bf16.mxu0 0
    %1679 = vmatpush2.bf16.msra.mxu0 0
    %1680 = vmatprep.subr.bf16.mxu0 0
    %1681 = vmatpush2.bf16.msra.mxu0 0
    %1682 = vmatprep.subr.bf16.mxu0 0
    %1683 = vmatpush2.bf16.msra.mxu0 0
    %1684 = vmatprep.subr.bf16.mxu0 0
    %1685 = vmatpush2.bf16.msra.mxu0 0
    %1686 = vmatprep.subr.bf16.mxu0 0
    %1687 = vmatpush2.bf16.msra.mxu0 0
    %1688 = vmatprep.subr.bf16.mxu0 0
    %1689 = vmatpush2.bf16.msra.mxu0 0
    %1690 = vmatprep.subr.bf16.mxu0 0
    %1691 = vmatpush2.bf16.msra.mxu0 0
    %1692 = vmatprep.subr.bf16.mxu0 0
    %1693 = vmatpush2.bf16.msra.mxu0 0
    %1694 = vmatprep.mubr.bf16.mxu0 0
    %1695 = vmatmul.mubr.bf16.gmra.mxu0 %v1427
    %v1696 = vpop.f32.mrf.mxu0
    %v1697 = vadd.f32 0.0, %v1696
    %v1698 = vpop.f32.mrf.mxu0
    %v1699 = vadd.f32 0.0, %v1698
    %v1700 = vpop.f32.mrf.mxu0
    %v1701 = vpop.f32.mrf.mxu0
    %1702 = vdwg.mxu0
    %v1703 = vadd.f32 %v1617, %v1656
    %v1704 = vadd.f32 %v1618, %v1658
    %v1705 = vadd.f32 %v1619, %v1697
    %v1706 = vadd.f32 %v1620, %v1699
    %v1707 = vtanh.pop %v1703
    %v1708 = vtanh.pop %v1704
    %v1709 = vtanh.pop %v1705
    %v1710 = vtanh.pop %v1706
    %v1711 = vmul.f32 %v1707, %v504
    %v1712 = vmul.f32 %v1708, %v505
    %v1713 = vmul.f32 %v1709, %v506
    %v1714 = vmul.f32 %v1710, %v507
    %v1715 = vadd.f32 %v1711, %v508
    %v1716 = vadd.f32 %v1712, %v509
    %v1717 = vadd.f32 %v1713, %v510
    %v1718 = vadd.f32 %v1714, %v511
    %v1719 = vmul.f32 %v1716, %v1424
    %v1720 = vmul.f32 %v1715, %v1717
    %v1721 = vadd.f32 %v1719, %v1720
    %v1722 = vtanh.pop %v1721
    %v1723 = vmul.f32 %v1718, %v1722
    %v1724 = vpack.c.bf16 %v1723, %v1723
    %v1725 = vpack.c.bf16 %v1613, %v1613
    %1726 = vmatprep.subr.bf16.mxu0 %v745
    %1727 = vmatpush1.bf16.msra.mxu0 %v744
    %1728 = vmatprep.subr.bf16.mxu0 %v741
    %1729 = vmatpush1.bf16.msra.mxu0 %v740
    %1730 = vmatprep.subr.bf16.mxu0 %v737
    %1731 = vmatpush1.bf16.msra.mxu0 %v736
    %1732 = vmatprep.subr.bf16.mxu0 %v733
    %1733 = vmatpush1.bf16.msra.mxu0 %v732
    %1734 = vmatprep.subr.bf16.mxu0 %v729
    %1735 = vmatpush1.bf16.msra.mxu0 %v728
    %1736 = vmatprep.subr.bf16.mxu0 %v725
    %1737 = vmatpush1.bf16.msra.mxu0 %v724
    %1738 = vmatprep.subr.bf16.mxu0 %v721
    %1739 = vmatpush1.bf16.msra.mxu0 %v720
    %1740 = vmatprep.subr.bf16.mxu0 %v717
    %1741 = vmatpush1.bf16.msra.mxu0 %v716
    %1742 = vmatprep.subr.bf16.mxu0 0
    %1743 = vmatpush2.bf16.msra.mxu0 0
    %1744 = vmatprep.subr.bf16.mxu0 0
    %1745 = vmatpush2.bf16.msra.mxu0 0
    %1746 = vmatprep.subr.bf16.mxu0 0
    %1747 = vmatpush2.bf16.msra.mxu0 0
    %1748 = vmatprep.subr.bf16.mxu0 0
    %1749 = vmatpush2.bf16.msra.mxu0 0
    %1750 = vmatprep.subr.bf16.mxu0 0
    %1751 = vmatpush2.bf16.msra.mxu0 0
    %1752 = vmatprep.subr.bf16.mxu0 0
    %1753 = vmatpush2.bf16.msra.mxu0 0
    %1754 = vmatprep.subr.bf16.mxu0 0
    %1755 = vmatpush2.bf16.msra.mxu0 0
    %1756 = vmatprep.subr.bf16.mxu0 0
    %1757 = vmatpush2.bf16.msra.mxu0 0
    %1758 = vmatprep.mubr.bf16.mxu0 0
    %1759 = vmatmul.mubr.bf16.gmra.mxu0 %v1725
    %v1760 = vpop.f32.mrf.mxu0
    %v1761 = vadd.f32 0.0, %v1760
    %v1762 = vpop.f32.mrf.mxu0
    %v1763 = vadd.f32 0.0, %v1762
    %v1764 = vpop.f32.mrf.mxu0
    %v1765 = vpop.f32.mrf.mxu0
    %1766 = vdwg.mxu0
    %1767 = vmatprep.subr.bf16.mxu0 %v747
    %1768 = vmatpush1.bf16.msra.mxu0 %v746
    %1769 = vmatprep.subr.bf16.mxu0 %v743
    %1770 = vmatpush1.bf16.msra.mxu0 %v742
    %1771 = vmatprep.subr.bf16.mxu0 %v739
    %1772 = vmatpush1.bf16.msra.mxu0 %v738
    %1773 = vmatprep.subr.bf16.mxu0 %v735
    %1774 = vmatpush1.bf16.msra.mxu0 %v734
    %1775 = vmatprep.subr.bf16.mxu0 %v731
    %1776 = vmatpush1.bf16.msra.mxu0 %v730
    %1777 = vmatprep.subr.bf16.mxu0 %v727
    %1778 = vmatpush1.bf16.msra.mxu0 %v726
    %1779 = vmatprep.subr.bf16.mxu0 %v723
    %1780 = vmatpush1.bf16.msra.mxu0 %v722
    %1781 = vmatprep.subr.bf16.mxu0 %v719
    %1782 = vmatpush1.bf16.msra.mxu0 %v718
    %1783 = vmatprep.subr.bf16.mxu0 0
    %1784 = vmatpush2.bf16.msra.mxu0 0
    %1785 = vmatprep.subr.bf16.mxu0 0
    %1786 = vmatpush2.bf16.msra.mxu0 0
    %1787 = vmatprep.subr.bf16.mxu0 0
    %1788 = vmatpush2.bf16.msra.mxu0 0
    %1789 = vmatprep.subr.bf16.mxu0 0
    %1790 = vmatpush2.bf16.msra.mxu0 0
    %1791 = vmatprep.subr.bf16.mxu0 0
    %1792 = vmatpush2.bf16.msra.mxu0 0
    %1793 = vmatprep.subr.bf16.mxu0 0
    %1794 = vmatpush2.bf16.msra.mxu0 0
    %1795 = vmatprep.subr.bf16.mxu0 0
    %1796 = vmatpush2.bf16.msra.mxu0 0
    %1797 = vmatprep.subr.bf16.mxu0 0
    %1798 = vmatpush2.bf16.msra.mxu0 0
    %1799 = vmatprep.mubr.bf16.mxu0 0
    %1800 = vmatmul.mubr.bf16.gmra.mxu0 %v1725
    %v1801 = vpop.f32.mrf.mxu0
    %v1802 = vadd.f32 0.0, %v1801
    %v1803 = vpop.f32.mrf.mxu0
    %v1804 = vadd.f32 0.0, %v1803
    %v1805 = vpop.f32.mrf.mxu0
    %v1806 = vpop.f32.mrf.mxu0
    %1807 = vdwg.mxu0
    %1808 = vmatprep.subr.bf16.mxu0 %v987
    %1809 = vmatpush1.bf16.msra.mxu0 %v986
    %1810 = vmatprep.subr.bf16.mxu0 %v983
    %1811 = vmatpush1.bf16.msra.mxu0 %v982
    %1812 = vmatprep.subr.bf16.mxu0 %v979
    %1813 = vmatpush1.bf16.msra.mxu0 %v978
    %1814 = vmatprep.subr.bf16.mxu0 %v975
    %1815 = vmatpush1.bf16.msra.mxu0 %v974
    %1816 = vmatprep.subr.bf16.mxu0 %v971
    %1817 = vmatpush1.bf16.msra.mxu0 %v970
    %1818 = vmatprep.subr.bf16.mxu0 %v967
    %1819 = vmatpush1.bf16.msra.mxu0 %v966
    %1820 = vmatprep.subr.bf16.mxu0 %v963
    %1821 = vmatpush1.bf16.msra.mxu0 %v962
    %1822 = vmatprep.subr.bf16.mxu0 %v959
    %1823 = vmatpush1.bf16.msra.mxu0 %v958
    %1824 = vmatprep.subr.bf16.mxu0 0
    %1825 = vmatpush2.bf16.msra.mxu0 0
    %1826 = vmatprep.subr.bf16.mxu0 0
    %1827 = vmatpush2.bf16.msra.mxu0 0
    %1828 = vmatprep.subr.bf16.mxu0 0
    %1829 = vmatpush2.bf16.msra.mxu0 0
    %1830 = vmatprep.subr.bf16.mxu0 0
    %1831 = vmatpush2.bf16.msra.mxu0 0
    %1832 = vmatprep.subr.bf16.mxu0 0
    %1833 = vmatpush2.bf16.msra.mxu0 0
    %1834 = vmatprep.subr.bf16.mxu0 0
    %1835 = vmatpush2.bf16.msra.mxu0 0
    %1836 = vmatprep.subr.bf16.mxu0 0
    %1837 = vmatpush2.bf16.msra.mxu0 0
    %1838 = vmatprep.subr.bf16.mxu0 0
    %1839 = vmatpush2.bf16.msra.mxu0 0
    %1840 = vmatprep.mubr.bf16.mxu0 0
    %1841 = vmatmul.mubr.bf16.gmra.mxu0 %v1724
    %v1842 = vpop.f32.mrf.mxu0
    %v1843 = vadd.f32 %v1761, %v1842
    %v1844 = vpop.f32.mrf.mxu0
    %v1845 = vadd.f32 %v1763, %v1844
    %v1846 = vpop.f32.mrf.mxu0
    %v1847 = vpop.f32.mrf.mxu0
    %1848 = vdwg.mxu0
    %1849 = vmatprep.subr.bf16.mxu0 %v989
    %1850 = vmatpush1.bf16.msra.mxu0 %v988
    %1851 = vmatprep.subr.bf16.mxu0 %v985
    %1852 = vmatpush1.bf16.msra.mxu0 %v984
    %1853 = vmatprep.subr.bf16.mxu0 %v981
    %1854 = vmatpush1.bf16.msra.mxu0 %v980
    %1855 = vmatprep.subr.bf16.mxu0 %v977
    %1856 = vmatpush1.bf16.msra.mxu0 %v976
    %1857 = vmatprep.subr.bf16.mxu0 %v973
    %1858 = vmatpush1.bf16.msra.mxu0 %v972
    %1859 = vmatprep.subr.bf16.mxu0 %v969
    %1860 = vmatpush1.bf16.msra.mxu0 %v968
    %1861 = vmatprep.subr.bf16.mxu0 %v965
    %1862 = vmatpush1.bf16.msra.mxu0 %v964
    %1863 = vmatprep.subr.bf16.mxu0 %v961
    %1864 = vmatpush1.bf16.msra.mxu0 %v960
    %1865 = vmatprep.subr.bf16.mxu0 0
    %1866 = vmatpush2.bf16.msra.mxu0 0
    %1867 = vmatprep.subr.bf16.mxu0 0
    %1868 = vmatpush2.bf16.msra.mxu0 0
    %1869 = vmatprep.subr.bf16.mxu0 0
    %1870 = vmatpush2.bf16.msra.mxu0 0
    %1871 = vmatprep.subr.bf16.mxu0 0
    %1872 = vmatpush2.bf16.msra.mxu0 0
    %1873 = vmatprep.subr.bf16.mxu0 0
    %1874 = vmatpush2.bf16.msra.mxu0 0
    %1875 = vmatprep.subr.bf16.mxu0 0
    %1876 = vmatpush2.bf16.msra.mxu0 0
    %1877 = vmatprep.subr.bf16.mxu0 0
    %1878 = vmatpush2.bf16.msra.mxu0 0
    %1879 = vmatprep.subr.bf16.mxu0 0
    %1880 = vmatpush2.bf16.msra.mxu0 0
    %1881 = vmatprep.mubr.bf16.mxu0 0
    %1882 = vmatmul.mubr.bf16.gmra.mxu0 %v1724
    %v1883 = vpop.f32.mrf.mxu0
    %v1884 = vadd.f32 %v1802, %v1883
    %v1885 = vpop.f32.mrf.mxu0
    %v1886 = vadd.f32 %v1804, %v1885
    %v1887 = vpop.f32.mrf.mxu0
    %v1888 = vpop.f32.mrf.mxu0
    %1889 = vdwg.mxu0
    %v1890 = vadd.f32 %v1843, %v517
    %v1891 = vadd.f32 %v1845, %v521
    %v1892 = vadd.f32 %v1884, %v525
    %v1893 = vadd.f32 %v1886, %v529
    %v1894 = vtanh.pop %v1890
    %v1895 = vtanh.pop %v1891
    %v1896 = vtanh.pop %v1892
    %v1897 = vtanh.pop %v1893
    %v1898 = vmul.f32 %v1894, %v504
    %v1899 = vmul.f32 %v1895, %v505
    %v1900 = vmul.f32 %v1896, %v506
    %v1901 = vmul.f32 %v1897, %v507
    %v1902 = vadd.f32 %v1898, %v508
    %v1903 = vadd.f32 %v1899, %v509
    %v1904 = vadd.f32 %v1900, %v510
    %v1905 = vadd.f32 %v1901, %v511
    %v1906 = vmul.f32 %v1903, %v1611
    %v1907 = vmul.f32 %v1902, %v1904
    %v1908 = vadd.f32 %v1906, %v1907
    %v1909 = vtanh.pop %v1908
    %v1910 = vmul.f32 %v1905, %v1909
    %s1911 = smul.u32 3, 4
    %s1912 = smul.addr %s1911, 8
    %s1913 = scalar_lea.vmem [#allocation2], %s1912
    %v1914 = vld [vmem:[%s1913] sm:$0xff]
    %v1915 = vld [vmem:[%s1913 + $0x8] sm:$0xff]
    %v1916 = vld [vmem:[%s1913 + $0x10] sm:$0xff]
    %v1917 = vld [vmem:[%s1913 + $0x18] sm:$0xff]
    %1918 = vmatprep.subr.bf16.mxu0 %v1289
    %1919 = vmatpush1.bf16.msra.mxu0 %v1288
    %1920 = vmatprep.subr.bf16.mxu0 %v1285
    %1921 = vmatpush1.bf16.msra.mxu0 %v1284
    %1922 = vmatprep.subr.bf16.mxu0 %v1281
    %1923 = vmatpush1.bf16.msra.mxu0 %v1280
    %1924 = vmatprep.subr.bf16.mxu0 %v1277
    %1925 = vmatpush1.bf16.msra.mxu0 %v1276
    %1926 = vmatprep.subr.bf16.mxu0 %v1273
    %1927 = vmatpush1.bf16.msra.mxu0 %v1272
    %1928 = vmatprep.subr.bf16.mxu0 %v1269
    %1929 = vmatpush1.bf16.msra.mxu0 %v1268
    %1930 = vmatprep.subr.bf16.mxu0 %v1265
    %1931 = vmatpush1.bf16.msra.mxu0 %v1264
    %1932 = vmatprep.subr.bf16.mxu0 %v1261
    %1933 = vmatpush1.bf16.msra.mxu0 %v1260
    %1934 = vmatprep.subr.bf16.mxu0 0
    %1935 = vmatpush2.bf16.msra.mxu0 0
    %1936 = vmatprep.subr.bf16.mxu0 0
    %1937 = vmatpush2.bf16.msra.mxu0 0
    %1938 = vmatprep.subr.bf16.mxu0 0
    %1939 = vmatpush2.bf16.msra.mxu0 0
    %1940 = vmatprep.subr.bf16.mxu0 0
    %1941 = vmatpush2.bf16.msra.mxu0 0
    %1942 = vmatprep.subr.bf16.mxu0 0
    %1943 = vmatpush2.bf16.msra.mxu0 0
    %1944 = vmatprep.subr.bf16.mxu0 0
    %1945 = vmatpush2.bf16.msra.mxu0 0
    %1946 = vmatprep.subr.bf16.mxu0 0
    %1947 = vmatpush2.bf16.msra.mxu0 0
    %1948 = vmatprep.subr.bf16.mxu0 0
    %1949 = vmatpush2.bf16.msra.mxu0 0
    %1950 = vmatprep.mubr.bf16.mxu0 0
    %1951 = vmatmul.mubr.bf16.gmra.mxu0 %v1724
    %v1952 = vpop.f32.mrf.mxu0
    %v1953 = vadd.f32 0.0, %v1952
    %v1954 = vpop.f32.mrf.mxu0
    %v1955 = vadd.f32 0.0, %v1954
    %v1956 = vpop.f32.mrf.mxu0
    %v1957 = vpop.f32.mrf.mxu0
    %1958 = vdwg.mxu0
    %1959 = vmatprep.subr.bf16.mxu0 %v1291
    %1960 = vmatpush1.bf16.msra.mxu0 %v1290
    %1961 = vmatprep.subr.bf16.mxu0 %v1287
    %1962 = vmatpush1.bf16.msra.mxu0 %v1286
    %1963 = vmatprep.subr.bf16.mxu0 %v1283
    %1964 = vmatpush1.bf16.msra.mxu0 %v1282
    %1965 = vmatprep.subr.bf16.mxu0 %v1279
    %1966 = vmatpush1.bf16.msra.mxu0 %v1278
    %1967 = vmatprep.subr.bf16.mxu0 %v1275
    %1968 = vmatpush1.bf16.msra.mxu0 %v1274
    %1969 = vmatprep.subr.bf16.mxu0 %v1271
    %1970 = vmatpush1.bf16.msra.mxu0 %v1270
    %1971 = vmatprep.subr.bf16.mxu0 %v1267
    %1972 = vmatpush1.bf16.msra.mxu0 %v1266
    %1973 = vmatprep.subr.bf16.mxu0 %v1263
    %1974 = vmatpush1.bf16.msra.mxu0 %v1262
    %1975 = vmatprep.subr.bf16.mxu0 0
    %1976 = vmatpush2.bf16.msra.mxu0 0
    %1977 = vmatprep.subr.bf16.mxu0 0
    %1978 = vmatpush2.bf16.msra.mxu0 0
    %1979 = vmatprep.subr.bf16.mxu0 0
    %1980 = vmatpush2.bf16.msra.mxu0 0
    %1981 = vmatprep.subr.bf16.mxu0 0
    %1982 = vmatpush2.bf16.msra.mxu0 0
    %1983 = vmatprep.subr.bf16.mxu0 0
    %1984 = vmatpush2.bf16.msra.mxu0 0
    %1985 = vmatprep.subr.bf16.mxu0 0
    %1986 = vmatpush2.bf16.msra.mxu0 0
    %1987 = vmatprep.subr.bf16.mxu0 0
    %1988 = vmatpush2.bf16.msra.mxu0 0
    %1989 = vmatprep.subr.bf16.mxu0 0
    %1990 = vmatpush2.bf16.msra.mxu0 0
    %1991 = vmatprep.mubr.bf16.mxu0 0
    %1992 = vmatmul.mubr.bf16.gmra.mxu0 %v1724
    %v1993 = vpop.f32.mrf.mxu0
    %v1994 = vadd.f32 0.0, %v1993
    %v1995 = vpop.f32.mrf.mxu0
    %v1996 = vadd.f32 0.0, %v1995
    %v1997 = vpop.f32.mrf.mxu0
    %v1998 = vpop.f32.mrf.mxu0
    %1999 = vdwg.mxu0
    %v2000 = vadd.f32 %v1914, %v1953
    %v2001 = vadd.f32 %v1915, %v1955
    %v2002 = vadd.f32 %v1916, %v1994
    %v2003 = vadd.f32 %v1917, %v1996
    %v2004 = vtanh.pop %v2000
    %v2005 = vtanh.pop %v2001
    %v2006 = vtanh.pop %v2002
    %v2007 = vtanh.pop %v2003
    %v2008 = vmul.f32 %v2004, %v504
    %v2009 = vmul.f32 %v2005, %v505
    %v2010 = vmul.f32 %v2006, %v506
    %v2011 = vmul.f32 %v2007, %v507
    %v2012 = vadd.f32 %v2008, %v508
    %v2013 = vadd.f32 %v2009, %v509
    %v2014 = vadd.f32 %v2010, %v510
    %v2015 = vadd.f32 %v2011, %v511
    %v2016 = vmul.f32 %v2013, %v1721
    %v2017 = vmul.f32 %v2012, %v2014
    %v2018 = vadd.f32 %v2016, %v2017
    %v2019 = vtanh.pop %v2018
    %v2020 = vmul.f32 %v2015, %v2019
    %v2021 = vpack.c.bf16 %v2020, %v2020
    %v2022 = vpack.c.bf16 %v1910, %v1910
    %2023 = vmatprep.subr.bf16.mxu0 %v745
    %2024 = vmatpush1.bf16.msra.mxu0 %v744
    %2025 = vmatprep.subr.bf16.mxu0 %v741
    %2026 = vmatpush1.bf16.msra.mxu0 %v740
    %2027 = vmatprep.subr.bf16.mxu0 %v737
    %2028 = vmatpush1.bf16.msra.mxu0 %v736
    %2029 = vmatprep.subr.bf16.mxu0 %v733
    %2030 = vmatpush1.bf16.msra.mxu0 %v732
    %2031 = vmatprep.subr.bf16.mxu0 %v729
    %2032 = vmatpush1.bf16.msra.mxu0 %v728
    %2033 = vmatprep.subr.bf16.mxu0 %v725
    %2034 = vmatpush1.bf16.msra.mxu0 %v724
    %2035 = vmatprep.subr.bf16.mxu0 %v721
    %2036 = vmatpush1.bf16.msra.mxu0 %v720
    %2037 = vmatprep.subr.bf16.mxu0 %v717
    %2038 = vmatpush1.bf16.msra.mxu0 %v716
    %2039 = vmatprep.subr.bf16.mxu0 0
    %2040 = vmatpush2.bf16.msra.mxu0 0
    %2041 = vmatprep.subr.bf16.mxu0 0
    %2042 = vmatpush2.bf16.msra.mxu0 0
    %2043 = vmatprep.subr.bf16.mxu0 0
    %2044 = vmatpush2.bf16.msra.mxu0 0
    %2045 = vmatprep.subr.bf16.mxu0 0
    %2046 = vmatpush2.bf16.msra.mxu0 0
    %2047 = vmatprep.subr.bf16.mxu0 0
    %2048 = vmatpush2.bf16.msra.mxu0 0
    %2049 = vmatprep.subr.bf16.mxu0 0
    %2050 = vmatpush2.bf16.msra.mxu0 0
    %2051 = vmatprep.subr.bf16.mxu0 0
    %2052 = vmatpush2.bf16.msra.mxu0 0
    %2053 = vmatprep.subr.bf16.mxu0 0
    %2054 = vmatpush2.bf16.msra.mxu0 0
    %2055 = vmatprep.mubr.bf16.mxu0 0
    %2056 = vmatmul.mubr.bf16.gmra.mxu0 %v2022
    %v2057 = vpop.f32.mrf.mxu0
    %v2058 = vadd.f32 0.0, %v2057
    %v2059 = vpop.f32.mrf.mxu0
    %v2060 = vadd.f32 0.0, %v2059
    %v2061 = vpop.f32.mrf.mxu0
    %v2062 = vpop.f32.mrf.mxu0
    %2063 = vdwg.mxu0
    %2064 = vmatprep.subr.bf16.mxu0 %v747
    %2065 = vmatpush1.bf16.msra.mxu0 %v746
    %2066 = vmatprep.subr.bf16.mxu0 %v743
    %2067 = vmatpush1.bf16.msra.mxu0 %v742
    %2068 = vmatprep.subr.bf16.mxu0 %v739
    %2069 = vmatpush1.bf16.msra.mxu0 %v738
    %2070 = vmatprep.subr.bf16.mxu0 %v735
    %2071 = vmatpush1.bf16.msra.mxu0 %v734
    %2072 = vmatprep.subr.bf16.mxu0 %v731
    %2073 = vmatpush1.bf16.msra.mxu0 %v730
    %2074 = vmatprep.subr.bf16.mxu0 %v727
    %2075 = vmatpush1.bf16.msra.mxu0 %v726
    %2076 = vmatprep.subr.bf16.mxu0 %v723
    %2077 = vmatpush1.bf16.msra.mxu0 %v722
    %2078 = vmatprep.subr.bf16.mxu0 %v719
    %2079 = vmatpush1.bf16.msra.mxu0 %v718
    %2080 = vmatprep.subr.bf16.mxu0 0
    %2081 = vmatpush2.bf16.msra.mxu0 0
    %2082 = vmatprep.subr.bf16.mxu0 0
    %2083 = vmatpush2.bf16.msra.mxu0 0
    %2084 = vmatprep.subr.bf16.mxu0 0
    %2085 = vmatpush2.bf16.msra.mxu0 0
    %2086 = vmatprep.subr.bf16.mxu0 0
    %2087 = vmatpush2.bf16.msra.mxu0 0
    %2088 = vmatprep.subr.bf16.mxu0 0
    %2089 = vmatpush2.bf16.msra.mxu0 0
    %2090 = vmatprep.subr.bf16.mxu0 0
    %2091 = vmatpush2.bf16.msra.mxu0 0
    %2092 = vmatprep.subr.bf16.mxu0 0
    %2093 = vmatpush2.bf16.msra.mxu0 0
    %2094 = vmatprep.subr.bf16.mxu0 0
    %2095 = vmatpush2.bf16.msra.mxu0 0
    %2096 = vmatprep.mubr.bf16.mxu0 0
    %2097 = vmatmul.mubr.bf16.gmra.mxu0 %v2022
    %v2098 = vpop.f32.mrf.mxu0
    %v2099 = vadd.f32 0.0, %v2098
    %v2100 = vpop.f32.mrf.mxu0
    %v2101 = vadd.f32 0.0, %v2100
    %v2102 = vpop.f32.mrf.mxu0
    %v2103 = vpop.f32.mrf.mxu0
    %2104 = vdwg.mxu0
    %2105 = vmatprep.subr.bf16.mxu0 %v987
    %2106 = vmatpush1.bf16.msra.mxu0 %v986
    %2107 = vmatprep.subr.bf16.mxu0 %v983
    %2108 = vmatpush1.bf16.msra.mxu0 %v982
    %2109 = vmatprep.subr.bf16.mxu0 %v979
    %2110 = vmatpush1.bf16.msra.mxu0 %v978
    %2111 = vmatprep.subr.bf16.mxu0 %v975
    %2112 = vmatpush1.bf16.msra.mxu0 %v974
    %2113 = vmatprep.subr.bf16.mxu0 %v971
    %2114 = vmatpush1.bf16.msra.mxu0 %v970
    %2115 = vmatprep.subr.bf16.mxu0 %v967
    %2116 = vmatpush1.bf16.msra.mxu0 %v966
    %2117 = vmatprep.subr.bf16.mxu0 %v963
    %2118 = vmatpush1.bf16.msra.mxu0 %v962
    %2119 = vmatprep.subr.bf16.mxu0 %v959
    %2120 = vmatpush1.bf16.msra.mxu0 %v958
    %2121 = vmatprep.subr.bf16.mxu0 0
    %2122 = vmatpush2.bf16.msra.mxu0 0
    %2123 = vmatprep.subr.bf16.mxu0 0
    %2124 = vmatpush2.bf16.msra.mxu0 0
    %2125 = vmatprep.subr.bf16.mxu0 0
    %2126 = vmatpush2.bf16.msra.mxu0 0
    %2127 = vmatprep.subr.bf16.mxu0 0
    %2128 = vmatpush2.bf16.msra.mxu0 0
    %2129 = vmatprep.subr.bf16.mxu0 0
    %2130 = vmatpush2.bf16.msra.mxu0 0
    %2131 = vmatprep.subr.bf16.mxu0 0
    %2132 = vmatpush2.bf16.msra.mxu0 0
    %2133 = vmatprep.subr.bf16.mxu0 0
    %2134 = vmatpush2.bf16.msra.mxu0 0
    %2135 = vmatprep.subr.bf16.mxu0 0
    %2136 = vmatpush2.bf16.msra.mxu0 0
    %2137 = vmatprep.mubr.bf16.mxu0 0
    %2138 = vmatmul.mubr.bf16.gmra.mxu0 %v2021
    %v2139 = vpop.f32.mrf.mxu0
    %v2140 = vadd.f32 %v2058, %v2139
    %v2141 = vpop.f32.mrf.mxu0
    %v2142 = vadd.f32 %v2060, %v2141
    %v2143 = vpop.f32.mrf.mxu0
    %v2144 = vpop.f32.mrf.mxu0
    %2145 = vdwg.mxu0
    %2146 = vmatprep.subr.bf16.mxu0 %v989
    %2147 = vmatpush1.bf16.msra.mxu0 %v988
    %2148 = vmatprep.subr.bf16.mxu0 %v985
    %2149 = vmatpush1.bf16.msra.mxu0 %v984
    %2150 = vmatprep.subr.bf16.mxu0 %v981
    %2151 = vmatpush1.bf16.msra.mxu0 %v980
    %2152 = vmatprep.subr.bf16.mxu0 %v977
    %2153 = vmatpush1.bf16.msra.mxu0 %v976
    %2154 = vmatprep.subr.bf16.mxu0 %v973
    %2155 = vmatpush1.bf16.msra.mxu0 %v972
    %2156 = vmatprep.subr.bf16.mxu0 %v969
    %2157 = vmatpush1.bf16.msra.mxu0 %v968
    %2158 = vmatprep.subr.bf16.mxu0 %v965
    %2159 = vmatpush1.bf16.msra.mxu0 %v964
    %2160 = vmatprep.subr.bf16.mxu0 %v961
    %2161 = vmatpush1.bf16.msra.mxu0 %v960
    %2162 = vmatprep.subr.bf16.mxu0 0
    %2163 = vmatpush2.bf16.msra.mxu0 0
    %2164 = vmatprep.subr.bf16.mxu0 0
    %2165 = vmatpush2.bf16.msra.mxu0 0
    %2166 = vmatprep.subr.bf16.mxu0 0
    %2167 = vmatpush2.bf16.msra.mxu0 0
    %2168 = vmatprep.subr.bf16.mxu0 0
    %2169 = vmatpush2.bf16.msra.mxu0 0
    %2170 = vmatprep.subr.bf16.mxu0 0
    %2171 = vmatpush2.bf16.msra.mxu0 0
    %2172 = vmatprep.subr.bf16.mxu0 0
    %2173 = vmatpush2.bf16.msra.mxu0 0
    %2174 = vmatprep.subr.bf16.mxu0 0
    %2175 = vmatpush2.bf16.msra.mxu0 0
    %2176 = vmatprep.subr.bf16.mxu0 0
    %2177 = vmatpush2.bf16.msra.mxu0 0
    %2178 = vmatprep.mubr.bf16.mxu0 0
    %2179 = vmatmul.mubr.bf16.gmra.mxu0 %v2021
    %v2180 = vpop.f32.mrf.mxu0
    %v2181 = vadd.f32 %v2099, %v2180
    %v2182 = vpop.f32.mrf.mxu0
    %v2183 = vadd.f32 %v2101, %v2182
    %v2184 = vpop.f32.mrf.mxu0
    %v2185 = vpop.f32.mrf.mxu0
    %2186 = vdwg.mxu0
    %v2187 = vadd.f32 %v2140, %v517
    %v2188 = vadd.f32 %v2142, %v521
    %v2189 = vadd.f32 %v2181, %v525
    %v2190 = vadd.f32 %v2183, %v529
    %v2191 = vtanh.pop %v2187
    %v2192 = vtanh.pop %v2188
    %v2193 = vtanh.pop %v2189
    %v2194 = vtanh.pop %v2190
    %v2195 = vmul.f32 %v2191, %v504
    %v2196 = vmul.f32 %v2192, %v505
    %v2197 = vmul.f32 %v2193, %v506
    %v2198 = vmul.f32 %v2194, %v507
    %v2199 = vadd.f32 %v2195, %v508
    %v2200 = vadd.f32 %v2196, %v509
    %v2201 = vadd.f32 %v2197, %v510
    %v2202 = vadd.f32 %v2198, %v511
    %v2203 = vmul.f32 %v2200, %v1908
    %v2204 = vmul.f32 %v2199, %v2201
    %v2205 = vadd.f32 %v2203, %v2204
    %v2206 = vtanh.pop %v2205
    %v2207 = vmul.f32 %v2202, %v2206
    %s2208 = smul.u32 4, 4
    %s2209 = smul.addr %s2208, 8
    %s2210 = scalar_lea.vmem [#allocation2], %s2209
    %v2211 = vld [vmem:[%s2210] sm:$0xff]
    %v2212 = vld [vmem:[%s2210 + $0x8] sm:$0xff]
    %v2213 = vld [vmem:[%s2210 + $0x10] sm:$0xff]
    %v2214 = vld [vmem:[%s2210 + $0x18] sm:$0xff]
    %2215 = vmatprep.subr.bf16.mxu0 %v1289
    %2216 = vmatpush1.bf16.msra.mxu0 %v1288
    %2217 = vmatprep.subr.bf16.mxu0 %v1285
    %2218 = vmatpush1.bf16.msra.mxu0 %v1284
    %2219 = vmatprep.subr.bf16.mxu0 %v1281
    %2220 = vmatpush1.bf16.msra.mxu0 %v1280
    %2221 = vmatprep.subr.bf16.mxu0 %v1277
    %2222 = vmatpush1.bf16.msra.mxu0 %v1276
    %2223 = vmatprep.subr.bf16.mxu0 %v1273
    %2224 = vmatpush1.bf16.msra.mxu0 %v1272
    %2225 = vmatprep.subr.bf16.mxu0 %v1269
    %2226 = vmatpush1.bf16.msra.mxu0 %v1268
    %2227 = vmatprep.subr.bf16.mxu0 %v1265
    %2228 = vmatpush1.bf16.msra.mxu0 %v1264
    %2229 = vmatprep.subr.bf16.mxu0 %v1261
    %2230 = vmatpush1.bf16.msra.mxu0 %v1260
    %2231 = vmatprep.subr.bf16.mxu0 0
    %2232 = vmatpush2.bf16.msra.mxu0 0
    %2233 = vmatprep.subr.bf16.mxu0 0
    %2234 = vmatpush2.bf16.msra.mxu0 0
    %2235 = vmatprep.subr.bf16.mxu0 0
    %2236 = vmatpush2.bf16.msra.mxu0 0
    %2237 = vmatprep.subr.bf16.mxu0 0
    %2238 = vmatpush2.bf16.msra.mxu0 0
    %2239 = vmatprep.subr.bf16.mxu0 0
    %2240 = vmatpush2.bf16.msra.mxu0 0
    %2241 = vmatprep.subr.bf16.mxu0 0
    %2242 = vmatpush2.bf16.msra.mxu0 0
    %2243 = vmatprep.subr.bf16.mxu0 0
    %2244 = vmatpush2.bf16.msra.mxu0 0
    %2245 = vmatprep.subr.bf16.mxu0 0
    %2246 = vmatpush2.bf16.msra.mxu0 0
    %2247 = vmatprep.mubr.bf16.mxu0 0
    %2248 = vmatmul.mubr.bf16.gmra.mxu0 %v2021
    %v2249 = vpop.f32.mrf.mxu0
    %v2250 = vadd.f32 0.0, %v2249
    %v2251 = vpop.f32.mrf.mxu0
    %v2252 = vadd.f32 0.0, %v2251
    %v2253 = vpop.f32.mrf.mxu0
    %v2254 = vpop.f32.mrf.mxu0
    %2255 = vdwg.mxu0
    %2256 = vmatprep.subr.bf16.mxu0 %v1291
    %2257 = vmatpush1.bf16.msra.mxu0 %v1290
    %2258 = vmatprep.subr.bf16.mxu0 %v1287
    %2259 = vmatpush1.bf16.msra.mxu0 %v1286
    %2260 = vmatprep.subr.bf16.mxu0 %v1283
    %2261 = vmatpush1.bf16.msra.mxu0 %v1282
    %2262 = vmatprep.subr.bf16.mxu0 %v1279
    %2263 = vmatpush1.bf16.msra.mxu0 %v1278
    %2264 = vmatprep.subr.bf16.mxu0 %v1275
    %2265 = vmatpush1.bf16.msra.mxu0 %v1274
    %2266 = vmatprep.subr.bf16.mxu0 %v1271
    %2267 = vmatpush1.bf16.msra.mxu0 %v1270
    %2268 = vmatprep.subr.bf16.mxu0 %v1267
    %2269 = vmatpush1.bf16.msra.mxu0 %v1266
    %2270 = vmatprep.subr.bf16.mxu0 %v1263
    %2271 = vmatpush1.bf16.msra.mxu0 %v1262
    %2272 = vmatprep.subr.bf16.mxu0 0
    %2273 = vmatpush2.bf16.msra.mxu0 0
    %2274 = vmatprep.subr.bf16.mxu0 0
    %2275 = vmatpush2.bf16.msra.mxu0 0
    %2276 = vmatprep.subr.bf16.mxu0 0
    %2277 = vmatpush2.bf16.msra.mxu0 0
    %2278 = vmatprep.subr.bf16.mxu0 0
    %2279 = vmatpush2.bf16.msra.mxu0 0
    %2280 = vmatprep.subr.bf16.mxu0 0
    %2281 = vmatpush2.bf16.msra.mxu0 0
    %2282 = vmatprep.subr.bf16.mxu0 0
    %2283 = vmatpush2.bf16.msra.mxu0 0
    %2284 = vmatprep.subr.bf16.mxu0 0
    %2285 = vmatpush2.bf16.msra.mxu0 0
    %2286 = vmatprep.subr.bf16.mxu0 0
    %2287 = vmatpush2.bf16.msra.mxu0 0
    %2288 = vmatprep.mubr.bf16.mxu0 0
    %2289 = vmatmul.mubr.bf16.gmra.mxu0 %v2021
    %v2290 = vpop.f32.mrf.mxu0
    %v2291 = vadd.f32 0.0, %v2290
    %v2292 = vpop.f32.mrf.mxu0
    %v2293 = vadd.f32 0.0, %v2292
    %v2294 = vpop.f32.mrf.mxu0
    %v2295 = vpop.f32.mrf.mxu0
    %2296 = vdwg.mxu0
    %v2297 = vadd.f32 %v2211, %v2250
    %v2298 = vadd.f32 %v2212, %v2252
    %v2299 = vadd.f32 %v2213, %v2291
    %v2300 = vadd.f32 %v2214, %v2293
    %v2301 = vtanh.pop %v2297
    %v2302 = vtanh.pop %v2298
    %v2303 = vtanh.pop %v2299
    %v2304 = vtanh.pop %v2300
    %v2305 = vmul.f32 %v2301, %v504
    %v2306 = vmul.f32 %v2302, %v505
    %v2307 = vmul.f32 %v2303, %v506
    %v2308 = vmul.f32 %v2304, %v507
    %v2309 = vadd.f32 %v2305, %v508
    %v2310 = vadd.f32 %v2306, %v509
    %v2311 = vadd.f32 %v2307, %v510
    %v2312 = vadd.f32 %v2308, %v511
    %v2313 = vmul.f32 %v2310, %v2018
    %v2314 = vmul.f32 %v2309, %v2311
    %v2315 = vadd.f32 %v2313, %v2314
    %v2316 = vtanh.pop %v2315
    %v2317 = vmul.f32 %v2312, %v2316
    %v2318 = vpack.c.bf16 %v2317, %v2317
    %v2319 = vpack.c.bf16 %v2207, %v2207
    %2320 = vmatprep.subr.bf16.mxu0 %v745
    %2321 = vmatpush1.bf16.msra.mxu0 %v744
    %2322 = vmatprep.subr.bf16.mxu0 %v741
    %2323 = vmatpush1.bf16.msra.mxu0 %v740
    %2324 = vmatprep.subr.bf16.mxu0 %v737
    %2325 = vmatpush1.bf16.msra.mxu0 %v736
    %2326 = vmatprep.subr.bf16.mxu0 %v733
    %2327 = vmatpush1.bf16.msra.mxu0 %v732
    %2328 = vmatprep.subr.bf16.mxu0 %v729
    %2329 = vmatpush1.bf16.msra.mxu0 %v728
    %2330 = vmatprep.subr.bf16.mxu0 %v725
    %2331 = vmatpush1.bf16.msra.mxu0 %v724
    %2332 = vmatprep.subr.bf16.mxu0 %v721
    %2333 = vmatpush1.bf16.msra.mxu0 %v720
    %2334 = vmatprep.subr.bf16.mxu0 %v717
    %2335 = vmatpush1.bf16.msra.mxu0 %v716
    %2336 = vmatprep.subr.bf16.mxu0 0
    %2337 = vmatpush2.bf16.msra.mxu0 0
    %2338 = vmatprep.subr.bf16.mxu0 0
    %2339 = vmatpush2.bf16.msra.mxu0 0
    %2340 = vmatprep.subr.bf16.mxu0 0
    %2341 = vmatpush2.bf16.msra.mxu0 0
    %2342 = vmatprep.subr.bf16.mxu0 0
    %2343 = vmatpush2.bf16.msra.mxu0 0
    %2344 = vmatprep.subr.bf16.mxu0 0
    %2345 = vmatpush2.bf16.msra.mxu0 0
    %2346 = vmatprep.subr.bf16.mxu0 0
    %2347 = vmatpush2.bf16.msra.mxu0 0
    %2348 = vmatprep.subr.bf16.mxu0 0
    %2349 = vmatpush2.bf16.msra.mxu0 0
    %2350 = vmatprep.subr.bf16.mxu0 0
    %2351 = vmatpush2.bf16.msra.mxu0 0
    %2352 = vmatprep.mubr.bf16.mxu0 0
    %2353 = vmatmul.mubr.bf16.gmra.mxu0 %v2319
    %v2354 = vpop.f32.mrf.mxu0
    %v2355 = vadd.f32 0.0, %v2354
    %v2356 = vpop.f32.mrf.mxu0
    %v2357 = vadd.f32 0.0, %v2356
    %v2358 = vpop.f32.mrf.mxu0
    %v2359 = vpop.f32.mrf.mxu0
    %2360 = vdwg.mxu0
    %2361 = vmatprep.subr.bf16.mxu0 %v747
    %2362 = vmatpush1.bf16.msra.mxu0 %v746
    %2363 = vmatprep.subr.bf16.mxu0 %v743
    %2364 = vmatpush1.bf16.msra.mxu0 %v742
    %2365 = vmatprep.subr.bf16.mxu0 %v739
    %2366 = vmatpush1.bf16.msra.mxu0 %v738
    %2367 = vmatprep.subr.bf16.mxu0 %v735
    %2368 = vmatpush1.bf16.msra.mxu0 %v734
    %2369 = vmatprep.subr.bf16.mxu0 %v731
    %2370 = vmatpush1.bf16.msra.mxu0 %v730
    %2371 = vmatprep.subr.bf16.mxu0 %v727
    %2372 = vmatpush1.bf16.msra.mxu0 %v726
    %2373 = vmatprep.subr.bf16.mxu0 %v723
    %2374 = vmatpush1.bf16.msra.mxu0 %v722
    %2375 = vmatprep.subr.bf16.mxu0 %v719
    %2376 = vmatpush1.bf16.msra.mxu0 %v718
    %2377 = vmatprep.subr.bf16.mxu0 0
    %2378 = vmatpush2.bf16.msra.mxu0 0
    %2379 = vmatprep.subr.bf16.mxu0 0
    %2380 = vmatpush2.bf16.msra.mxu0 0
    %2381 = vmatprep.subr.bf16.mxu0 0
    %2382 = vmatpush2.bf16.msra.mxu0 0
    %2383 = vmatprep.subr.bf16.mxu0 0
    %2384 = vmatpush2.bf16.msra.mxu0 0
    %2385 = vmatprep.subr.bf16.mxu0 0
    %2386 = vmatpush2.bf16.msra.mxu0 0
    %2387 = vmatprep.subr.bf16.mxu0 0
    %2388 = vmatpush2.bf16.msra.mxu0 0
    %2389 = vmatprep.subr.bf16.mxu0 0
    %2390 = vmatpush2.bf16.msra.mxu0 0
    %2391 = vmatprep.subr.bf16.mxu0 0
    %2392 = vmatpush2.bf16.msra.mxu0 0
    %2393 = vmatprep.mubr.bf16.mxu0 0
    %2394 = vmatmul.mubr.bf16.gmra.mxu0 %v2319
    %v2395 = vpop.f32.mrf.mxu0
    %v2396 = vadd.f32 0.0, %v2395
    %v2397 = vpop.f32.mrf.mxu0
    %v2398 = vadd.f32 0.0, %v2397
    %v2399 = vpop.f32.mrf.mxu0
    %v2400 = vpop.f32.mrf.mxu0
    %2401 = vdwg.mxu0
    %2402 = vmatprep.subr.bf16.mxu0 %v987
    %2403 = vmatpush1.bf16.msra.mxu0 %v986
    %2404 = vmatprep.subr.bf16.mxu0 %v983
    %2405 = vmatpush1.bf16.msra.mxu0 %v982
    %2406 = vmatprep.subr.bf16.mxu0 %v979
    %2407 = vmatpush1.bf16.msra.mxu0 %v978
    %2408 = vmatprep.subr.bf16.mxu0 %v975
    %2409 = vmatpush1.bf16.msra.mxu0 %v974
    %2410 = vmatprep.subr.bf16.mxu0 %v971
    %2411 = vmatpush1.bf16.msra.mxu0 %v970
    %2412 = vmatprep.subr.bf16.mxu0 %v967
    %2413 = vmatpush1.bf16.msra.mxu0 %v966
    %2414 = vmatprep.subr.bf16.mxu0 %v963
    %2415 = vmatpush1.bf16.msra.mxu0 %v962
    %2416 = vmatprep.subr.bf16.mxu0 %v959
    %2417 = vmatpush1.bf16.msra.mxu0 %v958
    %2418 = vmatprep.subr.bf16.mxu0 0
    %2419 = vmatpush2.bf16.msra.mxu0 0
    %2420 = vmatprep.subr.bf16.mxu0 0
    %2421 = vmatpush2.bf16.msra.mxu0 0
    %2422 = vmatprep.subr.bf16.mxu0 0
    %2423 = vmatpush2.bf16.msra.mxu0 0
    %2424 = vmatprep.subr.bf16.mxu0 0
    %2425 = vmatpush2.bf16.msra.mxu0 0
    %2426 = vmatprep.subr.bf16.mxu0 0
    %2427 = vmatpush2.bf16.msra.mxu0 0
    %2428 = vmatprep.subr.bf16.mxu0 0
    %2429 = vmatpush2.bf16.msra.mxu0 0
    %2430 = vmatprep.subr.bf16.mxu0 0
    %2431 = vmatpush2.bf16.msra.mxu0 0
    %2432 = vmatprep.subr.bf16.mxu0 0
    %2433 = vmatpush2.bf16.msra.mxu0 0
    %2434 = vmatprep.mubr.bf16.mxu0 0
    %2435 = vmatmul.mubr.bf16.gmra.mxu0 %v2318
    %v2436 = vpop.f32.mrf.mxu0
    %v2437 = vadd.f32 %v2355, %v2436
    %v2438 = vpop.f32.mrf.mxu0
    %v2439 = vadd.f32 %v2357, %v2438
    %v2440 = vpop.f32.mrf.mxu0
    %v2441 = vpop.f32.mrf.mxu0
    %2442 = vdwg.mxu0
    %2443 = vmatprep.subr.bf16.mxu0 %v989
    %2444 = vmatpush1.bf16.msra.mxu0 %v988
    %2445 = vmatprep.subr.bf16.mxu0 %v985
    %2446 = vmatpush1.bf16.msra.mxu0 %v984
    %2447 = vmatprep.subr.bf16.mxu0 %v981
    %2448 = vmatpush1.bf16.msra.mxu0 %v980
    %2449 = vmatprep.subr.bf16.mxu0 %v977
    %2450 = vmatpush1.bf16.msra.mxu0 %v976
    %2451 = vmatprep.subr.bf16.mxu0 %v973
    %2452 = vmatpush1.bf16.msra.mxu0 %v972
    %2453 = vmatprep.subr.bf16.mxu0 %v969
    %2454 = vmatpush1.bf16.msra.mxu0 %v968
    %2455 = vmatprep.subr.bf16.mxu0 %v965
    %2456 = vmatpush1.bf16.msra.mxu0 %v964
    %2457 = vmatprep.subr.bf16.mxu0 %v961
    %2458 = vmatpush1.bf16.msra.mxu0 %v960
    %2459 = vmatprep.subr.bf16.mxu0 0
    %2460 = vmatpush2.bf16.msra.mxu0 0
    %2461 = vmatprep.subr.bf16.mxu0 0
    %2462 = vmatpush2.bf16.msra.mxu0 0
    %2463 = vmatprep.subr.bf16.mxu0 0
    %2464 = vmatpush2.bf16.msra.mxu0 0
    %2465 = vmatprep.subr.bf16.mxu0 0
    %2466 = vmatpush2.bf16.msra.mxu0 0
    %2467 = vmatprep.subr.bf16.mxu0 0
    %2468 = vmatpush2.bf16.msra.mxu0 0
    %2469 = vmatprep.subr.bf16.mxu0 0
    %2470 = vmatpush2.bf16.msra.mxu0 0
    %2471 = vmatprep.subr.bf16.mxu0 0
    %2472 = vmatpush2.bf16.msra.mxu0 0
    %2473 = vmatprep.subr.bf16.mxu0 0
    %2474 = vmatpush2.bf16.msra.mxu0 0
    %2475 = vmatprep.mubr.bf16.mxu0 0
    %2476 = vmatmul.mubr.bf16.gmra.mxu0 %v2318
    %v2477 = vpop.f32.mrf.mxu0
    %v2478 = vadd.f32 %v2396, %v2477
    %v2479 = vpop.f32.mrf.mxu0
    %v2480 = vadd.f32 %v2398, %v2479
    %v2481 = vpop.f32.mrf.mxu0
    %v2482 = vpop.f32.mrf.mxu0
    %2483 = vdwg.mxu0
    %v2484 = vadd.f32 %v2437, %v517
    %v2485 = vadd.f32 %v2439, %v521
    %v2486 = vadd.f32 %v2478, %v525
    %v2487 = vadd.f32 %v2480, %v529
    %v2488 = vtanh.pop %v2484
    %v2489 = vtanh.pop %v2485
    %v2490 = vtanh.pop %v2486
    %v2491 = vtanh.pop %v2487
    %v2492 = vmul.f32 %v2488, %v504
    %v2493 = vmul.f32 %v2489, %v505
    %v2494 = vmul.f32 %v2490, %v506
    %v2495 = vmul.f32 %v2491, %v507
    %v2496 = vadd.f32 %v2492, %v508
    %v2497 = vadd.f32 %v2493, %v509
    %v2498 = vadd.f32 %v2494, %v510
    %v2499 = vadd.f32 %v2495, %v511
    %v2500 = vmul.f32 %v2497, %v2205
    %v2501 = vmul.f32 %v2496, %v2498
    %v2502 = vadd.f32 %v2500, %v2501
    %v2503 = vtanh.pop %v2502
    %v2504 = vmul.f32 %v2499, %v2503
    %s2505 = smul.u32 5, 4
    %s2506 = smul.addr %s2505, 8
    %s2507 = scalar_lea.vmem [#allocation2], %s2506
    %v2508 = vld [vmem:[%s2507] sm:$0xff]
    %v2509 = vld [vmem:[%s2507 + $0x8] sm:$0xff]
    %v2510 = vld [vmem:[%s2507 + $0x10] sm:$0xff]
    %v2511 = vld [vmem:[%s2507 + $0x18] sm:$0xff]
    %2512 = vmatprep.subr.bf16.mxu0 %v1289
    %2513 = vmatpush1.bf16.msra.mxu0 %v1288
    %2514 = vmatprep.subr.bf16.mxu0 %v1285
    %2515 = vmatpush1.bf16.msra.mxu0 %v1284
    %2516 = vmatprep.subr.bf16.mxu0 %v1281
    %2517 = vmatpush1.bf16.msra.mxu0 %v1280
    %2518 = vmatprep.subr.bf16.mxu0 %v1277
    %2519 = vmatpush1.bf16.msra.mxu0 %v1276
    %2520 = vmatprep.subr.bf16.mxu0 %v1273
    %2521 = vmatpush1.bf16.msra.mxu0 %v1272
    %2522 = vmatprep.subr.bf16.mxu0 %v1269
    %2523 = vmatpush1.bf16.msra.mxu0 %v1268
    %2524 = vmatprep.subr.bf16.mxu0 %v1265
    %2525 = vmatpush1.bf16.msra.mxu0 %v1264
    %2526 = vmatprep.subr.bf16.mxu0 %v1261
    %2527 = vmatpush1.bf16.msra.mxu0 %v1260
    %2528 = vmatprep.subr.bf16.mxu0 0
    %2529 = vmatpush2.bf16.msra.mxu0 0
    %2530 = vmatprep.subr.bf16.mxu0 0
    %2531 = vmatpush2.bf16.msra.mxu0 0
    %2532 = vmatprep.subr.bf16.mxu0 0
    %2533 = vmatpush2.bf16.msra.mxu0 0
    %2534 = vmatprep.subr.bf16.mxu0 0
    %2535 = vmatpush2.bf16.msra.mxu0 0
    %2536 = vmatprep.subr.bf16.mxu0 0
    %2537 = vmatpush2.bf16.msra.mxu0 0
    %2538 = vmatprep.subr.bf16.mxu0 0
    %2539 = vmatpush2.bf16.msra.mxu0 0
    %2540 = vmatprep.subr.bf16.mxu0 0
    %2541 = vmatpush2.bf16.msra.mxu0 0
    %2542 = vmatprep.subr.bf16.mxu0 0
    %2543 = vmatpush2.bf16.msra.mxu0 0
    %2544 = vmatprep.mubr.bf16.mxu0 0
    %2545 = vmatmul.mubr.bf16.gmra.mxu0 %v2318
    %v2546 = vpop.f32.mrf.mxu0
    %v2547 = vadd.f32 0.0, %v2546
    %v2548 = vpop.f32.mrf.mxu0
    %v2549 = vadd.f32 0.0, %v2548
    %v2550 = vpop.f32.mrf.mxu0
    %v2551 = vpop.f32.mrf.mxu0
    %2552 = vdwg.mxu0
    %2553 = vmatprep.subr.bf16.mxu0 %v1291
    %2554 = vmatpush1.bf16.msra.mxu0 %v1290
    %2555 = vmatprep.subr.bf16.mxu0 %v1287
    %2556 = vmatpush1.bf16.msra.mxu0 %v1286
    %2557 = vmatprep.subr.bf16.mxu0 %v1283
    %2558 = vmatpush1.bf16.msra.mxu0 %v1282
    %2559 = vmatprep.subr.bf16.mxu0 %v1279
    %2560 = vmatpush1.bf16.msra.mxu0 %v1278
    %2561 = vmatprep.subr.bf16.mxu0 %v1275
    %2562 = vmatpush1.bf16.msra.mxu0 %v1274
    %2563 = vmatprep.subr.bf16.mxu0 %v1271
    %2564 = vmatpush1.bf16.msra.mxu0 %v1270
    %2565 = vmatprep.subr.bf16.mxu0 %v1267
    %2566 = vmatpush1.bf16.msra.mxu0 %v1266
    %2567 = vmatprep.subr.bf16.mxu0 %v1263
    %2568 = vmatpush1.bf16.msra.mxu0 %v1262
    %2569 = vmatprep.subr.bf16.mxu0 0
    %2570 = vmatpush2.bf16.msra.mxu0 0
    %2571 = vmatprep.subr.bf16.mxu0 0
    %2572 = vmatpush2.bf16.msra.mxu0 0
    %2573 = vmatprep.subr.bf16.mxu0 0
    %2574 = vmatpush2.bf16.msra.mxu0 0
    %2575 = vmatprep.subr.bf16.mxu0 0
    %2576 = vmatpush2.bf16.msra.mxu0 0
    %2577 = vmatprep.subr.bf16.mxu0 0
    %2578 = vmatpush2.bf16.msra.mxu0 0
    %2579 = vmatprep.subr.bf16.mxu0 0
    %2580 = vmatpush2.bf16.msra.mxu0 0
    %2581 = vmatprep.subr.bf16.mxu0 0
    %2582 = vmatpush2.bf16.msra.mxu0 0
    %2583 = vmatprep.subr.bf16.mxu0 0
    %2584 = vmatpush2.bf16.msra.mxu0 0
    %2585 = vmatprep.mubr.bf16.mxu0 0
    %2586 = vmatmul.mubr.bf16.gmra.mxu0 %v2318
    %v2587 = vpop.f32.mrf.mxu0
    %v2588 = vadd.f32 0.0, %v2587
    %v2589 = vpop.f32.mrf.mxu0
    %v2590 = vadd.f32 0.0, %v2589
    %v2591 = vpop.f32.mrf.mxu0
    %v2592 = vpop.f32.mrf.mxu0
    %2593 = vdwg.mxu0
    %v2594 = vadd.f32 %v2508, %v2547
    %v2595 = vadd.f32 %v2509, %v2549
    %v2596 = vadd.f32 %v2510, %v2588
    %v2597 = vadd.f32 %v2511, %v2590
    %v2598 = vtanh.pop %v2594
    %v2599 = vtanh.pop %v2595
    %v2600 = vtanh.pop %v2596
    %v2601 = vtanh.pop %v2597
    %v2602 = vmul.f32 %v2598, %v504
    %v2603 = vmul.f32 %v2599, %v505
    %v2604 = vmul.f32 %v2600, %v506
    %v2605 = vmul.f32 %v2601, %v507
    %v2606 = vadd.f32 %v2602, %v508
    %v2607 = vadd.f32 %v2603, %v509
    %v2608 = vadd.f32 %v2604, %v510
    %v2609 = vadd.f32 %v2605, %v511
    %v2610 = vmul.f32 %v2607, %v2315
    %v2611 = vmul.f32 %v2606, %v2608
    %v2612 = vadd.f32 %v2610, %v2611
    %v2613 = vtanh.pop %v2612
    %v2614 = vmul.f32 %v2609, %v2613
    %v2615 = vpack.c.bf16 %v2614, %v2614
    %v2616 = vpack.c.bf16 %v2504, %v2504
    %2617 = vmatprep.subr.bf16.mxu0 %v745
    %2618 = vmatpush1.bf16.msra.mxu0 %v744
    %2619 = vmatprep.subr.bf16.mxu0 %v741
    %2620 = vmatpush1.bf16.msra.mxu0 %v740
    %2621 = vmatprep.subr.bf16.mxu0 %v737
    %2622 = vmatpush1.bf16.msra.mxu0 %v736
    %2623 = vmatprep.subr.bf16.mxu0 %v733
    %2624 = vmatpush1.bf16.msra.mxu0 %v732
    %2625 = vmatprep.subr.bf16.mxu0 %v729
    %2626 = vmatpush1.bf16.msra.mxu0 %v728
    %2627 = vmatprep.subr.bf16.mxu0 %v725
    %2628 = vmatpush1.bf16.msra.mxu0 %v724
    %2629 = vmatprep.subr.bf16.mxu0 %v721
    %2630 = vmatpush1.bf16.msra.mxu0 %v720
    %2631 = vmatprep.subr.bf16.mxu0 %v717
    %2632 = vmatpush1.bf16.msra.mxu0 %v716
    %2633 = vmatprep.subr.bf16.mxu0 0
    %2634 = vmatpush2.bf16.msra.mxu0 0
    %2635 = vmatprep.subr.bf16.mxu0 0
    %2636 = vmatpush2.bf16.msra.mxu0 0
    %2637 = vmatprep.subr.bf16.mxu0 0
    %2638 = vmatpush2.bf16.msra.mxu0 0
    %2639 = vmatprep.subr.bf16.mxu0 0
    %2640 = vmatpush2.bf16.msra.mxu0 0
    %2641 = vmatprep.subr.bf16.mxu0 0
    %2642 = vmatpush2.bf16.msra.mxu0 0
    %2643 = vmatprep.subr.bf16.mxu0 0
    %2644 = vmatpush2.bf16.msra.mxu0 0
    %2645 = vmatprep.subr.bf16.mxu0 0
    %2646 = vmatpush2.bf16.msra.mxu0 0
    %2647 = vmatprep.subr.bf16.mxu0 0
    %2648 = vmatpush2.bf16.msra.mxu0 0
    %2649 = vmatprep.mubr.bf16.mxu0 0
    %2650 = vmatmul.mubr.bf16.gmra.mxu0 %v2616
    %v2651 = vpop.f32.mrf.mxu0
    %v2652 = vadd.f32 0.0, %v2651
    %v2653 = vpop.f32.mrf.mxu0
    %v2654 = vadd.f32 0.0, %v2653
    %v2655 = vpop.f32.mrf.mxu0
    %v2656 = vpop.f32.mrf.mxu0
    %2657 = vdwg.mxu0
    %2658 = vmatprep.subr.bf16.mxu0 %v747
    %2659 = vmatpush1.bf16.msra.mxu0 %v746
    %2660 = vmatprep.subr.bf16.mxu0 %v743
    %2661 = vmatpush1.bf16.msra.mxu0 %v742
    %2662 = vmatprep.subr.bf16.mxu0 %v739
    %2663 = vmatpush1.bf16.msra.mxu0 %v738
    %2664 = vmatprep.subr.bf16.mxu0 %v735
    %2665 = vmatpush1.bf16.msra.mxu0 %v734
    %2666 = vmatprep.subr.bf16.mxu0 %v731
    %2667 = vmatpush1.bf16.msra.mxu0 %v730
    %2668 = vmatprep.subr.bf16.mxu0 %v727
    %2669 = vmatpush1.bf16.msra.mxu0 %v726
    %2670 = vmatprep.subr.bf16.mxu0 %v723
    %2671 = vmatpush1.bf16.msra.mxu0 %v722
    %2672 = vmatprep.subr.bf16.mxu0 %v719
    %2673 = vmatpush1.bf16.msra.mxu0 %v718
    %2674 = vmatprep.subr.bf16.mxu0 0
    %2675 = vmatpush2.bf16.msra.mxu0 0
    %2676 = vmatprep.subr.bf16.mxu0 0
    %2677 = vmatpush2.bf16.msra.mxu0 0
    %2678 = vmatprep.subr.bf16.mxu0 0
    %2679 = vmatpush2.bf16.msra.mxu0 0
    %2680 = vmatprep.subr.bf16.mxu0 0
    %2681 = vmatpush2.bf16.msra.mxu0 0
    %2682 = vmatprep.subr.bf16.mxu0 0
    %2683 = vmatpush2.bf16.msra.mxu0 0
    %2684 = vmatprep.subr.bf16.mxu0 0
    %2685 = vmatpush2.bf16.msra.mxu0 0
    %2686 = vmatprep.subr.bf16.mxu0 0
    %2687 = vmatpush2.bf16.msra.mxu0 0
    %2688 = vmatprep.subr.bf16.mxu0 0
    %2689 = vmatpush2.bf16.msra.mxu0 0
    %2690 = vmatprep.mubr.bf16.mxu0 0
    %2691 = vmatmul.mubr.bf16.gmra.mxu0 %v2616
    %v2692 = vpop.f32.mrf.mxu0
    %v2693 = vadd.f32 0.0, %v2692
    %v2694 = vpop.f32.mrf.mxu0
    %v2695 = vadd.f32 0.0, %v2694
    %v2696 = vpop.f32.mrf.mxu0
    %v2697 = vpop.f32.mrf.mxu0
    %2698 = vdwg.mxu0
    %2699 = vmatprep.subr.bf16.mxu0 %v987
    %2700 = vmatpush1.bf16.msra.mxu0 %v986
    %2701 = vmatprep.subr.bf16.mxu0 %v983
    %2702 = vmatpush1.bf16.msra.mxu0 %v982
    %2703 = vmatprep.subr.bf16.mxu0 %v979
    %2704 = vmatpush1.bf16.msra.mxu0 %v978
    %2705 = vmatprep.subr.bf16.mxu0 %v975
    %2706 = vmatpush1.bf16.msra.mxu0 %v974
    %2707 = vmatprep.subr.bf16.mxu0 %v971
    %2708 = vmatpush1.bf16.msra.mxu0 %v970
    %2709 = vmatprep.subr.bf16.mxu0 %v967
    %2710 = vmatpush1.bf16.msra.mxu0 %v966
    %2711 = vmatprep.subr.bf16.mxu0 %v963
    %2712 = vmatpush1.bf16.msra.mxu0 %v962
    %2713 = vmatprep.subr.bf16.mxu0 %v959
    %2714 = vmatpush1.bf16.msra.mxu0 %v958
    %2715 = vmatprep.subr.bf16.mxu0 0
    %2716 = vmatpush2.bf16.msra.mxu0 0
    %2717 = vmatprep.subr.bf16.mxu0 0
    %2718 = vmatpush2.bf16.msra.mxu0 0
    %2719 = vmatprep.subr.bf16.mxu0 0
    %2720 = vmatpush2.bf16.msra.mxu0 0
    %2721 = vmatprep.subr.bf16.mxu0 0
    %2722 = vmatpush2.bf16.msra.mxu0 0
    %2723 = vmatprep.subr.bf16.mxu0 0
    %2724 = vmatpush2.bf16.msra.mxu0 0
    %2725 = vmatprep.subr.bf16.mxu0 0
    %2726 = vmatpush2.bf16.msra.mxu0 0
    %2727 = vmatprep.subr.bf16.mxu0 0
    %2728 = vmatpush2.bf16.msra.mxu0 0
    %2729 = vmatprep.subr.bf16.mxu0 0
    %2730 = vmatpush2.bf16.msra.mxu0 0
    %2731 = vmatprep.mubr.bf16.mxu0 0
    %2732 = vmatmul.mubr.bf16.gmra.mxu0 %v2615
    %v2733 = vpop.f32.mrf.mxu0
    %v2734 = vadd.f32 %v2652, %v2733
    %v2735 = vpop.f32.mrf.mxu0
    %v2736 = vadd.f32 %v2654, %v2735
    %v2737 = vpop.f32.mrf.mxu0
    %v2738 = vpop.f32.mrf.mxu0
    %2739 = vdwg.mxu0
    %2740 = vmatprep.subr.bf16.mxu0 %v989
    %2741 = vmatpush1.bf16.msra.mxu0 %v988
    %2742 = vmatprep.subr.bf16.mxu0 %v985
    %2743 = vmatpush1.bf16.msra.mxu0 %v984
    %2744 = vmatprep.subr.bf16.mxu0 %v981
    %2745 = vmatpush1.bf16.msra.mxu0 %v980
    %2746 = vmatprep.subr.bf16.mxu0 %v977
    %2747 = vmatpush1.bf16.msra.mxu0 %v976
    %2748 = vmatprep.subr.bf16.mxu0 %v973
    %2749 = vmatpush1.bf16.msra.mxu0 %v972
    %2750 = vmatprep.subr.bf16.mxu0 %v969
    %2751 = vmatpush1.bf16.msra.mxu0 %v968
    %2752 = vmatprep.subr.bf16.mxu0 %v965
    %2753 = vmatpush1.bf16.msra.mxu0 %v964
    %2754 = vmatprep.subr.bf16.mxu0 %v961
    %2755 = vmatpush1.bf16.msra.mxu0 %v960
    %2756 = vmatprep.subr.bf16.mxu0 0
    %2757 = vmatpush2.bf16.msra.mxu0 0
    %2758 = vmatprep.subr.bf16.mxu0 0
    %2759 = vmatpush2.bf16.msra.mxu0 0
    %2760 = vmatprep.subr.bf16.mxu0 0
    %2761 = vmatpush2.bf16.msra.mxu0 0
    %2762 = vmatprep.subr.bf16.mxu0 0
    %2763 = vmatpush2.bf16.msra.mxu0 0
    %2764 = vmatprep.subr.bf16.mxu0 0
    %2765 = vmatpush2.bf16.msra.mxu0 0
    %2766 = vmatprep.subr.bf16.mxu0 0
    %2767 = vmatpush2.bf16.msra.mxu0 0
    %2768 = vmatprep.subr.bf16.mxu0 0
    %2769 = vmatpush2.bf16.msra.mxu0 0
    %2770 = vmatprep.subr.bf16.mxu0 0
    %2771 = vmatpush2.bf16.msra.mxu0 0
    %2772 = vmatprep.mubr.bf16.mxu0 0
    %2773 = vmatmul.mubr.bf16.gmra.mxu0 %v2615
    %v2774 = vpop.f32.mrf.mxu0
    %v2775 = vadd.f32 %v2693, %v2774
    %v2776 = vpop.f32.mrf.mxu0
    %v2777 = vadd.f32 %v2695, %v2776
    %v2778 = vpop.f32.mrf.mxu0
    %v2779 = vpop.f32.mrf.mxu0
    %2780 = vdwg.mxu0
    %v2781 = vadd.f32 %v2734, %v517
    %v2782 = vadd.f32 %v2736, %v521
    %v2783 = vadd.f32 %v2775, %v525
    %v2784 = vadd.f32 %v2777, %v529
    %v2785 = vtanh.pop %v2781
    %v2786 = vtanh.pop %v2782
    %v2787 = vtanh.pop %v2783
    %v2788 = vtanh.pop %v2784
    %v2789 = vmul.f32 %v2785, %v504
    %v2790 = vmul.f32 %v2786, %v505
    %v2791 = vmul.f32 %v2787, %v506
    %v2792 = vmul.f32 %v2788, %v507
    %v2793 = vadd.f32 %v2789, %v508
    %v2794 = vadd.f32 %v2790, %v509
    %v2795 = vadd.f32 %v2791, %v510
    %v2796 = vadd.f32 %v2792, %v511
    %v2797 = vmul.f32 %v2794, %v2502
    %v2798 = vmul.f32 %v2793, %v2795
    %v2799 = vadd.f32 %v2797, %v2798
    %v2800 = vtanh.pop %v2799
    %v2801 = vmul.f32 %v2796, %v2800
    %s2802 = smul.u32 6, 4
    %s2803 = smul.addr %s2802, 8
    %s2804 = scalar_lea.vmem [#allocation2], %s2803
    %v2805 = vld [vmem:[%s2804] sm:$0xff]
    %v2806 = vld [vmem:[%s2804 + $0x8] sm:$0xff]
    %v2807 = vld [vmem:[%s2804 + $0x10] sm:$0xff]
    %v2808 = vld [vmem:[%s2804 + $0x18] sm:$0xff]
    %2809 = vmatprep.subr.bf16.mxu0 %v1289
    %2810 = vmatpush1.bf16.msra.mxu0 %v1288
    %2811 = vmatprep.subr.bf16.mxu0 %v1285
    %2812 = vmatpush1.bf16.msra.mxu0 %v1284
    %2813 = vmatprep.subr.bf16.mxu0 %v1281
    %2814 = vmatpush1.bf16.msra.mxu0 %v1280
    %2815 = vmatprep.subr.bf16.mxu0 %v1277
    %2816 = vmatpush1.bf16.msra.mxu0 %v1276
    %2817 = vmatprep.subr.bf16.mxu0 %v1273
    %2818 = vmatpush1.bf16.msra.mxu0 %v1272
    %2819 = vmatprep.subr.bf16.mxu0 %v1269
    %2820 = vmatpush1.bf16.msra.mxu0 %v1268
    %2821 = vmatprep.subr.bf16.mxu0 %v1265
    %2822 = vmatpush1.bf16.msra.mxu0 %v1264
    %2823 = vmatprep.subr.bf16.mxu0 %v1261
    %2824 = vmatpush1.bf16.msra.mxu0 %v1260
    %2825 = vmatprep.subr.bf16.mxu0 0
    %2826 = vmatpush2.bf16.msra.mxu0 0
    %2827 = vmatprep.subr.bf16.mxu0 0
    %2828 = vmatpush2.bf16.msra.mxu0 0
    %2829 = vmatprep.subr.bf16.mxu0 0
    %2830 = vmatpush2.bf16.msra.mxu0 0
    %2831 = vmatprep.subr.bf16.mxu0 0
    %2832 = vmatpush2.bf16.msra.mxu0 0
    %2833 = vmatprep.subr.bf16.mxu0 0
    %2834 = vmatpush2.bf16.msra.mxu0 0
    %2835 = vmatprep.subr.bf16.mxu0 0
    %2836 = vmatpush2.bf16.msra.mxu0 0
    %2837 = vmatprep.subr.bf16.mxu0 0
    %2838 = vmatpush2.bf16.msra.mxu0 0
    %2839 = vmatprep.subr.bf16.mxu0 0
    %2840 = vmatpush2.bf16.msra.mxu0 0
    %2841 = vmatprep.mubr.bf16.mxu0 0
    %2842 = vmatmul.mubr.bf16.gmra.mxu0 %v2615
    %v2843 = vpop.f32.mrf.mxu0
    %v2844 = vadd.f32 0.0, %v2843
    %v2845 = vpop.f32.mrf.mxu0
    %v2846 = vadd.f32 0.0, %v2845
    %v2847 = vpop.f32.mrf.mxu0
    %v2848 = vpop.f32.mrf.mxu0
    %2849 = vdwg.mxu0
    %2850 = vmatprep.subr.bf16.mxu0 %v1291
    %2851 = vmatpush1.bf16.msra.mxu0 %v1290
    %2852 = vmatprep.subr.bf16.mxu0 %v1287
    %2853 = vmatpush1.bf16.msra.mxu0 %v1286
    %2854 = vmatprep.subr.bf16.mxu0 %v1283
    %2855 = vmatpush1.bf16.msra.mxu0 %v1282
    %2856 = vmatprep.subr.bf16.mxu0 %v1279
    %2857 = vmatpush1.bf16.msra.mxu0 %v1278
    %2858 = vmatprep.subr.bf16.mxu0 %v1275
    %2859 = vmatpush1.bf16.msra.mxu0 %v1274
    %2860 = vmatprep.subr.bf16.mxu0 %v1271
    %2861 = vmatpush1.bf16.msra.mxu0 %v1270
    %2862 = vmatprep.subr.bf16.mxu0 %v1267
    %2863 = vmatpush1.bf16.msra.mxu0 %v1266
    %2864 = vmatprep.subr.bf16.mxu0 %v1263
    %2865 = vmatpush1.bf16.msra.mxu0 %v1262
    %2866 = vmatprep.subr.bf16.mxu0 0
    %2867 = vmatpush2.bf16.msra.mxu0 0
    %2868 = vmatprep.subr.bf16.mxu0 0
    %2869 = vmatpush2.bf16.msra.mxu0 0
    %2870 = vmatprep.subr.bf16.mxu0 0
    %2871 = vmatpush2.bf16.msra.mxu0 0
    %2872 = vmatprep.subr.bf16.mxu0 0
    %2873 = vmatpush2.bf16.msra.mxu0 0
    %2874 = vmatprep.subr.bf16.mxu0 0
    %2875 = vmatpush2.bf16.msra.mxu0 0
    %2876 = vmatprep.subr.bf16.mxu0 0
    %2877 = vmatpush2.bf16.msra.mxu0 0
    %2878 = vmatprep.subr.bf16.mxu0 0
    %2879 = vmatpush2.bf16.msra.mxu0 0
    %2880 = vmatprep.subr.bf16.mxu0 0
    %2881 = vmatpush2.bf16.msra.mxu0 0
    %2882 = vmatprep.mubr.bf16.mxu0 0
    %2883 = vmatmul.mubr.bf16.gmra.mxu0 %v2615
    %v2884 = vpop.f32.mrf.mxu0
    %v2885 = vadd.f32 0.0, %v2884
    %v2886 = vpop.f32.mrf.mxu0
    %v2887 = vadd.f32 0.0, %v2886
    %v2888 = vpop.f32.mrf.mxu0
    %v2889 = vpop.f32.mrf.mxu0
    %2890 = vdwg.mxu0
    %v2891 = vadd.f32 %v2805, %v2844
    %v2892 = vadd.f32 %v2806, %v2846
    %v2893 = vadd.f32 %v2807, %v2885
    %v2894 = vadd.f32 %v2808, %v2887
    %v2895 = vtanh.pop %v2891
    %v2896 = vtanh.pop %v2892
    %v2897 = vtanh.pop %v2893
    %v2898 = vtanh.pop %v2894
    %v2899 = vmul.f32 %v2895, %v504
    %v2900 = vmul.f32 %v2896, %v505
    %v2901 = vmul.f32 %v2897, %v506
    %v2902 = vmul.f32 %v2898, %v507
    %v2903 = vadd.f32 %v2899, %v508
    %v2904 = vadd.f32 %v2900, %v509
    %v2905 = vadd.f32 %v2901, %v510
    %v2906 = vadd.f32 %v2902, %v511
    %v2907 = vmul.f32 %v2904, %v2612
    %v2908 = vmul.f32 %v2903, %v2905
    %v2909 = vadd.f32 %v2907, %v2908
    %v2910 = vtanh.pop %v2909
    %v2911 = vmul.f32 %v2906, %v2910
    %v2912 = vpack.c.bf16 %v2911, %v2911
    %v2913 = vpack.c.bf16 %v2801, %v2801
    %2914 = vmatprep.subr.bf16.mxu0 %v745
    %2915 = vmatpush1.bf16.msra.mxu0 %v744
    %2916 = vmatprep.subr.bf16.mxu0 %v741
    %2917 = vmatpush1.bf16.msra.mxu0 %v740
    %2918 = vmatprep.subr.bf16.mxu0 %v737
    %2919 = vmatpush1.bf16.msra.mxu0 %v736
    %2920 = vmatprep.subr.bf16.mxu0 %v733
    %2921 = vmatpush1.bf16.msra.mxu0 %v732
    %2922 = vmatprep.subr.bf16.mxu0 %v729
    %2923 = vmatpush1.bf16.msra.mxu0 %v728
    %2924 = vmatprep.subr.bf16.mxu0 %v725
    %2925 = vmatpush1.bf16.msra.mxu0 %v724
    %2926 = vmatprep.subr.bf16.mxu0 %v721
    %2927 = vmatpush1.bf16.msra.mxu0 %v720
    %2928 = vmatprep.subr.bf16.mxu0 %v717
    %2929 = vmatpush1.bf16.msra.mxu0 %v716
    %2930 = vmatprep.subr.bf16.mxu0 0
    %2931 = vmatpush2.bf16.msra.mxu0 0
    %2932 = vmatprep.subr.bf16.mxu0 0
    %2933 = vmatpush2.bf16.msra.mxu0 0
    %2934 = vmatprep.subr.bf16.mxu0 0
    %2935 = vmatpush2.bf16.msra.mxu0 0
    %2936 = vmatprep.subr.bf16.mxu0 0
    %2937 = vmatpush2.bf16.msra.mxu0 0
    %2938 = vmatprep.subr.bf16.mxu0 0
    %2939 = vmatpush2.bf16.msra.mxu0 0
    %2940 = vmatprep.subr.bf16.mxu0 0
    %2941 = vmatpush2.bf16.msra.mxu0 0
    %2942 = vmatprep.subr.bf16.mxu0 0
    %2943 = vmatpush2.bf16.msra.mxu0 0
    %2944 = vmatprep.subr.bf16.mxu0 0
    %2945 = vmatpush2.bf16.msra.mxu0 0
    %2946 = vmatprep.mubr.bf16.mxu0 0
    %2947 = vmatmul.mubr.bf16.gmra.mxu0 %v2913
    %v2948 = vpop.f32.mrf.mxu0
    %v2949 = vadd.f32 0.0, %v2948
    %v2950 = vpop.f32.mrf.mxu0
    %v2951 = vadd.f32 0.0, %v2950
    %v2952 = vpop.f32.mrf.mxu0
    %v2953 = vpop.f32.mrf.mxu0
    %2954 = vdwg.mxu0
    %2955 = vmatprep.subr.bf16.mxu0 %v747
    %2956 = vmatpush1.bf16.msra.mxu0 %v746
    %2957 = vmatprep.subr.bf16.mxu0 %v743
    %2958 = vmatpush1.bf16.msra.mxu0 %v742
    %2959 = vmatprep.subr.bf16.mxu0 %v739
    %2960 = vmatpush1.bf16.msra.mxu0 %v738
    %2961 = vmatprep.subr.bf16.mxu0 %v735
    %2962 = vmatpush1.bf16.msra.mxu0 %v734
    %2963 = vmatprep.subr.bf16.mxu0 %v731
    %2964 = vmatpush1.bf16.msra.mxu0 %v730
    %2965 = vmatprep.subr.bf16.mxu0 %v727
    %2966 = vmatpush1.bf16.msra.mxu0 %v726
    %2967 = vmatprep.subr.bf16.mxu0 %v723
    %2968 = vmatpush1.bf16.msra.mxu0 %v722
    %2969 = vmatprep.subr.bf16.mxu0 %v719
    %2970 = vmatpush1.bf16.msra.mxu0 %v718
    %2971 = vmatprep.subr.bf16.mxu0 0
    %2972 = vmatpush2.bf16.msra.mxu0 0
    %2973 = vmatprep.subr.bf16.mxu0 0
    %2974 = vmatpush2.bf16.msra.mxu0 0
    %2975 = vmatprep.subr.bf16.mxu0 0
    %2976 = vmatpush2.bf16.msra.mxu0 0
    %2977 = vmatprep.subr.bf16.mxu0 0
    %2978 = vmatpush2.bf16.msra.mxu0 0
    %2979 = vmatprep.subr.bf16.mxu0 0
    %2980 = vmatpush2.bf16.msra.mxu0 0
    %2981 = vmatprep.subr.bf16.mxu0 0
    %2982 = vmatpush2.bf16.msra.mxu0 0
    %2983 = vmatprep.subr.bf16.mxu0 0
    %2984 = vmatpush2.bf16.msra.mxu0 0
    %2985 = vmatprep.subr.bf16.mxu0 0
    %2986 = vmatpush2.bf16.msra.mxu0 0
    %2987 = vmatprep.mubr.bf16.mxu0 0
    %2988 = vmatmul.mubr.bf16.gmra.mxu0 %v2913
    %v2989 = vpop.f32.mrf.mxu0
    %v2990 = vadd.f32 0.0, %v2989
    %v2991 = vpop.f32.mrf.mxu0
    %v2992 = vadd.f32 0.0, %v2991
    %v2993 = vpop.f32.mrf.mxu0
    %v2994 = vpop.f32.mrf.mxu0
    %2995 = vdwg.mxu0
    %2996 = vmatprep.subr.bf16.mxu0 %v987
    %2997 = vmatpush1.bf16.msra.mxu0 %v986
    %2998 = vmatprep.subr.bf16.mxu0 %v983
    %2999 = vmatpush1.bf16.msra.mxu0 %v982
    %3000 = vmatprep.subr.bf16.mxu0 %v979
    %3001 = vmatpush1.bf16.msra.mxu0 %v978
    %3002 = vmatprep.subr.bf16.mxu0 %v975
    %3003 = vmatpush1.bf16.msra.mxu0 %v974
    %3004 = vmatprep.subr.bf16.mxu0 %v971
    %3005 = vmatpush1.bf16.msra.mxu0 %v970
    %3006 = vmatprep.subr.bf16.mxu0 %v967
    %3007 = vmatpush1.bf16.msra.mxu0 %v966
    %3008 = vmatprep.subr.bf16.mxu0 %v963
    %3009 = vmatpush1.bf16.msra.mxu0 %v962
    %3010 = vmatprep.subr.bf16.mxu0 %v959
    %3011 = vmatpush1.bf16.msra.mxu0 %v958
    %3012 = vmatprep.subr.bf16.mxu0 0
    %3013 = vmatpush2.bf16.msra.mxu0 0
    %3014 = vmatprep.subr.bf16.mxu0 0
    %3015 = vmatpush2.bf16.msra.mxu0 0
    %3016 = vmatprep.subr.bf16.mxu0 0
    %3017 = vmatpush2.bf16.msra.mxu0 0
    %3018 = vmatprep.subr.bf16.mxu0 0
    %3019 = vmatpush2.bf16.msra.mxu0 0
    %3020 = vmatprep.subr.bf16.mxu0 0
    %3021 = vmatpush2.bf16.msra.mxu0 0
    %3022 = vmatprep.subr.bf16.mxu0 0
    %3023 = vmatpush2.bf16.msra.mxu0 0
    %3024 = vmatprep.subr.bf16.mxu0 0
    %3025 = vmatpush2.bf16.msra.mxu0 0
    %3026 = vmatprep.subr.bf16.mxu0 0
    %3027 = vmatpush2.bf16.msra.mxu0 0
    %3028 = vmatprep.mubr.bf16.mxu0 0
    %3029 = vmatmul.mubr.bf16.gmra.mxu0 %v2912
    %v3030 = vpop.f32.mrf.mxu0
    %v3031 = vadd.f32 %v2949, %v3030
    %v3032 = vpop.f32.mrf.mxu0
    %v3033 = vadd.f32 %v2951, %v3032
    %v3034 = vpop.f32.mrf.mxu0
    %v3035 = vpop.f32.mrf.mxu0
    %3036 = vdwg.mxu0
    %3037 = vmatprep.subr.bf16.mxu0 %v989
    %3038 = vmatpush1.bf16.msra.mxu0 %v988
    %3039 = vmatprep.subr.bf16.mxu0 %v985
    %3040 = vmatpush1.bf16.msra.mxu0 %v984
    %3041 = vmatprep.subr.bf16.mxu0 %v981
    %3042 = vmatpush1.bf16.msra.mxu0 %v980
    %3043 = vmatprep.subr.bf16.mxu0 %v977
    %3044 = vmatpush1.bf16.msra.mxu0 %v976
    %3045 = vmatprep.subr.bf16.mxu0 %v973
    %3046 = vmatpush1.bf16.msra.mxu0 %v972
    %3047 = vmatprep.subr.bf16.mxu0 %v969
    %3048 = vmatpush1.bf16.msra.mxu0 %v968
    %3049 = vmatprep.subr.bf16.mxu0 %v965
    %3050 = vmatpush1.bf16.msra.mxu0 %v964
    %3051 = vmatprep.subr.bf16.mxu0 %v961
    %3052 = vmatpush1.bf16.msra.mxu0 %v960
    %3053 = vmatprep.subr.bf16.mxu0 0
    %3054 = vmatpush2.bf16.msra.mxu0 0
    %3055 = vmatprep.subr.bf16.mxu0 0
    %3056 = vmatpush2.bf16.msra.mxu0 0
    %3057 = vmatprep.subr.bf16.mxu0 0
    %3058 = vmatpush2.bf16.msra.mxu0 0
    %3059 = vmatprep.subr.bf16.mxu0 0
    %3060 = vmatpush2.bf16.msra.mxu0 0
    %3061 = vmatprep.subr.bf16.mxu0 0
    %3062 = vmatpush2.bf16.msra.mxu0 0
    %3063 = vmatprep.subr.bf16.mxu0 0
    %3064 = vmatpush2.bf16.msra.mxu0 0
    %3065 = vmatprep.subr.bf16.mxu0 0
    %3066 = vmatpush2.bf16.msra.mxu0 0
    %3067 = vmatprep.subr.bf16.mxu0 0
    %3068 = vmatpush2.bf16.msra.mxu0 0
    %3069 = vmatprep.mubr.bf16.mxu0 0
    %3070 = vmatmul.mubr.bf16.gmra.mxu0 %v2912
    %v3071 = vpop.f32.mrf.mxu0
    %v3072 = vadd.f32 %v2990, %v3071
    %v3073 = vpop.f32.mrf.mxu0
    %v3074 = vadd.f32 %v2992, %v3073
    %v3075 = vpop.f32.mrf.mxu0
    %v3076 = vpop.f32.mrf.mxu0
    %3077 = vdwg.mxu0
    %v3078 = vadd.f32 %v3031, %v517
    %v3079 = vadd.f32 %v3033, %v521
    %v3080 = vadd.f32 %v3072, %v525
    %v3081 = vadd.f32 %v3074, %v529
    %v3082 = vtanh.pop %v3078
    %v3083 = vtanh.pop %v3079
    %v3084 = vtanh.pop %v3080
    %v3085 = vtanh.pop %v3081
    %v3086 = vmul.f32 %v3082, %v504
    %v3087 = vmul.f32 %v3083, %v505
    %v3088 = vmul.f32 %v3084, %v506
    %v3089 = vmul.f32 %v3085, %v507
    %v3090 = vadd.f32 %v3086, %v508
    %v3091 = vadd.f32 %v3087, %v509
    %v3092 = vadd.f32 %v3088, %v510
    %v3093 = vadd.f32 %v3089, %v511
    %v3094 = vmul.f32 %v3091, %v2799
    %v3095 = vmul.f32 %v3090, %v3092
    %v3096 = vadd.f32 %v3094, %v3095
    %v3097 = vtanh.pop %v3096
    %v3098 = vmul.f32 %v3093, %v3097
    %s3099 = smul.u32 7, 4
    %s3100 = smul.addr %s3099, 8
    %s3101 = scalar_lea.vmem [#allocation2], %s3100
    %v3102 = vld [vmem:[%s3101] sm:$0xff]
    %v3103 = vld [vmem:[%s3101 + $0x8] sm:$0xff]
    %v3104 = vld [vmem:[%s3101 + $0x10] sm:$0xff]
    %v3105 = vld [vmem:[%s3101 + $0x18] sm:$0xff]
    %3106 = vmatprep.subr.bf16.mxu0 %v1289
    %3107 = vmatpush1.bf16.msra.mxu0 %v1288
    %3108 = vmatprep.subr.bf16.mxu0 %v1285
    %3109 = vmatpush1.bf16.msra.mxu0 %v1284
    %3110 = vmatprep.subr.bf16.mxu0 %v1281
    %3111 = vmatpush1.bf16.msra.mxu0 %v1280
    %3112 = vmatprep.subr.bf16.mxu0 %v1277
    %3113 = vmatpush1.bf16.msra.mxu0 %v1276
    %3114 = vmatprep.subr.bf16.mxu0 %v1273
    %3115 = vmatpush1.bf16.msra.mxu0 %v1272
    %3116 = vmatprep.subr.bf16.mxu0 %v1269
    %3117 = vmatpush1.bf16.msra.mxu0 %v1268
    %3118 = vmatprep.subr.bf16.mxu0 %v1265
    %3119 = vmatpush1.bf16.msra.mxu0 %v1264
    %3120 = vmatprep.subr.bf16.mxu0 %v1261
    %3121 = vmatpush1.bf16.msra.mxu0 %v1260
    %3122 = vmatprep.subr.bf16.mxu0 0
    %3123 = vmatpush2.bf16.msra.mxu0 0
    %3124 = vmatprep.subr.bf16.mxu0 0
    %3125 = vmatpush2.bf16.msra.mxu0 0
    %3126 = vmatprep.subr.bf16.mxu0 0
    %3127 = vmatpush2.bf16.msra.mxu0 0
    %3128 = vmatprep.subr.bf16.mxu0 0
    %3129 = vmatpush2.bf16.msra.mxu0 0
    %3130 = vmatprep.subr.bf16.mxu0 0
    %3131 = vmatpush2.bf16.msra.mxu0 0
    %3132 = vmatprep.subr.bf16.mxu0 0
    %3133 = vmatpush2.bf16.msra.mxu0 0
    %3134 = vmatprep.subr.bf16.mxu0 0
    %3135 = vmatpush2.bf16.msra.mxu0 0
    %3136 = vmatprep.subr.bf16.mxu0 0
    %3137 = vmatpush2.bf16.msra.mxu0 0
    %3138 = vmatprep.mubr.bf16.mxu0 0
    %3139 = vmatmul.mubr.bf16.gmra.mxu0 %v2912
    %v3140 = vpop.f32.mrf.mxu0
    %v3141 = vadd.f32 0.0, %v3140
    %v3142 = vpop.f32.mrf.mxu0
    %v3143 = vadd.f32 0.0, %v3142
    %v3144 = vpop.f32.mrf.mxu0
    %v3145 = vpop.f32.mrf.mxu0
    %3146 = vdwg.mxu0
    %3147 = vmatprep.subr.bf16.mxu0 %v1291
    %3148 = vmatpush1.bf16.msra.mxu0 %v1290
    %3149 = vmatprep.subr.bf16.mxu0 %v1287
    %3150 = vmatpush1.bf16.msra.mxu0 %v1286
    %3151 = vmatprep.subr.bf16.mxu0 %v1283
    %3152 = vmatpush1.bf16.msra.mxu0 %v1282
    %3153 = vmatprep.subr.bf16.mxu0 %v1279
    %3154 = vmatpush1.bf16.msra.mxu0 %v1278
    %3155 = vmatprep.subr.bf16.mxu0 %v1275
    %3156 = vmatpush1.bf16.msra.mxu0 %v1274
    %3157 = vmatprep.subr.bf16.mxu0 %v1271
    %3158 = vmatpush1.bf16.msra.mxu0 %v1270
    %3159 = vmatprep.subr.bf16.mxu0 %v1267
    %3160 = vmatpush1.bf16.msra.mxu0 %v1266
    %3161 = vmatprep.subr.bf16.mxu0 %v1263
    %3162 = vmatpush1.bf16.msra.mxu0 %v1262
    %3163 = vmatprep.subr.bf16.mxu0 0
    %3164 = vmatpush2.bf16.msra.mxu0 0
    %3165 = vmatprep.subr.bf16.mxu0 0
    %3166 = vmatpush2.bf16.msra.mxu0 0
    %3167 = vmatprep.subr.bf16.mxu0 0
    %3168 = vmatpush2.bf16.msra.mxu0 0
    %3169 = vmatprep.subr.bf16.mxu0 0
    %3170 = vmatpush2.bf16.msra.mxu0 0
    %3171 = vmatprep.subr.bf16.mxu0 0
    %3172 = vmatpush2.bf16.msra.mxu0 0
    %3173 = vmatprep.subr.bf16.mxu0 0
    %3174 = vmatpush2.bf16.msra.mxu0 0
    %3175 = vmatprep.subr.bf16.mxu0 0
    %3176 = vmatpush2.bf16.msra.mxu0 0
    %3177 = vmatprep.subr.bf16.mxu0 0
    %3178 = vmatpush2.bf16.msra.mxu0 0
    %3179 = vmatprep.mubr.bf16.mxu0 0
    %3180 = vmatmul.mubr.bf16.gmra.mxu0 %v2912
    %v3181 = vpop.f32.mrf.mxu0
    %v3182 = vadd.f32 0.0, %v3181
    %v3183 = vpop.f32.mrf.mxu0
    %v3184 = vadd.f32 0.0, %v3183
    %v3185 = vpop.f32.mrf.mxu0
    %v3186 = vpop.f32.mrf.mxu0
    %3187 = vdwg.mxu0
    %v3188 = vadd.f32 %v3102, %v3141
    %v3189 = vadd.f32 %v3103, %v3143
    %v3190 = vadd.f32 %v3104, %v3182
    %v3191 = vadd.f32 %v3105, %v3184
    %v3192 = vtanh.pop %v3188
    %v3193 = vtanh.pop %v3189
    %v3194 = vtanh.pop %v3190
    %v3195 = vtanh.pop %v3191
    %v3196 = vmul.f32 %v3192, %v504
    %v3197 = vmul.f32 %v3193, %v505
    %v3198 = vmul.f32 %v3194, %v506
    %v3199 = vmul.f32 %v3195, %v507
    %v3200 = vadd.f32 %v3196, %v508
    %v3201 = vadd.f32 %v3197, %v509
    %v3202 = vadd.f32 %v3198, %v510
    %v3203 = vadd.f32 %v3199, %v511
    %v3204 = vmul.f32 %v3201, %v2909
    %v3205 = vmul.f32 %v3200, %v3202
    %v3206 = vadd.f32 %v3204, %v3205
    %v3207 = vtanh.pop %v3206
    %v3208 = vmul.f32 %v3203, %v3207
    %v3209 = vpack.c.bf16 %v3208, %v3208
    %v3210 = vpack.c.bf16 %v3098, %v3098
    %3211 = vmatprep.subr.bf16.mxu0 %v745
    %3212 = vmatpush1.bf16.msra.mxu0 %v744
    %3213 = vmatprep.subr.bf16.mxu0 %v741
    %3214 = vmatpush1.bf16.msra.mxu0 %v740
    %3215 = vmatprep.subr.bf16.mxu0 %v737
    %3216 = vmatpush1.bf16.msra.mxu0 %v736
    %3217 = vmatprep.subr.bf16.mxu0 %v733
    %3218 = vmatpush1.bf16.msra.mxu0 %v732
    %3219 = vmatprep.subr.bf16.mxu0 %v729
    %3220 = vmatpush1.bf16.msra.mxu0 %v728
    %3221 = vmatprep.subr.bf16.mxu0 %v725
    %3222 = vmatpush1.bf16.msra.mxu0 %v724
    %3223 = vmatprep.subr.bf16.mxu0 %v721
    %3224 = vmatpush1.bf16.msra.mxu0 %v720
    %3225 = vmatprep.subr.bf16.mxu0 %v717
    %3226 = vmatpush1.bf16.msra.mxu0 %v716
    %3227 = vmatprep.subr.bf16.mxu0 0
    %3228 = vmatpush2.bf16.msra.mxu0 0
    %3229 = vmatprep.subr.bf16.mxu0 0
    %3230 = vmatpush2.bf16.msra.mxu0 0
    %3231 = vmatprep.subr.bf16.mxu0 0
    %3232 = vmatpush2.bf16.msra.mxu0 0
    %3233 = vmatprep.subr.bf16.mxu0 0
    %3234 = vmatpush2.bf16.msra.mxu0 0
    %3235 = vmatprep.subr.bf16.mxu0 0
    %3236 = vmatpush2.bf16.msra.mxu0 0
    %3237 = vmatprep.subr.bf16.mxu0 0
    %3238 = vmatpush2.bf16.msra.mxu0 0
    %3239 = vmatprep.subr.bf16.mxu0 0
    %3240 = vmatpush2.bf16.msra.mxu0 0
    %3241 = vmatprep.subr.bf16.mxu0 0
    %3242 = vmatpush2.bf16.msra.mxu0 0
    %3243 = vmatprep.mubr.bf16.mxu0 0
    %3244 = vmatmul.mubr.bf16.gmra.mxu0 %v3210
    %v3245 = vpop.f32.mrf.mxu0
    %v3246 = vadd.f32 0.0, %v3245
    %v3247 = vpop.f32.mrf.mxu0
    %v3248 = vadd.f32 0.0, %v3247
    %v3249 = vpop.f32.mrf.mxu0
    %v3250 = vpop.f32.mrf.mxu0
    %3251 = vdwg.mxu0
    %3252 = vmatprep.subr.bf16.mxu0 %v747
    %3253 = vmatpush1.bf16.msra.mxu0 %v746
    %3254 = vmatprep.subr.bf16.mxu0 %v743
    %3255 = vmatpush1.bf16.msra.mxu0 %v742
    %3256 = vmatprep.subr.bf16.mxu0 %v739
    %3257 = vmatpush1.bf16.msra.mxu0 %v738
    %3258 = vmatprep.subr.bf16.mxu0 %v735
    %3259 = vmatpush1.bf16.msra.mxu0 %v734
    %3260 = vmatprep.subr.bf16.mxu0 %v731
    %3261 = vmatpush1.bf16.msra.mxu0 %v730
    %3262 = vmatprep.subr.bf16.mxu0 %v727
    %3263 = vmatpush1.bf16.msra.mxu0 %v726
    %3264 = vmatprep.subr.bf16.mxu0 %v723
    %3265 = vmatpush1.bf16.msra.mxu0 %v722
    %3266 = vmatprep.subr.bf16.mxu0 %v719
    %3267 = vmatpush1.bf16.msra.mxu0 %v718
    %3268 = vmatprep.subr.bf16.mxu0 0
    %3269 = vmatpush2.bf16.msra.mxu0 0
    %3270 = vmatprep.subr.bf16.mxu0 0
    %3271 = vmatpush2.bf16.msra.mxu0 0
    %3272 = vmatprep.subr.bf16.mxu0 0
    %3273 = vmatpush2.bf16.msra.mxu0 0
    %3274 = vmatprep.subr.bf16.mxu0 0
    %3275 = vmatpush2.bf16.msra.mxu0 0
    %3276 = vmatprep.subr.bf16.mxu0 0
    %3277 = vmatpush2.bf16.msra.mxu0 0
    %3278 = vmatprep.subr.bf16.mxu0 0
    %3279 = vmatpush2.bf16.msra.mxu0 0
    %3280 = vmatprep.subr.bf16.mxu0 0
    %3281 = vmatpush2.bf16.msra.mxu0 0
    %3282 = vmatprep.subr.bf16.mxu0 0
    %3283 = vmatpush2.bf16.msra.mxu0 0
    %3284 = vmatprep.mubr.bf16.mxu0 0
    %3285 = vmatmul.mubr.bf16.gmra.mxu0 %v3210
    %v3286 = vpop.f32.mrf.mxu0
    %v3287 = vadd.f32 0.0, %v3286
    %v3288 = vpop.f32.mrf.mxu0
    %v3289 = vadd.f32 0.0, %v3288
    %v3290 = vpop.f32.mrf.mxu0
    %v3291 = vpop.f32.mrf.mxu0
    %3292 = vdwg.mxu0
    %3293 = vmatprep.subr.bf16.mxu0 %v987
    %3294 = vmatpush1.bf16.msra.mxu0 %v986
    %3295 = vmatprep.subr.bf16.mxu0 %v983
    %3296 = vmatpush1.bf16.msra.mxu0 %v982
    %3297 = vmatprep.subr.bf16.mxu0 %v979
    %3298 = vmatpush1.bf16.msra.mxu0 %v978
    %3299 = vmatprep.subr.bf16.mxu0 %v975
    %3300 = vmatpush1.bf16.msra.mxu0 %v974
    %3301 = vmatprep.subr.bf16.mxu0 %v971
    %3302 = vmatpush1.bf16.msra.mxu0 %v970
    %3303 = vmatprep.subr.bf16.mxu0 %v967
    %3304 = vmatpush1.bf16.msra.mxu0 %v966
    %3305 = vmatprep.subr.bf16.mxu0 %v963
    %3306 = vmatpush1.bf16.msra.mxu0 %v962
    %3307 = vmatprep.subr.bf16.mxu0 %v959
    %3308 = vmatpush1.bf16.msra.mxu0 %v958
    %3309 = vmatprep.subr.bf16.mxu0 0
    %3310 = vmatpush2.bf16.msra.mxu0 0
    %3311 = vmatprep.subr.bf16.mxu0 0
    %3312 = vmatpush2.bf16.msra.mxu0 0
    %3313 = vmatprep.subr.bf16.mxu0 0
    %3314 = vmatpush2.bf16.msra.mxu0 0
    %3315 = vmatprep.subr.bf16.mxu0 0
    %3316 = vmatpush2.bf16.msra.mxu0 0
    %3317 = vmatprep.subr.bf16.mxu0 0
    %3318 = vmatpush2.bf16.msra.mxu0 0
    %3319 = vmatprep.subr.bf16.mxu0 0
    %3320 = vmatpush2.bf16.msra.mxu0 0
    %3321 = vmatprep.subr.bf16.mxu0 0
    %3322 = vmatpush2.bf16.msra.mxu0 0
    %3323 = vmatprep.subr.bf16.mxu0 0
    %3324 = vmatpush2.bf16.msra.mxu0 0
    %3325 = vmatprep.mubr.bf16.mxu0 0
    %3326 = vmatmul.mubr.bf16.gmra.mxu0 %v3209
    %v3327 = vpop.f32.mrf.mxu0
    %v3328 = vadd.f32 %v3246, %v3327
    %v3329 = vpop.f32.mrf.mxu0
    %v3330 = vadd.f32 %v3248, %v3329
    %v3331 = vpop.f32.mrf.mxu0
    %v3332 = vpop.f32.mrf.mxu0
    %3333 = vdwg.mxu0
    %3334 = vmatprep.subr.bf16.mxu0 %v989
    %3335 = vmatpush1.bf16.msra.mxu0 %v988
    %3336 = vmatprep.subr.bf16.mxu0 %v985
    %3337 = vmatpush1.bf16.msra.mxu0 %v984
    %3338 = vmatprep.subr.bf16.mxu0 %v981
    %3339 = vmatpush1.bf16.msra.mxu0 %v980
    %3340 = vmatprep.subr.bf16.mxu0 %v977
    %3341 = vmatpush1.bf16.msra.mxu0 %v976
    %3342 = vmatprep.subr.bf16.mxu0 %v973
    %3343 = vmatpush1.bf16.msra.mxu0 %v972
    %3344 = vmatprep.subr.bf16.mxu0 %v969
    %3345 = vmatpush1.bf16.msra.mxu0 %v968
    %3346 = vmatprep.subr.bf16.mxu0 %v965
    %3347 = vmatpush1.bf16.msra.mxu0 %v964
    %3348 = vmatprep.subr.bf16.mxu0 %v961
    %3349 = vmatpush1.bf16.msra.mxu0 %v960
    %3350 = vmatprep.subr.bf16.mxu0 0
    %3351 = vmatpush2.bf16.msra.mxu0 0
    %3352 = vmatprep.subr.bf16.mxu0 0
    %3353 = vmatpush2.bf16.msra.mxu0 0
    %3354 = vmatprep.subr.bf16.mxu0 0
    %3355 = vmatpush2.bf16.msra.mxu0 0
    %3356 = vmatprep.subr.bf16.mxu0 0
    %3357 = vmatpush2.bf16.msra.mxu0 0
    %3358 = vmatprep.subr.bf16.mxu0 0
    %3359 = vmatpush2.bf16.msra.mxu0 0
    %3360 = vmatprep.subr.bf16.mxu0 0
    %3361 = vmatpush2.bf16.msra.mxu0 0
    %3362 = vmatprep.subr.bf16.mxu0 0
    %3363 = vmatpush2.bf16.msra.mxu0 0
    %3364 = vmatprep.subr.bf16.mxu0 0
    %3365 = vmatpush2.bf16.msra.mxu0 0
    %3366 = vmatprep.mubr.bf16.mxu0 0
    %3367 = vmatmul.mubr.bf16.gmra.mxu0 %v3209
    %v3368 = vpop.f32.mrf.mxu0
    %v3369 = vadd.f32 %v3287, %v3368
    %v3370 = vpop.f32.mrf.mxu0
    %v3371 = vadd.f32 %v3289, %v3370
    %v3372 = vpop.f32.mrf.mxu0
    %v3373 = vpop.f32.mrf.mxu0
    %3374 = vdwg.mxu0
    %v3375 = vadd.f32 %v3328, %v517
    %v3376 = vadd.f32 %v3330, %v521
    %v3377 = vadd.f32 %v3369, %v525
    %v3378 = vadd.f32 %v3371, %v529
    %v3379 = vtanh.pop %v3375
    %v3380 = vtanh.pop %v3376
    %v3381 = vtanh.pop %v3377
    %v3382 = vtanh.pop %v3378
    %v3383 = vmul.f32 %v3379, %v504
    %v3384 = vmul.f32 %v3380, %v505
    %v3385 = vmul.f32 %v3381, %v506
    %v3386 = vmul.f32 %v3382, %v507
    %v3387 = vadd.f32 %v3383, %v508
    %v3388 = vadd.f32 %v3384, %v509
    %v3389 = vadd.f32 %v3385, %v510
    %v3390 = vadd.f32 %v3386, %v511
    %v3391 = vmul.f32 %v3388, %v3096
    %v3392 = vmul.f32 %v3387, %v3389
    %v3393 = vadd.f32 %v3391, %v3392
    %v3394 = vtanh.pop %v3393
    %v3395 = vmul.f32 %v3390, %v3394
    %v3396 = vld [vmem:[#allocation12] sm:$0xff]
    %v3397 = vld [vmem:[#allocation12 + $0x8] sm:$0xff]
    %v3398 = vld [vmem:[#allocation12 + $0x10] sm:$0xff]
    %v3399 = vld [vmem:[#allocation12 + $0x18] sm:$0xff]
    %v3400 = vld [vmem:[#allocation12 + $0x20] sm:$0xff]
    %v3401 = vld [vmem:[#allocation12 + $0x28] sm:$0xff]
    %v3402 = vld [vmem:[#allocation12 + $0x30] sm:$0xff]
    %v3403 = vld [vmem:[#allocation12 + $0x38] sm:$0xff]
    %v3404 = vld [vmem:[#allocation12 + $0x40] sm:$0xff]
    %v3405 = vld [vmem:[#allocation12 + $0x48] sm:$0xff]
    %v3406 = vld [vmem:[#allocation12 + $0x50] sm:$0xff]
    %v3407 = vld [vmem:[#allocation12 + $0x58] sm:$0xff]
    %v3408 = vld [vmem:[#allocation12 + $0x60] sm:$0xff]
    %v3409 = vld [vmem:[#allocation12 + $0x68] sm:$0xff]
    %v3410 = vld [vmem:[#allocation12 + $0x70] sm:$0xff]
    %v3411 = vld [vmem:[#allocation12 + $0x78] sm:$0xff]
    %v3412 = vld [vmem:[%s8] sm:$0x1]
    %v3414 = vlaneseq
    %v3415 = vshrl.u32 %v3414, 7
    %v3416 = vsub.s32 0, %v3415
    %v3417 = vrot.slane %v3412, %v3416
    %3419 = vmatprep.subr.mxu0 0.0
    %3420 = vmatpush1.msra.mxu0 %v3411
    %3421 = vmatprep.subr.mxu0 0.0
    %3422 = vmatpush1.msra.mxu0 %v3410
    %3423 = vmatprep.subr.mxu0 0.0
    %3424 = vmatpush1.msra.mxu0 %v3409
    %3425 = vmatprep.subr.mxu0 0.0
    %3426 = vmatpush1.msra.mxu0 %v3408
    %3427 = vmatprep.subr.mxu0 0.0
    %3428 = vmatpush1.msra.mxu0 %v3407
    %3429 = vmatprep.subr.mxu0 0.0
    %3430 = vmatpush1.msra.mxu0 %v3406
    %3431 = vmatprep.subr.mxu0 0.0
    %3432 = vmatpush1.msra.mxu0 %v3405
    %3433 = vmatprep.subr.mxu0 0.0
    %3434 = vmatpush1.msra.mxu0 %v3404
    %3435 = vmatprep.subr.mxu0 0.0
    %3436 = vmatpush1.msra.mxu0 %v3403
    %3437 = vmatprep.subr.mxu0 0.0
    %3438 = vmatpush1.msra.mxu0 %v3402
    %3439 = vmatprep.subr.mxu0 0.0
    %3440 = vmatpush1.msra.mxu0 %v3401
    %3441 = vmatprep.subr.mxu0 0.0
    %3442 = vmatpush1.msra.mxu0 %v3400
    %3443 = vmatprep.subr.mxu0 0.0
    %3444 = vmatpush1.msra.mxu0 %v3399
    %3445 = vmatprep.subr.mxu0 0.0
    %3446 = vmatpush1.msra.mxu0 %v3398
    %3447 = vmatprep.subr.mxu0 0.0
    %3448 = vmatpush1.msra.mxu0 %v3397
    %3449 = vmatprep.subr.mxu0 0.0
    %3450 = vmatpush1.msra.mxu0 %v3396
    %3451 = vmatprep.subr.mxu0 0.0
    %3452 = vmatpush2.msra.mxu0 0.0
    %3453 = vmatprep.subr.mxu0 0.0
    %3454 = vmatpush2.msra.mxu0 0.0
    %3455 = vmatprep.subr.mxu0 0.0
    %3456 = vmatpush2.msra.mxu0 0.0
    %3457 = vmatprep.subr.mxu0 0.0
    %3458 = vmatpush2.msra.mxu0 0.0
    %3459 = vmatprep.subr.mxu0 0.0
    %3460 = vmatpush2.msra.mxu0 0.0
    %3461 = vmatprep.subr.mxu0 0.0
    %3462 = vmatpush2.msra.mxu0 0.0
    %3463 = vmatprep.subr.mxu0 0.0
    %3464 = vmatpush2.msra.mxu0 0.0
    %3465 = vmatprep.subr.mxu0 0.0
    %3466 = vmatpush2.msra.mxu0 0.0
    %3467 = vmatprep.subr.mxu0 0.0
    %3468 = vmatpush2.msra.mxu0 0.0
    %3469 = vmatprep.subr.mxu0 0.0
    %3470 = vmatpush2.msra.mxu0 0.0
    %3471 = vmatprep.subr.mxu0 0.0
    %3472 = vmatpush2.msra.mxu0 0.0
    %3473 = vmatprep.subr.mxu0 0.0
    %3474 = vmatpush2.msra.mxu0 0.0
    %3475 = vmatprep.subr.mxu0 0.0
    %3476 = vmatpush2.msra.mxu0 0.0
    %3477 = vmatprep.subr.mxu0 0.0
    %3478 = vmatpush2.msra.mxu0 0.0
    %3479 = vmatprep.subr.mxu0 0.0
    %3480 = vmatpush2.msra.mxu0 0.0
    %3481 = vmatprep.subr.mxu0 0.0
    %3482 = vmatpush2.msra.mxu0 0.0
    %3483 = vmatprep.mubr.f32.mxu0 0.0
    %3484 = vmatmul.mubr.f32.gmra.mxu0 %v3395
    %v3485 = vpop.f32.mrf.mxu0
    %v3486 = vadd.f32 %v3417, %v3485
    %v3487 = vpop.f32.mrf.mxu0
    %3488 = vdwg.mxu0
    %v3489 = vmax.f32 %v3486, 0.0
    %v3490 = vld [vmem:[#allocation14] sm:$0xff]
    %v3491 = vld [vmem:[#allocation14 + $0x8] sm:$0xff]
    %v3492 = vld [vmem:[#allocation14 + $0x10] sm:$0xff]
    %v3493 = vld [vmem:[#allocation14 + $0x18] sm:$0xff]
    %v3494 = vld [vmem:[#allocation14 + $0x20] sm:$0xff]
    %v3495 = vld [vmem:[#allocation14 + $0x28] sm:$0xff]
    %v3496 = vld [vmem:[#allocation14 + $0x30] sm:$0xff]
    %v3497 = vld [vmem:[#allocation14 + $0x38] sm:$0xff]
    %v3498 = vld [vmem:[#allocation14 + $0x40] sm:$0xff]
    %v3499 = vld [vmem:[#allocation14 + $0x48] sm:$0xff]
    %v3500 = vld [vmem:[#allocation14 + $0x50] sm:$0xff]
    %v3501 = vld [vmem:[#allocation14 + $0x58] sm:$0xff]
    %v3502 = vld [vmem:[#allocation14 + $0x60] sm:$0xff]
    %v3503 = vld [vmem:[#allocation14 + $0x68] sm:$0xff]
    %v3504 = vld [vmem:[#allocation14 + $0x70] sm:$0xff]
    %v3505 = vld [vmem:[#allocation14 + $0x78] sm:$0xff]
    %v3506 = vld [vmem:[%s10] sm:$0x1]
    %v3508 = vlaneseq
    %v3509 = vshrl.u32 %v3508, 7
    %v3510 = vsub.s32 0, %v3509
    %v3511 = vrot.slane %v3506, %v3510
    %3513 = vmatprep.subr.mxu0 0.0
    %3514 = vmatpush1.msra.mxu0 %v3505
    %3515 = vmatprep.subr.mxu0 0.0
    %3516 = vmatpush1.msra.mxu0 %v3504
    %3517 = vmatprep.subr.mxu0 0.0
    %3518 = vmatpush1.msra.mxu0 %v3503
    %3519 = vmatprep.subr.mxu0 0.0
    %3520 = vmatpush1.msra.mxu0 %v3502
    %3521 = vmatprep.subr.mxu0 0.0
    %3522 = vmatpush1.msra.mxu0 %v3501
    %3523 = vmatprep.subr.mxu0 0.0
    %3524 = vmatpush1.msra.mxu0 %v3500
    %3525 = vmatprep.subr.mxu0 0.0
    %3526 = vmatpush1.msra.mxu0 %v3499
    %3527 = vmatprep.subr.mxu0 0.0
    %3528 = vmatpush1.msra.mxu0 %v3498
    %3529 = vmatprep.subr.mxu0 0.0
    %3530 = vmatpush1.msra.mxu0 %v3497
    %3531 = vmatprep.subr.mxu0 0.0
    %3532 = vmatpush1.msra.mxu0 %v3496
    %3533 = vmatprep.subr.mxu0 0.0
    %3534 = vmatpush1.msra.mxu0 %v3495
    %3535 = vmatprep.subr.mxu0 0.0
    %3536 = vmatpush1.msra.mxu0 %v3494
    %3537 = vmatprep.subr.mxu0 0.0
    %3538 = vmatpush1.msra.mxu0 %v3493
    %3539 = vmatprep.subr.mxu0 0.0
    %3540 = vmatpush1.msra.mxu0 %v3492
    %3541 = vmatprep.subr.mxu0 0.0
    %3542 = vmatpush1.msra.mxu0 %v3491
    %3543 = vmatprep.subr.mxu0 0.0
    %3544 = vmatpush1.msra.mxu0 %v3490
    %3545 = vmatprep.subr.mxu0 0.0
    %3546 = vmatpush2.msra.mxu0 0.0
    %3547 = vmatprep.subr.mxu0 0.0
    %3548 = vmatpush2.msra.mxu0 0.0
    %3549 = vmatprep.subr.mxu0 0.0
    %3550 = vmatpush2.msra.mxu0 0.0
    %3551 = vmatprep.subr.mxu0 0.0
    %3552 = vmatpush2.msra.mxu0 0.0
    %3553 = vmatprep.subr.mxu0 0.0
    %3554 = vmatpush2.msra.mxu0 0.0
    %3555 = vmatprep.subr.mxu0 0.0
    %3556 = vmatpush2.msra.mxu0 0.0
    %3557 = vmatprep.subr.mxu0 0.0
    %3558 = vmatpush2.msra.mxu0 0.0
    %3559 = vmatprep.subr.mxu0 0.0
    %3560 = vmatpush2.msra.mxu0 0.0
    %3561 = vmatprep.subr.mxu0 0.0
    %3562 = vmatpush2.msra.mxu0 0.0
    %3563 = vmatprep.subr.mxu0 0.0
    %3564 = vmatpush2.msra.mxu0 0.0
    %3565 = vmatprep.subr.mxu0 0.0
    %3566 = vmatpush2.msra.mxu0 0.0
    %3567 = vmatprep.subr.mxu0 0.0
    %3568 = vmatpush2.msra.mxu0 0.0
    %3569 = vmatprep.subr.mxu0 0.0
    %3570 = vmatpush2.msra.mxu0 0.0
    %3571 = vmatprep.subr.mxu0 0.0
    %3572 = vmatpush2.msra.mxu0 0.0
    %3573 = vmatprep.subr.mxu0 0.0
    %3574 = vmatpush2.msra.mxu0 0.0
    %3575 = vmatprep.subr.mxu0 0.0
    %3576 = vmatpush2.msra.mxu0 0.0
    %3577 = vmatprep.mubr.f32.mxu0 0.0
    %3578 = vmatmul.mubr.f32.gmra.mxu0 %v3489
    %v3579 = vpop.f32.mrf.mxu0
    %v3580 = vadd.f32 %v3511, %v3579
    %v3581 = vpop.f32.mrf.mxu0
    %3582 = vdwg.mxu0
    %3583 = vst [vmem:[#allocation15] sm:$0xff] %v3580
    // Predicated region
    $region74: #{tpu_custom_call.1} parent=1 // pred_check
      _
    $region75: #{tpu_custom_call.1} parent=1 // pred_check_branch
      %3585 = sbr.rel (0) target = $region77
    $region76: #{tpu_custom_call.1} parent=1 // pred_region
      %s3587 = ssub.s32 128, 128
      %3588 = vsyncadd [#allocation5], %s3587
      %s3590 = sshll.u32 [#allocation15], 4
      %s3591 = int_to_ptr.vmem [resolvable:$true] %s3590
      %3593 = dma.vmem_to_hbm [thread:$0]  %s3591, 128, %s11, [#allocation5]
    $region77: #{tpu_custom_call.1} parent=1 // pred_fallthru
      _
    // Predicated region
    $region78: #{tpu_custom_call.1} parent=1 // pred_check
      _
    $region79: #{tpu_custom_call.1} parent=1 // pred_check_branch
      %3595 = sbr.rel (0) target = $region81
    $region80: #{tpu_custom_call.1} parent=1 // pred_region
      %3596 = dma.done [#allocation5], 128
    $region81: #{tpu_custom_call.1} parent=1 // pred_fallthru
      _
    %3597 = vsyncpa [#allocation4], 1
    %3598 = vsyncpa [#allocation7], 1
    %3599 = vsyncpa [#allocation10], 1
    %3600 = vsyncpa [#allocation13], 1
    %3601 = vsyncpa [#allocation5], 1

</llo_original>
